<compile_context>
chip_gen: v5e
topology: v5e:2x2
jax: 0.10.0
libtpu: 0.0.40
codegen_flags: <defaults>
</compile_context>

<pallas_src>
import functools
import numpy as np
import jax
import jax.numpy as jnp
from jax.experimental import pallas as pl
from jax.experimental.pallas import tpu as pltpu

BN_EPS = 1e-5                 # PyTorch BatchNorm2d default eps
LANE = 128                    # TPU lane width
VMEM_LIMIT_BYTES = 32 * 1024 * 1024


def _round_up(x, m):
    return ((x + m - 1) // m) * m


# ---------------------------------------------------------------------------
# Pass 1 kernel: conv tile (single fused MXU dot over the 9 stacked taps)
#                + per-channel sum / sum-of-squares accumulation.
# ---------------------------------------------------------------------------
def _conv_stats_kernel(patch_ref, w_ref, conv_ref, stats_ref, acc_ref):
    i = pl.program_id(0)

    @pl.when(i == 0)
    def _init():
        acc_ref[...] = jnp.zeros_like(acc_ref)

    # (TM, 9*Cp) bf16 x (9*Cp, Cp) bf16 -> (TM, Cp) f32, one MXU call.
    conv = jnp.dot(patch_ref[...], w_ref[...],
                   preferred_element_type=jnp.float32)
    conv_ref[...] = conv

    acc_ref[0:1, :] = acc_ref[0:1, :] + jnp.sum(conv, axis=0, keepdims=True)
    acc_ref[1:2, :] = acc_ref[1:2, :] + jnp.sum(conv * conv, axis=0,
                                                keepdims=True)

    @pl.when(i == pl.num_programs(0) - 1)
    def _finalize():
        stats_ref[...] = acc_ref[...]


# ---------------------------------------------------------------------------
# Pass 2 kernel: folded BN (scale/bias) + optional residual + optional ReLU.
# ---------------------------------------------------------------------------
def _bn_act_kernel(*refs, apply_relu, has_residual):
    if has_residual:
        conv_ref, scale_ref, bias_ref, res_ref, out_ref = refs
    else:
        conv_ref, scale_ref, bias_ref, out_ref = refs

    y = conv_ref[...] * scale_ref[...] + bias_ref[...]
    if has_residual:
        y = y + res_ref[...]
    if apply_relu:
        y = jnp.maximum(y, 0.0)
    out_ref[...] = y.astype(out_ref.dtype)


# ---------------------------------------------------------------------------
# One conv3x3 -> BN -> [+res] -> [ReLU] stage (two gridded pallas_calls).
# ---------------------------------------------------------------------------
def _conv_bn_stage(x, w_stk, gamma, beta, residual, apply_relu, *, tile_m=256):
    """x: (N,H,W,Cp) f32 (channel padded).  w_stk: (9*Cp, Cp) bf16.
    gamma/beta: (Cp,) f32 (zero in padded channels).  residual: like x or None."""
    N, H, W, Cp = x.shape
    M = N * H * W
    K9 = w_stk.shape[0]

    # ---- glue (plain JAX): spatial zero-pad + im2col slab in bf16 ----------
    xp = jnp.pad(x, ((0, 0), (1, 1), (1, 1), (0, 0)))
    cols = [xp[:, dy:dy + H, dx:dx + W, :]
            for dy in range(3) for dx in range(3)]          # (dy, dx, cin) order
    patches = jnp.concatenate(cols, axis=-1).reshape(M, K9).astype(jnp.bfloat16)

    tm = min(tile_m, _round_up(M, 8))
    Mp = _round_up(M, tm)
    if Mp != M:                      # zero rows contribute 0 to sum / sumsq
        patches = jnp.pad(patches, ((0, Mp - M), (0, 0)))
    n_tiles = Mp // tm

    # ---- pass 1: conv + per-channel sum / sumsq ----------------------------
    conv_out, stats = pl.pallas_call(
        _conv_stats_kernel,
        out_shape=(jax.ShapeDtypeStruct((Mp, Cp), jnp.float32),
                   jax.ShapeDtypeStruct((8, Cp), jnp.float32)),
        grid_spec=pltpu.PrefetchScalarGridSpec(
            num_scalar_prefetch=0,
            grid=(n_tiles,),
            in_specs=[pl.BlockSpec((tm, K9), lambda i: (i, 0)),
                      pl.BlockSpec((K9, Cp), lambda i: (0, 0))],
            out_specs=[pl.BlockSpec((tm, Cp), lambda i: (i, 0)),
                       pl.BlockSpec((8, Cp), lambda i: (0, 0))],
            scratch_shapes=[pltpu.VMEM((8, Cp), jnp.float32)]),
        compiler_params=pltpu.CompilerParams(
            dimension_semantics=("arbitrary",),
            vmem_limit_bytes=VMEM_LIMIT_BYTES),
    )(patches, w_stk)

    # ---- fold BN into one per-channel scale / bias (tiny per-channel glue) -
    cnt = jnp.float32(M)
    mean = stats[0, :] / cnt
    var = jnp.maximum(stats[1, :] / cnt - mean * mean, 0.0)
    scale = gamma * jax.lax.rsqrt(var + BN_EPS)
    bias = beta - mean * scale

    # ---- pass 2: normalize + residual + ReLU -------------------------------
    args = [conv_out, scale.reshape(1, Cp), bias.reshape(1, Cp)]
    in_specs = [pl.BlockSpec((tm, Cp), lambda i: (i, 0)),
                pl.BlockSpec((1, Cp), lambda i: (0, 0)),
                pl.BlockSpec((1, Cp), lambda i: (0, 0))]
    has_residual = residual is not None
    if has_residual:
        res_flat = residual.reshape(M, Cp)
        if Mp != M:
            res_flat = jnp.pad(res_flat, ((0, Mp - M), (0, 0)))
        args.append(res_flat)
        in_specs.append(pl.BlockSpec((tm, Cp), lambda i: (i, 0)))

    kernel = functools.partial(_bn_act_kernel, apply_relu=apply_relu,
                               has_residual=has_residual)
    y = pl.pallas_call(
        kernel,
        out_shape=jax.ShapeDtypeStruct((Mp, Cp), jnp.float32),
        grid_spec=pltpu.PrefetchScalarGridSpec(
            num_scalar_prefetch=0,
            grid=(n_tiles,),
            in_specs=in_specs,
            out_specs=pl.BlockSpec((tm, Cp), lambda i: (i, 0))),
        compiler_params=pltpu.CompilerParams(
            dimension_semantics=("parallel",),
            vmem_limit_bytes=VMEM_LIMIT_BYTES),
    )(*args)

    return y[:M].reshape(N, H, W, Cp)


# ---------------------------------------------------------------------------
# Parameter prep (channel padding + tap stacking) and block wrappers.
# DoubleBasicBlock uses stride=1, downsample=None => inplanes == planes.
# ---------------------------------------------------------------------------
def _prep_weight(w, Cp):
    kh, kw, cin, cout = w.shape
    wp = jnp.zeros((kh, kw, Cp, Cp), jnp.float32).at[:, :, :cin, :cout].set(w)
    return wp.reshape(kh * kw * Cp, Cp).astype(jnp.bfloat16)


def _prep_vec(v, Cp):
    return jnp.pad(v.astype(jnp.float32), (0, Cp - v.shape[0]))


def _prep_block_params(params, Cp):
    w1, g1, b1, w2, g2, b2 = params
    return (_prep_weight(w1, Cp), _prep_vec(g1, Cp), _prep_vec(b1, Cp),
            _prep_weight(w2, Cp), _prep_vec(g2, Cp), _prep_vec(b2, Cp))


def basic_block(x, prepped, if_relu=True):
    """conv1->bn1->relu, conv2->bn2 + identity, [relu].  x: (N,H,W,Cp) f32."""
    w1, g1, b1, w2, g2, b2 = prepped
    h = _conv_bn_stage(x, w1, g1, b1, None, apply_relu=True)   # no residual DMA
    out = _conv_bn_stage(h, w2, g2, b2, x, apply_relu=if_relu)
    return out


def double_basic_block(x_nchw, params1, params2, if_relu=False):
    N, C, H, W = x_nchw.shape
    Cp = _round_up(max(C, LANE), LANE)

    x = jnp.transpose(x_nchw, (0, 2, 3, 1))                    # NCHW -> NHWC
    x = jnp.pad(x, ((0, 0), (0, 0), (0, 0), (0, Cp - C)))      # lane-pad channels

    p1 = _prep_block_params(params1, Cp)
    p2 = _prep_block_params(params2, Cp)

    o1 = basic_block(x, p1, if_relu=True)       # BasicBlock 1 (default if_relu=True)
    o2 = basic_block(o1, p2, if_relu=if_relu)   # BasicBlock 2 (if_relu=False)

    return jnp.transpose(o2[..., :C], (0, 3, 1, 2))            # NHWC -> NCHW


# ---------------------------------------------------------------------------
# Pure-JAX reference (mirrors the bf16 MXU input quantization, f32 accumulate).
# ---------------------------------------------------------------------------
def _ref_conv_bn(x, w, gamma, beta, residual, apply_relu):
    y = jax.lax.conv_general_dilated(
        x.astype(jnp.bfloat16), w.astype(jnp.bfloat16), (1, 1), ((1, 1), (1, 1)),
        dimension_numbers=("NHWC", "HWIO", "NHWC"),
        preferred_element_type=jnp.float32)
    mean = jnp.mean(y, axis=(0, 1, 2), keepdims=True)
    var = jnp.mean((y - mean) ** 2, axis=(0, 1, 2), keepdims=True)
    y = gamma * (y - mean) * jax.lax.rsqrt(var + BN_EPS) + beta
    if residual is not None:
        y = y + residual
    return jnp.maximum(y, 0.0) if apply_relu else y


def _ref_basic_block(x, params, if_relu=True):
    w1, g1, b1, w2, g2, b2 = params
    h = _ref_conv_bn(x, w1, g1, b1, None, True)
    return _ref_conv_bn(h, w2, g2, b2, x, if_relu)


def _ref_double_basic_block(x_nchw, p1, p2, if_relu=False):
    x = jnp.transpose(x_nchw, (0, 2, 3, 1))
    o1 = _ref_basic_block(x, p1, True)
    o2 = _ref_basic_block(o1, p2, if_relu)
    return jnp.transpose(o2, (0, 3, 1, 2))


# ---------------------------------------------------------------------------
if __name__ == "__main__":
    key = jax.random.PRNGKey(0)
    N, C, H, W = 2, 8, 16, 16              # inplanes == planes (downsample=None)
    keys = jax.random.split(key, 5)
    x = jax.random.normal(keys[0], (N, C, H, W), jnp.float32)

    def make_block_params(k_a, k_b, c_in, c_out):
        # deterministic synthetic init; BN: gamma=1, beta=0 (PyTorch init)
        w1 = 0.2 * jax.random.normal(k_a, (3, 3, c_in, c_out), jnp.float32)
        w2 = 0.2 * jax.random.normal(k_b, (3, 3, c_out, c_out), jnp.float32)
        g = jnp.ones((c_out,), jnp.float32)
        b = jnp.zeros((c_out,), jnp.float32)
        return (w1, g, b, w2, g, b)

    p1 = make_block_params(keys[1], keys[2], C, C)
    p2 = make_block_params(keys[3], keys[4], C, C)

    fn = jax.jit(functools.partial(double_basic_block, if_relu=False))
    out = jax.block_until_ready(fn(x, p1, p2))
    ref = jax.block_until_ready(_ref_double_basic_block(x, p1, p2, if_relu=False))

    assert out.shape == (N, C, H, W)
    np.testing.assert_allclose(np.asarray(out), np.asarray(ref),
                               rtol=1e-2, atol=1e-2)
    print("KERNEL_OK")
</pallas_src>

<mosaic_0001>
module attributes {stable_mosaic.version = 11 : i64} {
  func.func @_conv_stats_kernel(%arg0: i32, %arg1: memref<256x1152xbf16, #tpu.memory_space<vmem>>, %arg2: memref<1152x128xbf16, #tpu.memory_space<vmem>>, %arg3: memref<256x128xf32, #tpu.memory_space<vmem>>, %arg4: memref<8x128xf32, #tpu.memory_space<vmem>>, %arg5: memref<8x128xf32, #tpu.memory_space<vmem>>) attributes {dimension_semantics = [#tpu.dimension_semantics<arbitrary>], iteration_bounds = array<i64: 2>, scalar_prefetch = 0 : i64, scratch_operands = 1 : i64, tpu.core_type = #tpu.core_type<tc>, window_params = [{transform_indices = @transform_0, window_bounds = array<i64: 256, 1152>}, {pipeline_mode = #tpu.pipeline_mode<synchronous>, transform_indices = @transform_1, window_bounds = array<i64: 1152, 128>}, {transform_indices = @transform_2, window_bounds = array<i64: 256, 128>}, {pipeline_mode = #tpu.pipeline_mode<synchronous>, transform_indices = @transform_3, window_bounds = array<i64: 8, 128>}]} {
    %c0_i32 = arith.constant 0 : i32
    %0 = arith.cmpi eq, %arg0, %c0_i32 : i32
    %1 = arith.extui %0 : i1 to i32
    %c0_i32_0 = arith.constant 0 : i32
    %2 = arith.cmpi ne, %1, %c0_i32_0 : i32
    scf.if %2 {
      %cst_16 = arith.constant 0.000000e+00 : f32
      %21 = vector.broadcast %cst_16 : f32 to vector<8x128xf32>
      %c0_17 = arith.constant 0 : index
      %c0_18 = arith.constant 0 : index
      %22 = vector.load %arg5[%c0_17, %c0_18] : memref<8x128xf32, #tpu.memory_space<vmem>>, vector<8x128xf32>
      tpu.vector_store %arg5[%c0_17, %c0_18], %21 {strides = array<i32>} : memref<8x128xf32, #tpu.memory_space<vmem>>, vector<8x128xf32>,
    } else {
    }
    %c0 = arith.constant 0 : index
    %c0_1 = arith.constant 0 : index
    %3 = vector.load %arg1[%c0, %c0_1] : memref<256x1152xbf16, #tpu.memory_space<vmem>>, vector<256x1152xbf16>
    %c0_2 = arith.constant 0 : index
    %c0_3 = arith.constant 0 : index
    %4 = vector.load %arg2[%c0_2, %c0_3] : memref<1152x128xbf16, #tpu.memory_space<vmem>>, vector<1152x128xbf16>
    %cst = arith.constant dense<0.000000e+00> : vector<256x128xf32>
    %5 = tpu.matmul %3, %4, %cst {dimension_numbers = #tpu.dot_dimension_numbers<[1], [0], [0], [1], [0, 0, 1, 1], [], []>} : vector<256x1152xbf16>, vector<1152x128xbf16>, vector<256x128xf32> -> vector<256x128xf32>
    %c0_4 = arith.constant 0 : index
    %c0_5 = arith.constant 0 : index
    %6 = vector.load %arg3[%c0_4, %c0_5] : memref<256x128xf32, #tpu.memory_space<vmem>>, vector<256x128xf32>
    tpu.vector_store %arg3[%c0_4, %c0_5], %5 {strides = array<i32>} : memref<256x128xf32, #tpu.memory_space<vmem>>, vector<256x128xf32>,
    %c0_6 = arith.constant 0 : index
    %c0_7 = arith.constant 0 : index
    %7 = vector.load %arg5[%c0_6, %c0_7] : memref<8x128xf32, #tpu.memory_space<vmem>>, vector<1x128xf32>
    %cst_8 = arith.constant dense<0.000000e+00> : vector<128xf32>
    %8 = vector.multi_reduction <add>, %5, %cst_8 [0] : vector<256x128xf32> to vector<128xf32>
    %9 = vector.shape_cast %8 : vector<128xf32> to vector<1x128xf32>
    %10 = arith.addf %7, %9 : vector<1x128xf32>
    %c0_9 = arith.constant 0 : index
    %c0_10 = arith.constant 0 : index
    %11 = vector.load %arg5[%c0_9, %c0_10] : memref<8x128xf32, #tpu.memory_space<vmem>>, vector<1x128xf32>
    tpu.vector_store %arg5[%c0_9, %c0_10], %10 {strides = array<i32>} : memref<8x128xf32, #tpu.memory_space<vmem>>, vector<1x128xf32>,
    %c1 = arith.constant 1 : index
    %c0_11 = arith.constant 0 : index
    %12 = vector.load %arg5[%c1, %c0_11] : memref<8x128xf32, #tpu.memory_space<vmem>>, vector<1x128xf32>
    %13 = arith.mulf %5, %5 : vector<256x128xf32>
    %cst_12 = arith.constant dense<0.000000e+00> : vector<128xf32>
    %14 = vector.multi_reduction <add>, %13, %cst_12 [0] : vector<256x128xf32> to vector<128xf32>
    %15 = vector.shape_cast %14 : vector<128xf32> to vector<1x128xf32>
    %16 = arith.addf %12, %15 : vector<1x128xf32>
    %c1_13 = arith.constant 1 : index
    %c0_14 = arith.constant 0 : index
    %17 = vector.load %arg5[%c1_13, %c0_14] : memref<8x128xf32, #tpu.memory_space<vmem>>, vector<1x128xf32>
    tpu.vector_store %arg5[%c1_13, %c0_14], %16 {strides = array<i32>} : memref<8x128xf32, #tpu.memory_space<vmem>>, vector<1x128xf32>,
    %c1_i32 = arith.constant 1 : i32
    %18 = arith.cmpi eq, %arg0, %c1_i32 : i32
    %19 = arith.extui %18 : i1 to i32
    %c0_i32_15 = arith.constant 0 : i32
    %20 = arith.cmpi ne, %19, %c0_i32_15 : i32
    scf.if %20 {
      %c0_16 = arith.constant 0 : index
      %c0_17 = arith.constant 0 : index
      %21 = vector.load %arg5[%c0_16, %c0_17] : memref<8x128xf32, #tpu.memory_space<vmem>>, vector<8x128xf32>
      %c0_18 = arith.constant 0 : index
      %c0_19 = arith.constant 0 : index
      %22 = vector.load %arg4[%c0_18, %c0_19] : memref<8x128xf32, #tpu.memory_space<vmem>>, vector<8x128xf32>
      tpu.vector_store %arg4[%c0_18, %c0_19], %21 {strides = array<i32>} : memref<8x128xf32, #tpu.memory_space<vmem>>, vector<8x128xf32>,
    } else {
    }
    return
  }
  func.func @transform_0(%arg0: i32) -> (i32, i32) {
    %c0_i32 = arith.constant 0 : i32
    %c0_i32_0 = arith.constant 0 : i32
    return %arg0, %c0_i32 : i32, i32
  }
  func.func @transform_1(%arg0: i32) -> (i32, i32) {
    %c0_i32 = arith.constant 0 : i32
    %c0_i32_0 = arith.constant 0 : i32
    %c0_i32_1 = arith.constant 0 : i32
    return %c0_i32, %c0_i32_0 : i32, i32
  }
  func.func @transform_2(%arg0: i32) -> (i32, i32) {
    %c0_i32 = arith.constant 0 : i32
    %c0_i32_0 = arith.constant 0 : i32
    return %arg0, %c0_i32 : i32, i32
  }
  func.func @transform_3(%arg0: i32) -> (i32, i32) {
    %c0_i32 = arith.constant 0 : i32
    %c0_i32_0 = arith.constant 0 : i32
    %c0_i32_1 = arith.constant 0 : i32
    return %c0_i32, %c0_i32_0 : i32, i32
  }
}

module attributes {stable_mosaic.version = 11 : i64} {
  func.func @_bn_act_kernel(%arg0: i32, %arg1: memref<256x128xf32, #tpu.memory_space<vmem>>, %arg2: memref<1x128xf32, #tpu.memory_space<vmem>>, %arg3: memref<1x128xf32, #tpu.memory_space<vmem>>, %arg4: memref<256x128xf32, #tpu.memory_space<vmem>>) attributes {dimension_semantics = [#tpu.dimension_semantics<parallel>], iteration_bounds = array<i64: 2>, scalar_prefetch = 0 : i64, scratch_operands = 0 : i64, tpu.core_type = #tpu.core_type<tc>, window_params = [{transform_indices = @transform_0, window_bounds = array<i64: 256, 128>}, {pipeline_mode = #tpu.pipeline_mode<synchronous>, transform_indices = @transform_1, window_bounds = array<i64: 1, 128>}, {pipeline_mode = #tpu.pipeline_mode<synchronous>, transform_indices = @transform_2, window_bounds = array<i64: 1, 128>}, {transform_indices = @transform_3, window_bounds = array<i64: 256, 128>}]} {
    %c0 = arith.constant 0 : index
    %c0_0 = arith.constant 0 : index
    %0 = vector.load %arg1[%c0, %c0_0] : memref<256x128xf32, #tpu.memory_space<vmem>>, vector<256x128xf32>
    %c0_1 = arith.constant 0 : index
    %c0_2 = arith.constant 0 : index
    %1 = vector.load %arg2[%c0_1, %c0_2] : memref<1x128xf32, #tpu.memory_space<vmem>>, vector<1x128xf32>
    %2 = vector.broadcast %1 : vector<1x128xf32> to vector<256x128xf32>
    %3 = arith.mulf %0, %2 : vector<256x128xf32>
    %c0_3 = arith.constant 0 : index
    %c0_4 = arith.constant 0 : index
    %4 = vector.load %arg3[%c0_3, %c0_4] : memref<1x128xf32, #tpu.memory_space<vmem>>, vector<1x128xf32>
    %5 = vector.broadcast %4 : vector<1x128xf32> to vector<256x128xf32>
    %6 = arith.addf %3, %5 : vector<256x128xf32>
    %cst = arith.constant 0.000000e+00 : f32
    %7 = vector.broadcast %cst : f32 to vector<256x128xf32>
    %8 = arith.maximumf %6, %7 : vector<256x128xf32>
    %c0_5 = arith.constant 0 : index
    %c0_6 = arith.constant 0 : index
    %9 = vector.load %arg4[%c0_5, %c0_6] : memref<256x128xf32, #tpu.memory_space<vmem>>, vector<256x128xf32>
    tpu.vector_store %arg4[%c0_5, %c0_6], %8 {strides = array<i32>} : memref<256x128xf32, #tpu.memory_space<vmem>>, vector<256x128xf32>,
    return
  }
  func.func @transform_0(%arg0: i32) -> (i32, i32) {
    %c0_i32 = arith.constant 0 : i32
    %c0_i32_0 = arith.constant 0 : i32
    return %arg0, %c0_i32 : i32, i32
  }
  func.func @transform_1(%arg0: i32) -> (i32, i32) {
    %c0_i32 = arith.constant 0 : i32
    %c0_i32_0 = arith.constant 0 : i32
    %c0_i32_1 = arith.constant 0 : i32
    return %c0_i32, %c0_i32_0 : i32, i32
  }
  func.func @transform_2(%arg0: i32) -> (i32, i32) {
    %c0_i32 = arith.constant 0 : i32
    %c0_i32_0 = arith.constant 0 : i32
    %c0_i32_1 = arith.constant 0 : i32
    return %c0_i32, %c0_i32_0 : i32, i32
  }
  func.func @transform_3(%arg0: i32) -> (i32, i32) {
    %c0_i32 = arith.constant 0 : i32
    %c0_i32_0 = arith.constant 0 : i32
    return %arg0, %c0_i32 : i32, i32
  }
}

module attributes {stable_mosaic.version = 11 : i64} {
  func.func @_bn_act_kernel(%arg0: i32, %arg1: memref<256x128xf32, #tpu.memory_space<vmem>>, %arg2: memref<1x128xf32, #tpu.memory_space<vmem>>, %arg3: memref<1x128xf32, #tpu.memory_space<vmem>>, %arg4: memref<256x128xf32, #tpu.memory_space<vmem>>, %arg5: memref<256x128xf32, #tpu.memory_space<vmem>>) attributes {dimension_semantics = [#tpu.dimension_semantics<parallel>], iteration_bounds = array<i64: 2>, scalar_prefetch = 0 : i64, scratch_operands = 0 : i64, tpu.core_type = #tpu.core_type<tc>, window_params = [{transform_indices = @transform_0, window_bounds = array<i64: 256, 128>}, {pipeline_mode = #tpu.pipeline_mode<synchronous>, transform_indices = @transform_1, window_bounds = array<i64: 1, 128>}, {pipeline_mode = #tpu.pipeline_mode<synchronous>, transform_indices = @transform_2, window_bounds = array<i64: 1, 128>}, {transform_indices = @transform_3, window_bounds = array<i64: 256, 128>}, {transform_indices = @transform_4, window_bounds = array<i64: 256, 128>}]} {
    %c0 = arith.constant 0 : index
    %c0_0 = arith.constant 0 : index
    %0 = vector.load %arg1[%c0, %c0_0] : memref<256x128xf32, #tpu.memory_space<vmem>>, vector<256x128xf32>
    %c0_1 = arith.constant 0 : index
    %c0_2 = arith.constant 0 : index
    %1 = vector.load %arg2[%c0_1, %c0_2] : memref<1x128xf32, #tpu.memory_space<vmem>>, vector<1x128xf32>
    %2 = vector.broadcast %1 : vector<1x128xf32> to vector<256x128xf32>
    %3 = arith.mulf %0, %2 : vector<256x128xf32>
    %c0_3 = arith.constant 0 : index
    %c0_4 = arith.constant 0 : index
    %4 = vector.load %arg3[%c0_3, %c0_4] : memref<1x128xf32, #tpu.memory_space<vmem>>, vector<1x128xf32>
    %5 = vector.broadcast %4 : vector<1x128xf32> to vector<256x128xf32>
    %6 = arith.addf %3, %5 : vector<256x128xf32>
    %c0_5 = arith.constant 0 : index
    %c0_6 = arith.constant 0 : index
    %7 = vector.load %arg4[%c0_5, %c0_6] : memref<256x128xf32, #tpu.memory_space<vmem>>, vector<256x128xf32>
    %8 = arith.addf %6, %7 : vector<256x128xf32>
    %c0_7 = arith.constant 0 : index
    %c0_8 = arith.constant 0 : index
    %9 = vector.load %arg5[%c0_7, %c0_8] : memref<256x128xf32, #tpu.memory_space<vmem>>, vector<256x128xf32>
    tpu.vector_store %arg5[%c0_7, %c0_8], %8 {strides = array<i32>} : memref<256x128xf32, #tpu.memory_space<vmem>>, vector<256x128xf32>,
    return
  }
  func.func @transform_0(%arg0: i32) -> (i32, i32) {
    %c0_i32 = arith.constant 0 : i32
    %c0_i32_0 = arith.constant 0 : i32
    return %arg0, %c0_i32 : i32, i32
  }
  func.func @transform_1(%arg0: i32) -> (i32, i32) {
    %c0_i32 = arith.constant 0 : i32
    %c0_i32_0 = arith.constant 0 : i32
    %c0_i32_1 = arith.constant 0 : i32
    return %c0_i32, %c0_i32_0 : i32, i32
  }
  func.func @transform_2(%arg0: i32) -> (i32, i32) {
    %c0_i32 = arith.constant 0 : i32
    %c0_i32_0 = arith.constant 0 : i32
    %c0_i32_1 = arith.constant 0 : i32
    return %c0_i32, %c0_i32_0 : i32, i32
  }
  func.func @transform_3(%arg0: i32) -> (i32, i32) {
    %c0_i32 = arith.constant 0 : i32
    %c0_i32_0 = arith.constant 0 : i32
    return %arg0, %c0_i32 : i32, i32
  }
  func.func @transform_4(%arg0: i32) -> (i32, i32) {
    %c0_i32 = arith.constant 0 : i32
    %c0_i32_0 = arith.constant 0 : i32
    return %arg0, %c0_i32 : i32, i32
  }
}

module attributes {stable_mosaic.version = 11 : i64} {
  func.func @_bn_act_kernel(%arg0: i32, %arg1: memref<256x128xf32, #tpu.memory_space<vmem>>, %arg2: memref<1x128xf32, #tpu.memory_space<vmem>>, %arg3: memref<1x128xf32, #tpu.memory_space<vmem>>, %arg4: memref<256x128xf32, #tpu.memory_space<vmem>>, %arg5: memref<256x128xf32, #tpu.memory_space<vmem>>) attributes {dimension_semantics = [#tpu.dimension_semantics<parallel>], iteration_bounds = array<i64: 2>, scalar_prefetch = 0 : i64, scratch_operands = 0 : i64, tpu.core_type = #tpu.core_type<tc>, window_params = [{transform_indices = @transform_0, window_bounds = array<i64: 256, 128>}, {pipeline_mode = #tpu.pipeline_mode<synchronous>, transform_indices = @transform_1, window_bounds = array<i64: 1, 128>}, {pipeline_mode = #tpu.pipeline_mode<synchronous>, transform_indices = @transform_2, window_bounds = array<i64: 1, 128>}, {transform_indices = @transform_3, window_bounds = array<i64: 256, 128>}, {transform_indices = @transform_4, window_bounds = array<i64: 256, 128>}]} {
    %c0 = arith.constant 0 : index
    %c0_0 = arith.constant 0 : index
    %0 = vector.load %arg1[%c0, %c0_0] : memref<256x128xf32, #tpu.memory_space<vmem>>, vector<256x128xf32>
    %c0_1 = arith.constant 0 : index
    %c0_2 = arith.constant 0 : index
    %1 = vector.load %arg2[%c0_1, %c0_2] : memref<1x128xf32, #tpu.memory_space<vmem>>, vector<1x128xf32>
    %2 = vector.broadcast %1 : vector<1x128xf32> to vector<256x128xf32>
    %3 = arith.mulf %0, %2 : vector<256x128xf32>
    %c0_3 = arith.constant 0 : index
    %c0_4 = arith.constant 0 : index
    %4 = vector.load %arg3[%c0_3, %c0_4] : memref<1x128xf32, #tpu.memory_space<vmem>>, vector<1x128xf32>
    %5 = vector.broadcast %4 : vector<1x128xf32> to vector<256x128xf32>
    %6 = arith.addf %3, %5 : vector<256x128xf32>
    %c0_5 = arith.constant 0 : index
    %c0_6 = arith.constant 0 : index
    %7 = vector.load %arg4[%c0_5, %c0_6] : memref<256x128xf32, #tpu.memory_space<vmem>>, vector<256x128xf32>
    %8 = arith.addf %6, %7 : vector<256x128xf32>
    %cst = arith.constant 0.000000e+00 : f32
    %9 = vector.broadcast %cst : f32 to vector<256x128xf32>
    %10 = arith.maximumf %8, %9 : vector<256x128xf32>
    %c0_7 = arith.constant 0 : index
    %c0_8 = arith.constant 0 : index
    %11 = vector.load %arg5[%c0_7, %c0_8] : memref<256x128xf32, #tpu.memory_space<vmem>>, vector<256x128xf32>
    tpu.vector_store %arg5[%c0_7, %c0_8], %10 {strides = array<i32>} : memref<256x128xf32, #tpu.memory_space<vmem>>, vector<256x128xf32>,
    return
  }
  func.func @transform_0(%arg0: i32) -> (i32, i32) {
    %c0_i32 = arith.constant 0 : i32
    %c0_i32_0 = arith.constant 0 : i32
    return %arg0, %c0_i32 : i32, i32
  }
  func.func @transform_1(%arg0: i32) -> (i32, i32) {
    %c0_i32 = arith.constant 0 : i32
    %c0_i32_0 = arith.constant 0 : i32
    %c0_i32_1 = arith.constant 0 : i32
    return %c0_i32, %c0_i32_0 : i32, i32
  }
  func.func @transform_2(%arg0: i32) -> (i32, i32) {
    %c0_i32 = arith.constant 0 : i32
    %c0_i32_0 = arith.constant 0 : i32
    %c0_i32_1 = arith.constant 0 : i32
    return %c0_i32, %c0_i32_0 : i32, i32
  }
  func.func @transform_3(%arg0: i32) -> (i32, i32) {
    %c0_i32 = arith.constant 0 : i32
    %c0_i32_0 = arith.constant 0 : i32
    return %arg0, %c0_i32 : i32, i32
  }
  func.func @transform_4(%arg0: i32) -> (i32, i32) {
    %c0_i32 = arith.constant 0 : i32
    %c0_i32_0 = arith.constant 0 : i32
    return %arg0, %c0_i32 : i32, i32
  }
}

</mosaic_0001>

<llo_original>
// kernel: double_basic_block.9
$region0: #{double_basic_block.9}
  #allocation0 [shape = 'u32[]', space=smem, size = 0x4, offset = 0x4, fixed_abs, tag = 'smem constant byte address 0x4 - core index']
  #allocation1 [shape = 'u32[72,128]{1,0:T(1,128)}', space=vmem, size = 0x9000, scoped, tag = 'internal scratch']
  %s0 = inlined_call_operand.vmem [shape: f32[512,128], index: 0, kind: input, shape index: {}]
  %s1 = inlined_call_operand.vmem [shape: f32[1,128], index: 1, kind: input, shape index: {}]
  %s2 = inlined_call_operand.vmem [shape: f32[1,128], index: 2, kind: input, shape index: {}]
  %s3 = inlined_call_operand.vmem [shape: f32[512,128], index: 3, kind: output, shape index: {}]
  %s4 = sld [smem:[#allocation0]]
  $region45: #{double_basic_block.9} parent=0
    _
  %s6 = ssub.s32 1, %s4
  %s7 = scalar_select 0, %s6, %s4
  loop: start=0, step=1, limit=4
  $region2: #{double_basic_block.9} parent=0 // loop_pre_header
    _
  $region3: #{double_basic_block.9} parent=0 // loop_header
    %s9 = sphi 0, %s13
    %p10 = scmp.ge.s32.totalorder %s9, 4
    %s19 = sphi 0, %s21
    %s22 = sphi 0, %s19
    %s23 = sphi 0, %s22
    %s39 = sphi 0, %s23
    %s43 = sphi 0, %s43
    %s45 = sphi 0, %s43
    %s46 = sphi 0, %s45
    %s60 = sphi 0, %s46
    %s64 = sphi 0, %s64
    %s66 = sphi 0, %s64
    %s67 = sphi 0, %s66
    %s81 = sphi 0, %s67
    %s87 = sphi 0, %s89
    %s90 = sphi 0, %s87
    %s91 = sphi 0, %s90
    %s107 = sphi 0, %s91
  $region4: #{double_basic_block.9} parent=0 // loop_header_branch
    %12 = sbr.rel (%p10) target = $region8
  $region5: #{double_basic_block.9} parent=0 // loop_body
    %s14 = ssub.s32 %s9, 1
    %s15 = ssub.s32 %s9, 2
    %s16 = sadd.s32 %s9, 1
    %s17 = ssub.s32 %s9, %s16
    %p18 = scmp.eq.s32.totalorder %s17, 0
    %s20 = sadd.s32 %s19, 1
    %s21 = scalar_select %p18, %s19, %s20
    %p24 = pneg %p18
    %p25 = scmp.eq.s32.totalorder %s9, 1
    %p26 = por %p24, %p25
    %p27 = scmp.ne.s32.totalorder %s19, %s22
    %p28 = scmp.eq.s32.totalorder %s9, 0
    %p29 = por %p27, %p28
    %p30 = scmp.ne.s32.totalorder %s19, %s22
    %p31 = scmp.eq.s32.totalorder %s14, 1
    %p32 = por %p30, %p31
    %p33 = scmp.ne.s32.totalorder %s22, %s23
    %p34 = scmp.eq.s32.totalorder %s14, 0
    %p35 = por %p33, %p34
    %p36 = scmp.ne.s32.totalorder %s22, %s23
    %p37 = scmp.eq.s32.totalorder %s15, 1
    %p38 = por %p36, %p37
    %p40 = scmp.ne.s32.totalorder %s23, %s39
    %p41 = scmp.eq.s32.totalorder %s15, 0
    %p42 = por %p40, %p41
    %s44 = sadd.s32 %s43, 1
    %p47 = scmp.eq.s32.totalorder %s9, 1
    %p48 = scmp.ne.s32.totalorder %s43, %s45
    %p49 = scmp.eq.s32.totalorder %s9, 0
    %p50 = por %p48, %p49
    %p51 = scmp.ne.s32.totalorder %s43, %s45
    %p52 = scmp.eq.s32.totalorder %s14, 1
    %p53 = por %p51, %p52
    %p54 = scmp.ne.s32.totalorder %s45, %s46
    %p55 = scmp.eq.s32.totalorder %s14, 0
    %p56 = por %p54, %p55
    %p57 = scmp.ne.s32.totalorder %s45, %s46
    %p58 = scmp.eq.s32.totalorder %s15, 1
    %p59 = por %p57, %p58
    %p61 = scmp.ne.s32.totalorder %s46, %s60
    %p62 = scmp.eq.s32.totalorder %s15, 0
    %p63 = por %p61, %p62
    %s65 = sadd.s32 %s64, 1
    %p68 = scmp.eq.s32.totalorder %s9, 1
    %p69 = scmp.ne.s32.totalorder %s64, %s66
    %p70 = scmp.eq.s32.totalorder %s9, 0
    %p71 = por %p69, %p70
    %p72 = scmp.ne.s32.totalorder %s64, %s66
    %p73 = scmp.eq.s32.totalorder %s14, 1
    %p74 = por %p72, %p73
    %p75 = scmp.ne.s32.totalorder %s66, %s67
    %p76 = scmp.eq.s32.totalorder %s14, 0
    %p77 = por %p75, %p76
    %p78 = scmp.ne.s32.totalorder %s66, %s67
    %p79 = scmp.eq.s32.totalorder %s15, 1
    %p80 = por %p78, %p79
    %p82 = scmp.ne.s32.totalorder %s67, %s81
    %p83 = scmp.eq.s32.totalorder %s15, 0
    %p84 = por %p82, %p83
    %s85 = ssub.s32 %s9, %s16
    %p86 = scmp.eq.s32.totalorder %s85, 0
    %s88 = sadd.s32 %s87, 1
    %s89 = scalar_select %p86, %s87, %s88
    %p92 = pneg %p86
    %p93 = scmp.eq.s32.totalorder %s9, 1
    %p94 = por %p92, %p93
    %p95 = scmp.ne.s32.totalorder %s87, %s90
    %p96 = scmp.eq.s32.totalorder %s9, 0
    %p97 = por %p95, %p96
    %p98 = scmp.ne.s32.totalorder %s87, %s90
    %p99 = scmp.eq.s32.totalorder %s14, 1
    %p100 = por %p98, %p99
    %p101 = scmp.ne.s32.totalorder %s90, %s91
    %p102 = scmp.eq.s32.totalorder %s14, 0
    %p103 = por %p101, %p102
    %p104 = scmp.ne.s32.totalorder %s90, %s91
    %p105 = scmp.eq.s32.totalorder %s15, 1
    %p106 = por %p104, %p105
    %p108 = scmp.ne.s32.totalorder %s91, %s107
    %p109 = scmp.eq.s32.totalorder %s15, 0
    %p110 = por %p108, %p109
    %p111 = scmp.le.s32.totalorder 1, %s9
    %p112 = scmp.lt.s32.totalorder %s9, 3
    %p113 = pnand %p111, %p112
    %p114 = pneg %p113
    // Predicated region
    $region9: #{double_basic_block.9} parent=5 // pred_check
      _
    $region10: #{double_basic_block.9} parent=5 // pred_check_branch
      %116 = sbr.rel (%p113) target = $region12
    $region11: #{double_basic_block.9} parent=5 // pred_region
      %s117 = ssub.s32 %s9, 1
      // Predicated region
      $region13: #{double_basic_block.9} parent=11 // pred_check
        %p118 = pneg %p56
      $region14: #{double_basic_block.9} parent=11 // pred_check_branch
        %120 = sbr.rel (%p118) target = $region16
      $region15: #{double_basic_block.9} parent=11 // pred_region
        _
      $region16: #{double_basic_block.9} parent=11 // pred_fallthru
        _
      // Predicated region
      $region17: #{double_basic_block.9} parent=11 // pred_check
        %p121 = pneg %p77
      $region18: #{double_basic_block.9} parent=11 // pred_check_branch
        %123 = sbr.rel (%p121) target = $region20
      $region19: #{double_basic_block.9} parent=11 // pred_region
        _
      $region20: #{double_basic_block.9} parent=11 // pred_fallthru
        _
    $region12: #{double_basic_block.9} parent=5 // pred_fallthru
      _
    %p124 = scmp.lt.s32.totalorder %s9, 2
    // Predicated region
    $region21: #{double_basic_block.9} parent=5 // pred_check
      %p125 = pneg %p124
    $region22: #{double_basic_block.9} parent=5 // pred_check_branch
      %127 = sbr.rel (%p125) target = $region24
    $region23: #{double_basic_block.9} parent=5 // pred_region
      // Predicated region
      $region25: #{double_basic_block.9} parent=23 // pred_check
        %p128 = pneg %p29
      $region26: #{double_basic_block.9} parent=23 // pred_check_branch
        %130 = sbr.rel (%p128) target = $region28
      $region27: #{double_basic_block.9} parent=23 // pred_region
        %s131 = smul.u32 32, %s9
        %p132 = scmp.lt.s32.totalorder %s131, 63
        %s133 = scalar_select %p132, %s131, 63
        %s134 = smul.addr %s133, 8
        %s135 = scalar_lea.vmem %s0, %s134
        %s136 = smul.u32 32, %s9
      $region28: #{double_basic_block.9} parent=23 // pred_fallthru
        _
    $region24: #{double_basic_block.9} parent=5 // pred_fallthru
      _
    %p137 = scmp.le.s32.totalorder 1, %s9
    %p138 = scmp.lt.s32.totalorder %s9, 3
    %p139 = pnand %p137, %p138
    %p140 = pneg %p139
    // Predicated region
    $region29: #{double_basic_block.9} parent=5 // pred_check
      _
    $region30: #{double_basic_block.9} parent=5 // pred_check_branch
      %142 = sbr.rel (%p139) target = $region32
    $region31: #{double_basic_block.9} parent=5 // pred_region
      %s143 = ssub.s32 %s9, 1
      %s144 = smul.u32 32, %s14
      %p145 = scmp.lt.s32.totalorder %s144, 63
      %s146 = scalar_select %p145, %s144, 63
      %s147 = smul.addr %s146, 8
      %s148 = scalar_lea.vmem %s0, %s147
      %p149 = pneg %p35
      %p150 = pneg %p32
      %p151 = pneg %p56
      %p152 = pneg %p53
      %p153 = pneg %p77
      %p154 = pneg %p74
      %p155 = pneg %p103
      %p156 = pneg %p100
      %s157 = smul.u32 32, %s14
      %p158 = scmp.lt.s32.totalorder %s157, 63
      %s159 = scalar_select %p158, %s157, 63
      %s160 = smul.addr %s159, 8
      %s161 = scalar_lea.vmem %s3, %s160
      %s162 = smul.u32 32, %s14
      %p163 = scmp.lt.s32.totalorder %s162, 63
      %s164 = scalar_select %p163, %s162, 63
      %s165 = smul.addr %s164, 8
      %s166 = scalar_lea.vmem %s0, %s165
      %s167 = smul.u32 32, %s14
      %s168 = smul.u32 32, %s14
      %p169 = scmp.lt.s32.totalorder %s168, 63
      %s170 = scalar_select %p169, %s168, 63
      %s171 = smul.addr %s170, 8
      %s172 = scalar_lea.vmem %s3, %s171
      %s173 = smul.u32 32, %s14
      %v174 = vld [vmem:[%s166] sm:$0xff]
      %v175 = vld [vmem:[%s166 + $0x8] sm:$0xff]
      %v176 = vld [vmem:[%s166 + $0x10] sm:$0xff]
      %v177 = vld [vmem:[%s166 + $0x18] sm:$0xff]
      %v178 = vld [vmem:[%s166 + $0x20] sm:$0xff]
      %v179 = vld [vmem:[%s166 + $0x28] sm:$0xff]
      %v180 = vld [vmem:[%s166 + $0x30] sm:$0xff]
      %v181 = vld [vmem:[%s166 + $0x38] sm:$0xff]
      %v182 = vld [vmem:[%s166 + $0x40] sm:$0xff]
      %v183 = vld [vmem:[%s166 + $0x48] sm:$0xff]
      %v184 = vld [vmem:[%s166 + $0x50] sm:$0xff]
      %v185 = vld [vmem:[%s166 + $0x58] sm:$0xff]
      %v186 = vld [vmem:[%s166 + $0x60] sm:$0xff]
      %v187 = vld [vmem:[%s166 + $0x68] sm:$0xff]
      %v188 = vld [vmem:[%s166 + $0x70] sm:$0xff]
      %v189 = vld [vmem:[%s166 + $0x78] sm:$0xff]
      %v190 = vld [vmem:[%s166 + $0x80] sm:$0xff]
      %v191 = vld [vmem:[%s166 + $0x88] sm:$0xff]
      %v192 = vld [vmem:[%s166 + $0x90] sm:$0xff]
      %v193 = vld [vmem:[%s166 + $0x98] sm:$0xff]
      %v194 = vld [vmem:[%s166 + $0xa0] sm:$0xff]
      %v195 = vld [vmem:[%s166 + $0xa8] sm:$0xff]
      %v196 = vld [vmem:[%s166 + $0xb0] sm:$0xff]
      %v197 = vld [vmem:[%s166 + $0xb8] sm:$0xff]
      %v198 = vld [vmem:[%s166 + $0xc0] sm:$0xff]
      %v199 = vld [vmem:[%s166 + $0xc8] sm:$0xff]
      %v200 = vld [vmem:[%s166 + $0xd0] sm:$0xff]
      %v201 = vld [vmem:[%s166 + $0xd8] sm:$0xff]
      %v202 = vld [vmem:[%s166 + $0xe0] sm:$0xff]
      %v203 = vld [vmem:[%s166 + $0xe8] sm:$0xff]
      %v204 = vld [vmem:[%s166 + $0xf0] sm:$0xff]
      %v205 = vld [vmem:[%s166 + $0xf8] sm:$0xff]
      %v206 = vld [vmem:[%s1] sm:$0x1]
      %v208 = vperm.slane %v206, 0
      %v210 = vmul.f32 %v174, %v208
      %v211 = vmul.f32 %v175, %v208
      %v212 = vmul.f32 %v176, %v208
      %v213 = vmul.f32 %v177, %v208
      %v214 = vmul.f32 %v178, %v208
      %v215 = vmul.f32 %v179, %v208
      %v216 = vmul.f32 %v180, %v208
      %v217 = vmul.f32 %v181, %v208
      %v218 = vmul.f32 %v182, %v208
      %v219 = vmul.f32 %v183, %v208
      %v220 = vmul.f32 %v184, %v208
      %v221 = vmul.f32 %v185, %v208
      %v222 = vmul.f32 %v186, %v208
      %v223 = vmul.f32 %v187, %v208
      %v224 = vmul.f32 %v188, %v208
      %v225 = vmul.f32 %v189, %v208
      %v226 = vmul.f32 %v190, %v208
      %v227 = vmul.f32 %v191, %v208
      %v228 = vmul.f32 %v192, %v208
      %v229 = vmul.f32 %v193, %v208
      %v230 = vmul.f32 %v194, %v208
      %v231 = vmul.f32 %v195, %v208
      %v232 = vmul.f32 %v196, %v208
      %v233 = vmul.f32 %v197, %v208
      %v234 = vmul.f32 %v198, %v208
      %v235 = vmul.f32 %v199, %v208
      %v236 = vmul.f32 %v200, %v208
      %v237 = vmul.f32 %v201, %v208
      %v238 = vmul.f32 %v202, %v208
      %v239 = vmul.f32 %v203, %v208
      %v240 = vmul.f32 %v204, %v208
      %v241 = vmul.f32 %v205, %v208
      %v242 = vld [vmem:[%s2] sm:$0x1]
      %v244 = vperm.slane %v242, 0
      %v246 = vadd.f32 %v210, %v244
      %v247 = vadd.f32 %v211, %v244
      %v248 = vadd.f32 %v212, %v244
      %v249 = vadd.f32 %v213, %v244
      %v250 = vadd.f32 %v214, %v244
      %v251 = vadd.f32 %v215, %v244
      %v252 = vadd.f32 %v216, %v244
      %v253 = vadd.f32 %v217, %v244
      %v254 = vadd.f32 %v218, %v244
      %v255 = vadd.f32 %v219, %v244
      %v256 = vadd.f32 %v220, %v244
      %v257 = vadd.f32 %v221, %v244
      %v258 = vadd.f32 %v222, %v244
      %v259 = vadd.f32 %v223, %v244
      %v260 = vadd.f32 %v224, %v244
      %v261 = vadd.f32 %v225, %v244
      %v262 = vadd.f32 %v226, %v244
      %v263 = vadd.f32 %v227, %v244
      %v264 = vadd.f32 %v228, %v244
      %v265 = vadd.f32 %v229, %v244
      %v266 = vadd.f32 %v230, %v244
      %v267 = vadd.f32 %v231, %v244
      %v268 = vadd.f32 %v232, %v244
      %v269 = vadd.f32 %v233, %v244
      %v270 = vadd.f32 %v234, %v244
      %v271 = vadd.f32 %v235, %v244
      %v272 = vadd.f32 %v236, %v244
      %v273 = vadd.f32 %v237, %v244
      %v274 = vadd.f32 %v238, %v244
      %v275 = vadd.f32 %v239, %v244
      %v276 = vadd.f32 %v240, %v244
      %v277 = vadd.f32 %v241, %v244
      %v278 = vmax.f32 %v246, 0.0
      %v279 = vmax.f32 %v247, 0.0
      %v280 = vmax.f32 %v248, 0.0
      %v281 = vmax.f32 %v249, 0.0
      %v282 = vmax.f32 %v250, 0.0
      %v283 = vmax.f32 %v251, 0.0
      %v284 = vmax.f32 %v252, 0.0
      %v285 = vmax.f32 %v253, 0.0
      %v286 = vmax.f32 %v254, 0.0
      %v287 = vmax.f32 %v255, 0.0
      %v288 = vmax.f32 %v256, 0.0
      %v289 = vmax.f32 %v257, 0.0
      %v290 = vmax.f32 %v258, 0.0
      %v291 = vmax.f32 %v259, 0.0
      %v292 = vmax.f32 %v260, 0.0
      %v293 = vmax.f32 %v261, 0.0
      %v294 = vmax.f32 %v262, 0.0
      %v295 = vmax.f32 %v263, 0.0
      %v296 = vmax.f32 %v264, 0.0
      %v297 = vmax.f32 %v265, 0.0
      %v298 = vmax.f32 %v266, 0.0
      %v299 = vmax.f32 %v267, 0.0
      %v300 = vmax.f32 %v268, 0.0
      %v301 = vmax.f32 %v269, 0.0
      %v302 = vmax.f32 %v270, 0.0
      %v303 = vmax.f32 %v271, 0.0
      %v304 = vmax.f32 %v272, 0.0
      %v305 = vmax.f32 %v273, 0.0
      %v306 = vmax.f32 %v274, 0.0
      %v307 = vmax.f32 %v275, 0.0
      %v308 = vmax.f32 %v276, 0.0
      %v309 = vmax.f32 %v277, 0.0
      %310 = vst [vmem:[%s172] sm:$0xff] %v278
      %311 = vst [vmem:[%s172 + $0x8] sm:$0xff] %v279
      %312 = vst [vmem:[%s172 + $0x10] sm:$0xff] %v280
      %313 = vst [vmem:[%s172 + $0x18] sm:$0xff] %v281
      %314 = vst [vmem:[%s172 + $0x20] sm:$0xff] %v282
      %315 = vst [vmem:[%s172 + $0x28] sm:$0xff] %v283
      %316 = vst [vmem:[%s172 + $0x30] sm:$0xff] %v284
      %317 = vst [vmem:[%s172 + $0x38] sm:$0xff] %v285
      %318 = vst [vmem:[%s172 + $0x40] sm:$0xff] %v286
      %319 = vst [vmem:[%s172 + $0x48] sm:$0xff] %v287
      %320 = vst [vmem:[%s172 + $0x50] sm:$0xff] %v288
      %321 = vst [vmem:[%s172 + $0x58] sm:$0xff] %v289
      %322 = vst [vmem:[%s172 + $0x60] sm:$0xff] %v290
      %323 = vst [vmem:[%s172 + $0x68] sm:$0xff] %v291
      %324 = vst [vmem:[%s172 + $0x70] sm:$0xff] %v292
      %325 = vst [vmem:[%s172 + $0x78] sm:$0xff] %v293
      %326 = vst [vmem:[%s172 + $0x80] sm:$0xff] %v294
      %327 = vst [vmem:[%s172 + $0x88] sm:$0xff] %v295
      %328 = vst [vmem:[%s172 + $0x90] sm:$0xff] %v296
      %329 = vst [vmem:[%s172 + $0x98] sm:$0xff] %v297
      %330 = vst [vmem:[%s172 + $0xa0] sm:$0xff] %v298
      %331 = vst [vmem:[%s172 + $0xa8] sm:$0xff] %v299
      %332 = vst [vmem:[%s172 + $0xb0] sm:$0xff] %v300
      %333 = vst [vmem:[%s172 + $0xb8] sm:$0xff] %v301
      %334 = vst [vmem:[%s172 + $0xc0] sm:$0xff] %v302
      %335 = vst [vmem:[%s172 + $0xc8] sm:$0xff] %v303
      %336 = vst [vmem:[%s172 + $0xd0] sm:$0xff] %v304
      %337 = vst [vmem:[%s172 + $0xd8] sm:$0xff] %v305
      %338 = vst [vmem:[%s172 + $0xe0] sm:$0xff] %v306
      %339 = vst [vmem:[%s172 + $0xe8] sm:$0xff] %v307
      %340 = vst [vmem:[%s172 + $0xf0] sm:$0xff] %v308
      %341 = vst [vmem:[%s172 + $0xf8] sm:$0xff] %v309
      %s342 = smul.u32 32, %s14
      %p343 = scmp.lt.s32.totalorder %s342, 63
      %s344 = scalar_select %p343, %s342, 63
      %s345 = smul.addr %s344, 8
      %s346 = scalar_lea.vmem %s3, %s345
      // Predicated region
      $region33: #{double_basic_block.9} parent=31 // pred_check
        %p347 = pneg %p100
      $region34: #{double_basic_block.9} parent=31 // pred_check_branch
        %349 = sbr.rel (%p347) target = $region36
      $region35: #{double_basic_block.9} parent=31 // pred_region
        %s350 = smul.u32 32, %s14
      $region36: #{double_basic_block.9} parent=31 // pred_fallthru
        _
    $region32: #{double_basic_block.9} parent=5 // pred_fallthru
      _
    %p351 = scmp.le.s32.totalorder 2, %s9
    // Predicated region
    $region37: #{double_basic_block.9} parent=5 // pred_check
      %p352 = pneg %p351
    $region38: #{double_basic_block.9} parent=5 // pred_check_branch
      %354 = sbr.rel (%p352) target = $region40
    $region39: #{double_basic_block.9} parent=5 // pred_region
      %s355 = ssub.s32 %s9, 2
      // Predicated region
      $region41: #{double_basic_block.9} parent=39 // pred_check
        %p356 = pneg %p106
      $region42: #{double_basic_block.9} parent=39 // pred_check_branch
        %358 = sbr.rel (%p356) target = $region44
      $region43: #{double_basic_block.9} parent=39 // pred_region
        %s359 = smul.u32 32, %s15
        %p360 = scmp.lt.s32.totalorder %s359, 63
        %s361 = scalar_select %p360, %s359, 63
        %s362 = smul.addr %s361, 8
        %s363 = scalar_lea.vmem %s3, %s362
      $region44: #{double_basic_block.9} parent=39 // pred_fallthru
        _
    $region40: #{double_basic_block.9} parent=5 // pred_fallthru
      _
  $region6: #{double_basic_block.9} parent=0 // loop_footer
    %s13 = sadd.s32 1, %s9
  $region7: #{double_basic_block.9} parent=0 // loop_footer_branch
    %8 = sbr.rel target = $region3
  $region8: #{double_basic_block.9} parent=0 // loop_exit
    _

// kernel: double_basic_block.15
$region0: #{double_basic_block.15}
  #allocation0 [shape = 'u32[]', space=smem, size = 0x4, offset = 0x4, fixed_abs, tag = 'smem constant byte address 0x4 - core index']
  #allocation1 [shape = 'u32[72,128]{1,0:T(1,128)}', space=vmem, size = 0x9000, scoped, tag = 'internal scratch']
  %s0 = inlined_call_operand.vmem [shape: f32[512,128], index: 0, kind: input, shape index: {}]
  %s1 = inlined_call_operand.vmem [shape: f32[1,128], index: 1, kind: input, shape index: {}]
  %s2 = inlined_call_operand.vmem [shape: f32[1,128], index: 2, kind: input, shape index: {}]
  %s3 = inlined_call_operand.vmem [shape: f32[512,128], index: 3, kind: input, shape index: {}]
  %s4 = inlined_call_operand.vmem [shape: f32[512,128], index: 4, kind: output, shape index: {}]
  %s5 = sld [smem:[#allocation0]]
  $region49: #{double_basic_block.15} parent=0
    _
  %s7 = ssub.s32 1, %s5
  %s8 = scalar_select 0, %s7, %s5
  loop: start=0, step=1, limit=4
  $region2: #{double_basic_block.15} parent=0 // loop_pre_header
    _
  $region3: #{double_basic_block.15} parent=0 // loop_header
    %s10 = sphi 0, %s14
    %p11 = scmp.ge.s32.totalorder %s10, 4
    %s20 = sphi 0, %s22
    %s23 = sphi 0, %s20
    %s24 = sphi 0, %s23
    %s40 = sphi 0, %s24
    %s44 = sphi 0, %s44
    %s46 = sphi 0, %s44
    %s47 = sphi 0, %s46
    %s61 = sphi 0, %s47
    %s65 = sphi 0, %s65
    %s67 = sphi 0, %s65
    %s68 = sphi 0, %s67
    %s82 = sphi 0, %s68
    %s88 = sphi 0, %s90
    %s91 = sphi 0, %s88
    %s92 = sphi 0, %s91
    %s108 = sphi 0, %s92
    %s114 = sphi 0, %s116
    %s117 = sphi 0, %s114
    %s118 = sphi 0, %s117
    %s134 = sphi 0, %s118
  $region4: #{double_basic_block.15} parent=0 // loop_header_branch
    %13 = sbr.rel (%p11) target = $region8
  $region5: #{double_basic_block.15} parent=0 // loop_body
    %s15 = ssub.s32 %s10, 1
    %s16 = ssub.s32 %s10, 2
    %s17 = sadd.s32 %s10, 1
    %s18 = ssub.s32 %s10, %s17
    %p19 = scmp.eq.s32.totalorder %s18, 0
    %s21 = sadd.s32 %s20, 1
    %s22 = scalar_select %p19, %s20, %s21
    %p25 = pneg %p19
    %p26 = scmp.eq.s32.totalorder %s10, 1
    %p27 = por %p25, %p26
    %p28 = scmp.ne.s32.totalorder %s20, %s23
    %p29 = scmp.eq.s32.totalorder %s10, 0
    %p30 = por %p28, %p29
    %p31 = scmp.ne.s32.totalorder %s20, %s23
    %p32 = scmp.eq.s32.totalorder %s15, 1
    %p33 = por %p31, %p32
    %p34 = scmp.ne.s32.totalorder %s23, %s24
    %p35 = scmp.eq.s32.totalorder %s15, 0
    %p36 = por %p34, %p35
    %p37 = scmp.ne.s32.totalorder %s23, %s24
    %p38 = scmp.eq.s32.totalorder %s16, 1
    %p39 = por %p37, %p38
    %p41 = scmp.ne.s32.totalorder %s24, %s40
    %p42 = scmp.eq.s32.totalorder %s16, 0
    %p43 = por %p41, %p42
    %s45 = sadd.s32 %s44, 1
    %p48 = scmp.eq.s32.totalorder %s10, 1
    %p49 = scmp.ne.s32.totalorder %s44, %s46
    %p50 = scmp.eq.s32.totalorder %s10, 0
    %p51 = por %p49, %p50
    %p52 = scmp.ne.s32.totalorder %s44, %s46
    %p53 = scmp.eq.s32.totalorder %s15, 1
    %p54 = por %p52, %p53
    %p55 = scmp.ne.s32.totalorder %s46, %s47
    %p56 = scmp.eq.s32.totalorder %s15, 0
    %p57 = por %p55, %p56
    %p58 = scmp.ne.s32.totalorder %s46, %s47
    %p59 = scmp.eq.s32.totalorder %s16, 1
    %p60 = por %p58, %p59
    %p62 = scmp.ne.s32.totalorder %s47, %s61
    %p63 = scmp.eq.s32.totalorder %s16, 0
    %p64 = por %p62, %p63
    %s66 = sadd.s32 %s65, 1
    %p69 = scmp.eq.s32.totalorder %s10, 1
    %p70 = scmp.ne.s32.totalorder %s65, %s67
    %p71 = scmp.eq.s32.totalorder %s10, 0
    %p72 = por %p70, %p71
    %p73 = scmp.ne.s32.totalorder %s65, %s67
    %p74 = scmp.eq.s32.totalorder %s15, 1
    %p75 = por %p73, %p74
    %p76 = scmp.ne.s32.totalorder %s67, %s68
    %p77 = scmp.eq.s32.totalorder %s15, 0
    %p78 = por %p76, %p77
    %p79 = scmp.ne.s32.totalorder %s67, %s68
    %p80 = scmp.eq.s32.totalorder %s16, 1
    %p81 = por %p79, %p80
    %p83 = scmp.ne.s32.totalorder %s68, %s82
    %p84 = scmp.eq.s32.totalorder %s16, 0
    %p85 = por %p83, %p84
    %s86 = ssub.s32 %s10, %s17
    %p87 = scmp.eq.s32.totalorder %s86, 0
    %s89 = sadd.s32 %s88, 1
    %s90 = scalar_select %p87, %s88, %s89
    %p93 = pneg %p87
    %p94 = scmp.eq.s32.totalorder %s10, 1
    %p95 = por %p93, %p94
    %p96 = scmp.ne.s32.totalorder %s88, %s91
    %p97 = scmp.eq.s32.totalorder %s10, 0
    %p98 = por %p96, %p97
    %p99 = scmp.ne.s32.totalorder %s88, %s91
    %p100 = scmp.eq.s32.totalorder %s15, 1
    %p101 = por %p99, %p100
    %p102 = scmp.ne.s32.totalorder %s91, %s92
    %p103 = scmp.eq.s32.totalorder %s15, 0
    %p104 = por %p102, %p103
    %p105 = scmp.ne.s32.totalorder %s91, %s92
    %p106 = scmp.eq.s32.totalorder %s16, 1
    %p107 = por %p105, %p106
    %p109 = scmp.ne.s32.totalorder %s92, %s108
    %p110 = scmp.eq.s32.totalorder %s16, 0
    %p111 = por %p109, %p110
    %s112 = ssub.s32 %s10, %s17
    %p113 = scmp.eq.s32.totalorder %s112, 0
    %s115 = sadd.s32 %s114, 1
    %s116 = scalar_select %p113, %s114, %s115
    %p119 = pneg %p113
    %p120 = scmp.eq.s32.totalorder %s10, 1
    %p121 = por %p119, %p120
    %p122 = scmp.ne.s32.totalorder %s114, %s117
    %p123 = scmp.eq.s32.totalorder %s10, 0
    %p124 = por %p122, %p123
    %p125 = scmp.ne.s32.totalorder %s114, %s117
    %p126 = scmp.eq.s32.totalorder %s15, 1
    %p127 = por %p125, %p126
    %p128 = scmp.ne.s32.totalorder %s117, %s118
    %p129 = scmp.eq.s32.totalorder %s15, 0
    %p130 = por %p128, %p129
    %p131 = scmp.ne.s32.totalorder %s117, %s118
    %p132 = scmp.eq.s32.totalorder %s16, 1
    %p133 = por %p131, %p132
    %p135 = scmp.ne.s32.totalorder %s118, %s134
    %p136 = scmp.eq.s32.totalorder %s16, 0
    %p137 = por %p135, %p136
    %p138 = scmp.le.s32.totalorder 1, %s10
    %p139 = scmp.lt.s32.totalorder %s10, 3
    %p140 = pnand %p138, %p139
    %p141 = pneg %p140
    // Predicated region
    $region9: #{double_basic_block.15} parent=5 // pred_check
      _
    $region10: #{double_basic_block.15} parent=5 // pred_check_branch
      %143 = sbr.rel (%p140) target = $region12
    $region11: #{double_basic_block.15} parent=5 // pred_region
      %s144 = ssub.s32 %s10, 1
      // Predicated region
      $region13: #{double_basic_block.15} parent=11 // pred_check
        %p145 = pneg %p57
      $region14: #{double_basic_block.15} parent=11 // pred_check_branch
        %147 = sbr.rel (%p145) target = $region16
      $region15: #{double_basic_block.15} parent=11 // pred_region
        _
      $region16: #{double_basic_block.15} parent=11 // pred_fallthru
        _
      // Predicated region
      $region17: #{double_basic_block.15} parent=11 // pred_check
        %p148 = pneg %p78
      $region18: #{double_basic_block.15} parent=11 // pred_check_branch
        %150 = sbr.rel (%p148) target = $region20
      $region19: #{double_basic_block.15} parent=11 // pred_region
        _
      $region20: #{double_basic_block.15} parent=11 // pred_fallthru
        _
    $region12: #{double_basic_block.15} parent=5 // pred_fallthru
      _
    %p151 = scmp.lt.s32.totalorder %s10, 2
    // Predicated region
    $region21: #{double_basic_block.15} parent=5 // pred_check
      %p152 = pneg %p151
    $region22: #{double_basic_block.15} parent=5 // pred_check_branch
      %154 = sbr.rel (%p152) target = $region24
    $region23: #{double_basic_block.15} parent=5 // pred_region
      // Predicated region
      $region25: #{double_basic_block.15} parent=23 // pred_check
        %p155 = pneg %p30
      $region26: #{double_basic_block.15} parent=23 // pred_check_branch
        %157 = sbr.rel (%p155) target = $region28
      $region27: #{double_basic_block.15} parent=23 // pred_region
        %s158 = smul.u32 32, %s10
        %p159 = scmp.lt.s32.totalorder %s158, 63
        %s160 = scalar_select %p159, %s158, 63
        %s161 = smul.addr %s160, 8
        %s162 = scalar_lea.vmem %s0, %s161
        %s163 = smul.u32 32, %s10
      $region28: #{double_basic_block.15} parent=23 // pred_fallthru
        _
      // Predicated region
      $region29: #{double_basic_block.15} parent=23 // pred_check
        %p164 = pneg %p98
      $region30: #{double_basic_block.15} parent=23 // pred_check_branch
        %166 = sbr.rel (%p164) target = $region32
      $region31: #{double_basic_block.15} parent=23 // pred_region
        %s167 = smul.u32 32, %s10
        %p168 = scmp.lt.s32.totalorder %s167, 63
        %s169 = scalar_select %p168, %s167, 63
        %s170 = smul.addr %s169, 8
        %s171 = scalar_lea.vmem %s3, %s170
        %s172 = smul.u32 32, %s10
      $region32: #{double_basic_block.15} parent=23 // pred_fallthru
        _
    $region24: #{double_basic_block.15} parent=5 // pred_fallthru
      _
    %p173 = scmp.le.s32.totalorder 1, %s10
    %p174 = scmp.lt.s32.totalorder %s10, 3
    %p175 = pnand %p173, %p174
    %p176 = pneg %p175
    // Predicated region
    $region33: #{double_basic_block.15} parent=5 // pred_check
      _
    $region34: #{double_basic_block.15} parent=5 // pred_check_branch
      %178 = sbr.rel (%p175) target = $region36
    $region35: #{double_basic_block.15} parent=5 // pred_region
      %s179 = ssub.s32 %s10, 1
      %s180 = smul.u32 32, %s15
      %p181 = scmp.lt.s32.totalorder %s180, 63
      %s182 = scalar_select %p181, %s180, 63
      %s183 = smul.addr %s182, 8
      %s184 = scalar_lea.vmem %s0, %s183
      %p185 = pneg %p36
      %p186 = pneg %p33
      %p187 = pneg %p57
      %p188 = pneg %p54
      %p189 = pneg %p78
      %p190 = pneg %p75
      %s191 = smul.u32 32, %s15
      %p192 = scmp.lt.s32.totalorder %s191, 63
      %s193 = scalar_select %p192, %s191, 63
      %s194 = smul.addr %s193, 8
      %s195 = scalar_lea.vmem %s3, %s194
      %p196 = pneg %p104
      %p197 = pneg %p101
      %p198 = pneg %p130
      %p199 = pneg %p127
      %s200 = smul.u32 32, %s15
      %p201 = scmp.lt.s32.totalorder %s200, 63
      %s202 = scalar_select %p201, %s200, 63
      %s203 = smul.addr %s202, 8
      %s204 = scalar_lea.vmem %s4, %s203
      %s205 = smul.u32 32, %s15
      %p206 = scmp.lt.s32.totalorder %s205, 63
      %s207 = scalar_select %p206, %s205, 63
      %s208 = smul.addr %s207, 8
      %s209 = scalar_lea.vmem %s0, %s208
      %s210 = smul.u32 32, %s15
      %s211 = smul.u32 32, %s15
      %p212 = scmp.lt.s32.totalorder %s211, 63
      %s213 = scalar_select %p212, %s211, 63
      %s214 = smul.addr %s213, 8
      %s215 = scalar_lea.vmem %s3, %s214
      %s216 = smul.u32 32, %s15
      %s217 = smul.u32 32, %s15
      %p218 = scmp.lt.s32.totalorder %s217, 63
      %s219 = scalar_select %p218, %s217, 63
      %s220 = smul.addr %s219, 8
      %s221 = scalar_lea.vmem %s4, %s220
      %s222 = smul.u32 32, %s15
      %v223 = vld [vmem:[%s209] sm:$0xff]
      %v224 = vld [vmem:[%s209 + $0x8] sm:$0xff]
      %v225 = vld [vmem:[%s209 + $0x10] sm:$0xff]
      %v226 = vld [vmem:[%s209 + $0x18] sm:$0xff]
      %v227 = vld [vmem:[%s209 + $0x20] sm:$0xff]
      %v228 = vld [vmem:[%s209 + $0x28] sm:$0xff]
      %v229 = vld [vmem:[%s209 + $0x30] sm:$0xff]
      %v230 = vld [vmem:[%s209 + $0x38] sm:$0xff]
      %v231 = vld [vmem:[%s209 + $0x40] sm:$0xff]
      %v232 = vld [vmem:[%s209 + $0x48] sm:$0xff]
      %v233 = vld [vmem:[%s209 + $0x50] sm:$0xff]
      %v234 = vld [vmem:[%s209 + $0x58] sm:$0xff]
      %v235 = vld [vmem:[%s209 + $0x60] sm:$0xff]
      %v236 = vld [vmem:[%s209 + $0x68] sm:$0xff]
      %v237 = vld [vmem:[%s209 + $0x70] sm:$0xff]
      %v238 = vld [vmem:[%s209 + $0x78] sm:$0xff]
      %v239 = vld [vmem:[%s209 + $0x80] sm:$0xff]
      %v240 = vld [vmem:[%s209 + $0x88] sm:$0xff]
      %v241 = vld [vmem:[%s209 + $0x90] sm:$0xff]
      %v242 = vld [vmem:[%s209 + $0x98] sm:$0xff]
      %v243 = vld [vmem:[%s209 + $0xa0] sm:$0xff]
      %v244 = vld [vmem:[%s209 + $0xa8] sm:$0xff]
      %v245 = vld [vmem:[%s209 + $0xb0] sm:$0xff]
      %v246 = vld [vmem:[%s209 + $0xb8] sm:$0xff]
      %v247 = vld [vmem:[%s209 + $0xc0] sm:$0xff]
      %v248 = vld [vmem:[%s209 + $0xc8] sm:$0xff]
      %v249 = vld [vmem:[%s209 + $0xd0] sm:$0xff]
      %v250 = vld [vmem:[%s209 + $0xd8] sm:$0xff]
      %v251 = vld [vmem:[%s209 + $0xe0] sm:$0xff]
      %v252 = vld [vmem:[%s209 + $0xe8] sm:$0xff]
      %v253 = vld [vmem:[%s209 + $0xf0] sm:$0xff]
      %v254 = vld [vmem:[%s209 + $0xf8] sm:$0xff]
      %v255 = vld [vmem:[%s1] sm:$0x1]
      %v257 = vperm.slane %v255, 0
      %v259 = vmul.f32 %v223, %v257
      %v260 = vmul.f32 %v224, %v257
      %v261 = vmul.f32 %v225, %v257
      %v262 = vmul.f32 %v226, %v257
      %v263 = vmul.f32 %v227, %v257
      %v264 = vmul.f32 %v228, %v257
      %v265 = vmul.f32 %v229, %v257
      %v266 = vmul.f32 %v230, %v257
      %v267 = vmul.f32 %v231, %v257
      %v268 = vmul.f32 %v232, %v257
      %v269 = vmul.f32 %v233, %v257
      %v270 = vmul.f32 %v234, %v257
      %v271 = vmul.f32 %v235, %v257
      %v272 = vmul.f32 %v236, %v257
      %v273 = vmul.f32 %v237, %v257
      %v274 = vmul.f32 %v238, %v257
      %v275 = vmul.f32 %v239, %v257
      %v276 = vmul.f32 %v240, %v257
      %v277 = vmul.f32 %v241, %v257
      %v278 = vmul.f32 %v242, %v257
      %v279 = vmul.f32 %v243, %v257
      %v280 = vmul.f32 %v244, %v257
      %v281 = vmul.f32 %v245, %v257
      %v282 = vmul.f32 %v246, %v257
      %v283 = vmul.f32 %v247, %v257
      %v284 = vmul.f32 %v248, %v257
      %v285 = vmul.f32 %v249, %v257
      %v286 = vmul.f32 %v250, %v257
      %v287 = vmul.f32 %v251, %v257
      %v288 = vmul.f32 %v252, %v257
      %v289 = vmul.f32 %v253, %v257
      %v290 = vmul.f32 %v254, %v257
      %v291 = vld [vmem:[%s2] sm:$0x1]
      %v293 = vperm.slane %v291, 0
      %v295 = vadd.f32 %v259, %v293
      %v296 = vadd.f32 %v260, %v293
      %v297 = vadd.f32 %v261, %v293
      %v298 = vadd.f32 %v262, %v293
      %v299 = vadd.f32 %v263, %v293
      %v300 = vadd.f32 %v264, %v293
      %v301 = vadd.f32 %v265, %v293
      %v302 = vadd.f32 %v266, %v293
      %v303 = vadd.f32 %v267, %v293
      %v304 = vadd.f32 %v268, %v293
      %v305 = vadd.f32 %v269, %v293
      %v306 = vadd.f32 %v270, %v293
      %v307 = vadd.f32 %v271, %v293
      %v308 = vadd.f32 %v272, %v293
      %v309 = vadd.f32 %v273, %v293
      %v310 = vadd.f32 %v274, %v293
      %v311 = vadd.f32 %v275, %v293
      %v312 = vadd.f32 %v276, %v293
      %v313 = vadd.f32 %v277, %v293
      %v314 = vadd.f32 %v278, %v293
      %v315 = vadd.f32 %v279, %v293
      %v316 = vadd.f32 %v280, %v293
      %v317 = vadd.f32 %v281, %v293
      %v318 = vadd.f32 %v282, %v293
      %v319 = vadd.f32 %v283, %v293
      %v320 = vadd.f32 %v284, %v293
      %v321 = vadd.f32 %v285, %v293
      %v322 = vadd.f32 %v286, %v293
      %v323 = vadd.f32 %v287, %v293
      %v324 = vadd.f32 %v288, %v293
      %v325 = vadd.f32 %v289, %v293
      %v326 = vadd.f32 %v290, %v293
      %v327 = vld [vmem:[%s215] sm:$0xff]
      %v328 = vld [vmem:[%s215 + $0x8] sm:$0xff]
      %v329 = vld [vmem:[%s215 + $0x10] sm:$0xff]
      %v330 = vld [vmem:[%s215 + $0x18] sm:$0xff]
      %v331 = vld [vmem:[%s215 + $0x20] sm:$0xff]
      %v332 = vld [vmem:[%s215 + $0x28] sm:$0xff]
      %v333 = vld [vmem:[%s215 + $0x30] sm:$0xff]
      %v334 = vld [vmem:[%s215 + $0x38] sm:$0xff]
      %v335 = vld [vmem:[%s215 + $0x40] sm:$0xff]
      %v336 = vld [vmem:[%s215 + $0x48] sm:$0xff]
      %v337 = vld [vmem:[%s215 + $0x50] sm:$0xff]
      %v338 = vld [vmem:[%s215 + $0x58] sm:$0xff]
      %v339 = vld [vmem:[%s215 + $0x60] sm:$0xff]
      %v340 = vld [vmem:[%s215 + $0x68] sm:$0xff]
      %v341 = vld [vmem:[%s215 + $0x70] sm:$0xff]
      %v342 = vld [vmem:[%s215 + $0x78] sm:$0xff]
      %v343 = vld [vmem:[%s215 + $0x80] sm:$0xff]
      %v344 = vld [vmem:[%s215 + $0x88] sm:$0xff]
      %v345 = vld [vmem:[%s215 + $0x90] sm:$0xff]
      %v346 = vld [vmem:[%s215 + $0x98] sm:$0xff]
      %v347 = vld [vmem:[%s215 + $0xa0] sm:$0xff]
      %v348 = vld [vmem:[%s215 + $0xa8] sm:$0xff]
      %v349 = vld [vmem:[%s215 + $0xb0] sm:$0xff]
      %v350 = vld [vmem:[%s215 + $0xb8] sm:$0xff]
      %v351 = vld [vmem:[%s215 + $0xc0] sm:$0xff]
      %v352 = vld [vmem:[%s215 + $0xc8] sm:$0xff]
      %v353 = vld [vmem:[%s215 + $0xd0] sm:$0xff]
      %v354 = vld [vmem:[%s215 + $0xd8] sm:$0xff]
      %v355 = vld [vmem:[%s215 + $0xe0] sm:$0xff]
      %v356 = vld [vmem:[%s215 + $0xe8] sm:$0xff]
      %v357 = vld [vmem:[%s215 + $0xf0] sm:$0xff]
      %v358 = vld [vmem:[%s215 + $0xf8] sm:$0xff]
      %v359 = vadd.f32 %v295, %v327
      %v360 = vadd.f32 %v296, %v328
      %v361 = vadd.f32 %v297, %v329
      %v362 = vadd.f32 %v298, %v330
      %v363 = vadd.f32 %v299, %v331
      %v364 = vadd.f32 %v300, %v332
      %v365 = vadd.f32 %v301, %v333
      %v366 = vadd.f32 %v302, %v334
      %v367 = vadd.f32 %v303, %v335
      %v368 = vadd.f32 %v304, %v336
      %v369 = vadd.f32 %v305, %v337
      %v370 = vadd.f32 %v306, %v338
      %v371 = vadd.f32 %v307, %v339
      %v372 = vadd.f32 %v308, %v340
      %v373 = vadd.f32 %v309, %v341
      %v374 = vadd.f32 %v310, %v342
      %v375 = vadd.f32 %v311, %v343
      %v376 = vadd.f32 %v312, %v344
      %v377 = vadd.f32 %v313, %v345
      %v378 = vadd.f32 %v314, %v346
      %v379 = vadd.f32 %v315, %v347
      %v380 = vadd.f32 %v316, %v348
      %v381 = vadd.f32 %v317, %v349
      %v382 = vadd.f32 %v318, %v350
      %v383 = vadd.f32 %v319, %v351
      %v384 = vadd.f32 %v320, %v352
      %v385 = vadd.f32 %v321, %v353
      %v386 = vadd.f32 %v322, %v354
      %v387 = vadd.f32 %v323, %v355
      %v388 = vadd.f32 %v324, %v356
      %v389 = vadd.f32 %v325, %v357
      %v390 = vadd.f32 %v326, %v358
      %391 = vst [vmem:[%s221] sm:$0xff] %v359
      %392 = vst [vmem:[%s221 + $0x8] sm:$0xff] %v360
      %393 = vst [vmem:[%s221 + $0x10] sm:$0xff] %v361
      %394 = vst [vmem:[%s221 + $0x18] sm:$0xff] %v362
      %395 = vst [vmem:[%s221 + $0x20] sm:$0xff] %v363
      %396 = vst [vmem:[%s221 + $0x28] sm:$0xff] %v364
      %397 = vst [vmem:[%s221 + $0x30] sm:$0xff] %v365
      %398 = vst [vmem:[%s221 + $0x38] sm:$0xff] %v366
      %399 = vst [vmem:[%s221 + $0x40] sm:$0xff] %v367
      %400 = vst [vmem:[%s221 + $0x48] sm:$0xff] %v368
      %401 = vst [vmem:[%s221 + $0x50] sm:$0xff] %v369
      %402 = vst [vmem:[%s221 + $0x58] sm:$0xff] %v370
      %403 = vst [vmem:[%s221 + $0x60] sm:$0xff] %v371
      %404 = vst [vmem:[%s221 + $0x68] sm:$0xff] %v372
      %405 = vst [vmem:[%s221 + $0x70] sm:$0xff] %v373
      %406 = vst [vmem:[%s221 + $0x78] sm:$0xff] %v374
      %407 = vst [vmem:[%s221 + $0x80] sm:$0xff] %v375
      %408 = vst [vmem:[%s221 + $0x88] sm:$0xff] %v376
      %409 = vst [vmem:[%s221 + $0x90] sm:$0xff] %v377
      %410 = vst [vmem:[%s221 + $0x98] sm:$0xff] %v378
      %411 = vst [vmem:[%s221 + $0xa0] sm:$0xff] %v379
      %412 = vst [vmem:[%s221 + $0xa8] sm:$0xff] %v380
      %413 = vst [vmem:[%s221 + $0xb0] sm:$0xff] %v381
      %414 = vst [vmem:[%s221 + $0xb8] sm:$0xff] %v382
      %415 = vst [vmem:[%s221 + $0xc0] sm:$0xff] %v383
      %416 = vst [vmem:[%s221 + $0xc8] sm:$0xff] %v384
      %417 = vst [vmem:[%s221 + $0xd0] sm:$0xff] %v385
      %418 = vst [vmem:[%s221 + $0xd8] sm:$0xff] %v386
      %419 = vst [vmem:[%s221 + $0xe0] sm:$0xff] %v387
      %420 = vst [vmem:[%s221 + $0xe8] sm:$0xff] %v388
      %421 = vst [vmem:[%s221 + $0xf0] sm:$0xff] %v389
      %422 = vst [vmem:[%s221 + $0xf8] sm:$0xff] %v390
      %s423 = smul.u32 32, %s15
      %p424 = scmp.lt.s32.totalorder %s423, 63
      %s425 = scalar_select %p424, %s423, 63
      %s426 = smul.addr %s425, 8
      %s427 = scalar_lea.vmem %s4, %s426
      // Predicated region
      $region37: #{double_basic_block.15} parent=35 // pred_check
        %p428 = pneg %p127
      $region38: #{double_basic_block.15} parent=35 // pred_check_branch
        %430 = sbr.rel (%p428) target = $region40
      $region39: #{double_basic_block.15} parent=35 // pred_region
        %s431 = smul.u32 32, %s15
      $region40: #{double_basic_block.15} parent=35 // pred_fallthru
        _
    $region36: #{double_basic_block.15} parent=5 // pred_fallthru
      _
    %p432 = scmp.le.s32.totalorder 2, %s10
    // Predicated region
    $region41: #{double_basic_block.15} parent=5 // pred_check
      %p433 = pneg %p432
    $region42: #{double_basic_block.15} parent=5 // pred_check_branch
      %435 = sbr.rel (%p433) target = $region44
    $region43: #{double_basic_block.15} parent=5 // pred_region
      %s436 = ssub.s32 %s10, 2
      // Predicated region
      $region45: #{double_basic_block.15} parent=43 // pred_check
        %p437 = pneg %p133
      $region46: #{double_basic_block.15} parent=43 // pred_check_branch
        %439 = sbr.rel (%p437) target = $region48
      $region47: #{double_basic_block.15} parent=43 // pred_region
        %s440 = smul.u32 32, %s16
        %p441 = scmp.lt.s32.totalorder %s440, 63
        %s442 = scalar_select %p441, %s440, 63
        %s443 = smul.addr %s442, 8
        %s444 = scalar_lea.vmem %s4, %s443
      $region48: #{double_basic_block.15} parent=43 // pred_fallthru
        _
    $region44: #{double_basic_block.15} parent=5 // pred_fallthru
      _
  $region6: #{double_basic_block.15} parent=0 // loop_footer
    %s14 = sadd.s32 1, %s10
  $region7: #{double_basic_block.15} parent=0 // loop_footer_branch
    %9 = sbr.rel target = $region3
  $region8: #{double_basic_block.15} parent=0 // loop_exit
    _

// kernel: double_basic_block.11
$region0: #{double_basic_block.11}
  #allocation0 [shape = 'u32[]', space=smem, size = 0x4, offset = 0x4, fixed_abs, tag = 'smem constant byte address 0x4 - core index']
  #allocation1 [shape = 'u32[72,128]{1,0:T(1,128)}', space=vmem, size = 0x9000, scoped, tag = 'internal scratch']
  %s0 = inlined_call_operand.vmem [shape: f32[512,128], index: 0, kind: input, shape index: {}]
  %s1 = inlined_call_operand.vmem [shape: f32[1,128], index: 1, kind: input, shape index: {}]
  %s2 = inlined_call_operand.vmem [shape: f32[1,128], index: 2, kind: input, shape index: {}]
  %s3 = inlined_call_operand.vmem [shape: f32[512,128], index: 3, kind: input, shape index: {}]
  %s4 = inlined_call_operand.vmem [shape: f32[512,128], index: 4, kind: output, shape index: {}]
  %s5 = sld [smem:[#allocation0]]
  $region49: #{double_basic_block.11} parent=0
    _
  %s7 = ssub.s32 1, %s5
  %s8 = scalar_select 0, %s7, %s5
  loop: start=0, step=1, limit=4
  $region2: #{double_basic_block.11} parent=0 // loop_pre_header
    _
  $region3: #{double_basic_block.11} parent=0 // loop_header
    %s10 = sphi 0, %s14
    %p11 = scmp.ge.s32.totalorder %s10, 4
    %s20 = sphi 0, %s22
    %s23 = sphi 0, %s20
    %s24 = sphi 0, %s23
    %s40 = sphi 0, %s24
    %s44 = sphi 0, %s44
    %s46 = sphi 0, %s44
    %s47 = sphi 0, %s46
    %s61 = sphi 0, %s47
    %s65 = sphi 0, %s65
    %s67 = sphi 0, %s65
    %s68 = sphi 0, %s67
    %s82 = sphi 0, %s68
    %s88 = sphi 0, %s90
    %s91 = sphi 0, %s88
    %s92 = sphi 0, %s91
    %s108 = sphi 0, %s92
    %s114 = sphi 0, %s116
    %s117 = sphi 0, %s114
    %s118 = sphi 0, %s117
    %s134 = sphi 0, %s118
  $region4: #{double_basic_block.11} parent=0 // loop_header_branch
    %13 = sbr.rel (%p11) target = $region8
  $region5: #{double_basic_block.11} parent=0 // loop_body
    %s15 = ssub.s32 %s10, 1
    %s16 = ssub.s32 %s10, 2
    %s17 = sadd.s32 %s10, 1
    %s18 = ssub.s32 %s10, %s17
    %p19 = scmp.eq.s32.totalorder %s18, 0
    %s21 = sadd.s32 %s20, 1
    %s22 = scalar_select %p19, %s20, %s21
    %p25 = pneg %p19
    %p26 = scmp.eq.s32.totalorder %s10, 1
    %p27 = por %p25, %p26
    %p28 = scmp.ne.s32.totalorder %s20, %s23
    %p29 = scmp.eq.s32.totalorder %s10, 0
    %p30 = por %p28, %p29
    %p31 = scmp.ne.s32.totalorder %s20, %s23
    %p32 = scmp.eq.s32.totalorder %s15, 1
    %p33 = por %p31, %p32
    %p34 = scmp.ne.s32.totalorder %s23, %s24
    %p35 = scmp.eq.s32.totalorder %s15, 0
    %p36 = por %p34, %p35
    %p37 = scmp.ne.s32.totalorder %s23, %s24
    %p38 = scmp.eq.s32.totalorder %s16, 1
    %p39 = por %p37, %p38
    %p41 = scmp.ne.s32.totalorder %s24, %s40
    %p42 = scmp.eq.s32.totalorder %s16, 0
    %p43 = por %p41, %p42
    %s45 = sadd.s32 %s44, 1
    %p48 = scmp.eq.s32.totalorder %s10, 1
    %p49 = scmp.ne.s32.totalorder %s44, %s46
    %p50 = scmp.eq.s32.totalorder %s10, 0
    %p51 = por %p49, %p50
    %p52 = scmp.ne.s32.totalorder %s44, %s46
    %p53 = scmp.eq.s32.totalorder %s15, 1
    %p54 = por %p52, %p53
    %p55 = scmp.ne.s32.totalorder %s46, %s47
    %p56 = scmp.eq.s32.totalorder %s15, 0
    %p57 = por %p55, %p56
    %p58 = scmp.ne.s32.totalorder %s46, %s47
    %p59 = scmp.eq.s32.totalorder %s16, 1
    %p60 = por %p58, %p59
    %p62 = scmp.ne.s32.totalorder %s47, %s61
    %p63 = scmp.eq.s32.totalorder %s16, 0
    %p64 = por %p62, %p63
    %s66 = sadd.s32 %s65, 1
    %p69 = scmp.eq.s32.totalorder %s10, 1
    %p70 = scmp.ne.s32.totalorder %s65, %s67
    %p71 = scmp.eq.s32.totalorder %s10, 0
    %p72 = por %p70, %p71
    %p73 = scmp.ne.s32.totalorder %s65, %s67
    %p74 = scmp.eq.s32.totalorder %s15, 1
    %p75 = por %p73, %p74
    %p76 = scmp.ne.s32.totalorder %s67, %s68
    %p77 = scmp.eq.s32.totalorder %s15, 0
    %p78 = por %p76, %p77
    %p79 = scmp.ne.s32.totalorder %s67, %s68
    %p80 = scmp.eq.s32.totalorder %s16, 1
    %p81 = por %p79, %p80
    %p83 = scmp.ne.s32.totalorder %s68, %s82
    %p84 = scmp.eq.s32.totalorder %s16, 0
    %p85 = por %p83, %p84
    %s86 = ssub.s32 %s10, %s17
    %p87 = scmp.eq.s32.totalorder %s86, 0
    %s89 = sadd.s32 %s88, 1
    %s90 = scalar_select %p87, %s88, %s89
    %p93 = pneg %p87
    %p94 = scmp.eq.s32.totalorder %s10, 1
    %p95 = por %p93, %p94
    %p96 = scmp.ne.s32.totalorder %s88, %s91
    %p97 = scmp.eq.s32.totalorder %s10, 0
    %p98 = por %p96, %p97
    %p99 = scmp.ne.s32.totalorder %s88, %s91
    %p100 = scmp.eq.s32.totalorder %s15, 1
    %p101 = por %p99, %p100
    %p102 = scmp.ne.s32.totalorder %s91, %s92
    %p103 = scmp.eq.s32.totalorder %s15, 0
    %p104 = por %p102, %p103
    %p105 = scmp.ne.s32.totalorder %s91, %s92
    %p106 = scmp.eq.s32.totalorder %s16, 1
    %p107 = por %p105, %p106
    %p109 = scmp.ne.s32.totalorder %s92, %s108
    %p110 = scmp.eq.s32.totalorder %s16, 0
    %p111 = por %p109, %p110
    %s112 = ssub.s32 %s10, %s17
    %p113 = scmp.eq.s32.totalorder %s112, 0
    %s115 = sadd.s32 %s114, 1
    %s116 = scalar_select %p113, %s114, %s115
    %p119 = pneg %p113
    %p120 = scmp.eq.s32.totalorder %s10, 1
    %p121 = por %p119, %p120
    %p122 = scmp.ne.s32.totalorder %s114, %s117
    %p123 = scmp.eq.s32.totalorder %s10, 0
    %p124 = por %p122, %p123
    %p125 = scmp.ne.s32.totalorder %s114, %s117
    %p126 = scmp.eq.s32.totalorder %s15, 1
    %p127 = por %p125, %p126
    %p128 = scmp.ne.s32.totalorder %s117, %s118
    %p129 = scmp.eq.s32.totalorder %s15, 0
    %p130 = por %p128, %p129
    %p131 = scmp.ne.s32.totalorder %s117, %s118
    %p132 = scmp.eq.s32.totalorder %s16, 1
    %p133 = por %p131, %p132
    %p135 = scmp.ne.s32.totalorder %s118, %s134
    %p136 = scmp.eq.s32.totalorder %s16, 0
    %p137 = por %p135, %p136
    %p138 = scmp.le.s32.totalorder 1, %s10
    %p139 = scmp.lt.s32.totalorder %s10, 3
    %p140 = pnand %p138, %p139
    %p141 = pneg %p140
    // Predicated region
    $region9: #{double_basic_block.11} parent=5 // pred_check
      _
    $region10: #{double_basic_block.11} parent=5 // pred_check_branch
      %143 = sbr.rel (%p140) target = $region12
    $region11: #{double_basic_block.11} parent=5 // pred_region
      %s144 = ssub.s32 %s10, 1
      // Predicated region
      $region13: #{double_basic_block.11} parent=11 // pred_check
        %p145 = pneg %p57
      $region14: #{double_basic_block.11} parent=11 // pred_check_branch
        %147 = sbr.rel (%p145) target = $region16
      $region15: #{double_basic_block.11} parent=11 // pred_region
        _
      $region16: #{double_basic_block.11} parent=11 // pred_fallthru
        _
      // Predicated region
      $region17: #{double_basic_block.11} parent=11 // pred_check
        %p148 = pneg %p78
      $region18: #{double_basic_block.11} parent=11 // pred_check_branch
        %150 = sbr.rel (%p148) target = $region20
      $region19: #{double_basic_block.11} parent=11 // pred_region
        _
      $region20: #{double_basic_block.11} parent=11 // pred_fallthru
        _
    $region12: #{double_basic_block.11} parent=5 // pred_fallthru
      _
    %p151 = scmp.lt.s32.totalorder %s10, 2
    // Predicated region
    $region21: #{double_basic_block.11} parent=5 // pred_check
      %p152 = pneg %p151
    $region22: #{double_basic_block.11} parent=5 // pred_check_branch
      %154 = sbr.rel (%p152) target = $region24
    $region23: #{double_basic_block.11} parent=5 // pred_region
      // Predicated region
      $region25: #{double_basic_block.11} parent=23 // pred_check
        %p155 = pneg %p30
      $region26: #{double_basic_block.11} parent=23 // pred_check_branch
        %157 = sbr.rel (%p155) target = $region28
      $region27: #{double_basic_block.11} parent=23 // pred_region
        %s158 = smul.u32 32, %s10
        %p159 = scmp.lt.s32.totalorder %s158, 63
        %s160 = scalar_select %p159, %s158, 63
        %s161 = smul.addr %s160, 8
        %s162 = scalar_lea.vmem %s0, %s161
        %s163 = smul.u32 32, %s10
      $region28: #{double_basic_block.11} parent=23 // pred_fallthru
        _
      // Predicated region
      $region29: #{double_basic_block.11} parent=23 // pred_check
        %p164 = pneg %p98
      $region30: #{double_basic_block.11} parent=23 // pred_check_branch
        %166 = sbr.rel (%p164) target = $region32
      $region31: #{double_basic_block.11} parent=23 // pred_region
        %s167 = smul.u32 32, %s10
        %p168 = scmp.lt.s32.totalorder %s167, 63
        %s169 = scalar_select %p168, %s167, 63
        %s170 = smul.addr %s169, 8
        %s171 = scalar_lea.vmem %s3, %s170
        %s172 = smul.u32 32, %s10
      $region32: #{double_basic_block.11} parent=23 // pred_fallthru
        _
    $region24: #{double_basic_block.11} parent=5 // pred_fallthru
      _
    %p173 = scmp.le.s32.totalorder 1, %s10
    %p174 = scmp.lt.s32.totalorder %s10, 3
    %p175 = pnand %p173, %p174
    %p176 = pneg %p175
    // Predicated region
    $region33: #{double_basic_block.11} parent=5 // pred_check
      _
    $region34: #{double_basic_block.11} parent=5 // pred_check_branch
      %178 = sbr.rel (%p175) target = $region36
    $region35: #{double_basic_block.11} parent=5 // pred_region
      %s179 = ssub.s32 %s10, 1
      %s180 = smul.u32 32, %s15
      %p181 = scmp.lt.s32.totalorder %s180, 63
      %s182 = scalar_select %p181, %s180, 63
      %s183 = smul.addr %s182, 8
      %s184 = scalar_lea.vmem %s0, %s183
      %p185 = pneg %p36
      %p186 = pneg %p33
      %p187 = pneg %p57
      %p188 = pneg %p54
      %p189 = pneg %p78
      %p190 = pneg %p75
      %s191 = smul.u32 32, %s15
      %p192 = scmp.lt.s32.totalorder %s191, 63
      %s193 = scalar_select %p192, %s191, 63
      %s194 = smul.addr %s193, 8
      %s195 = scalar_lea.vmem %s3, %s194
      %p196 = pneg %p104
      %p197 = pneg %p101
      %p198 = pneg %p130
      %p199 = pneg %p127
      %s200 = smul.u32 32, %s15
      %p201 = scmp.lt.s32.totalorder %s200, 63
      %s202 = scalar_select %p201, %s200, 63
      %s203 = smul.addr %s202, 8
      %s204 = scalar_lea.vmem %s4, %s203
      %s205 = smul.u32 32, %s15
      %p206 = scmp.lt.s32.totalorder %s205, 63
      %s207 = scalar_select %p206, %s205, 63
      %s208 = smul.addr %s207, 8
      %s209 = scalar_lea.vmem %s0, %s208
      %s210 = smul.u32 32, %s15
      %s211 = smul.u32 32, %s15
      %p212 = scmp.lt.s32.totalorder %s211, 63
      %s213 = scalar_select %p212, %s211, 63
      %s214 = smul.addr %s213, 8
      %s215 = scalar_lea.vmem %s3, %s214
      %s216 = smul.u32 32, %s15
      %s217 = smul.u32 32, %s15
      %p218 = scmp.lt.s32.totalorder %s217, 63
      %s219 = scalar_select %p218, %s217, 63
      %s220 = smul.addr %s219, 8
      %s221 = scalar_lea.vmem %s4, %s220
      %s222 = smul.u32 32, %s15
      %v223 = vld [vmem:[%s209] sm:$0xff]
      %v224 = vld [vmem:[%s209 + $0x8] sm:$0xff]
      %v225 = vld [vmem:[%s209 + $0x10] sm:$0xff]
      %v226 = vld [vmem:[%s209 + $0x18] sm:$0xff]
      %v227 = vld [vmem:[%s209 + $0x20] sm:$0xff]
      %v228 = vld [vmem:[%s209 + $0x28] sm:$0xff]
      %v229 = vld [vmem:[%s209 + $0x30] sm:$0xff]
      %v230 = vld [vmem:[%s209 + $0x38] sm:$0xff]
      %v231 = vld [vmem:[%s209 + $0x40] sm:$0xff]
      %v232 = vld [vmem:[%s209 + $0x48] sm:$0xff]
      %v233 = vld [vmem:[%s209 + $0x50] sm:$0xff]
      %v234 = vld [vmem:[%s209 + $0x58] sm:$0xff]
      %v235 = vld [vmem:[%s209 + $0x60] sm:$0xff]
      %v236 = vld [vmem:[%s209 + $0x68] sm:$0xff]
      %v237 = vld [vmem:[%s209 + $0x70] sm:$0xff]
      %v238 = vld [vmem:[%s209 + $0x78] sm:$0xff]
      %v239 = vld [vmem:[%s209 + $0x80] sm:$0xff]
      %v240 = vld [vmem:[%s209 + $0x88] sm:$0xff]
      %v241 = vld [vmem:[%s209 + $0x90] sm:$0xff]
      %v242 = vld [vmem:[%s209 + $0x98] sm:$0xff]
      %v243 = vld [vmem:[%s209 + $0xa0] sm:$0xff]
      %v244 = vld [vmem:[%s209 + $0xa8] sm:$0xff]
      %v245 = vld [vmem:[%s209 + $0xb0] sm:$0xff]
      %v246 = vld [vmem:[%s209 + $0xb8] sm:$0xff]
      %v247 = vld [vmem:[%s209 + $0xc0] sm:$0xff]
      %v248 = vld [vmem:[%s209 + $0xc8] sm:$0xff]
      %v249 = vld [vmem:[%s209 + $0xd0] sm:$0xff]
      %v250 = vld [vmem:[%s209 + $0xd8] sm:$0xff]
      %v251 = vld [vmem:[%s209 + $0xe0] sm:$0xff]
      %v252 = vld [vmem:[%s209 + $0xe8] sm:$0xff]
      %v253 = vld [vmem:[%s209 + $0xf0] sm:$0xff]
      %v254 = vld [vmem:[%s209 + $0xf8] sm:$0xff]
      %v255 = vld [vmem:[%s1] sm:$0x1]
      %v257 = vperm.slane %v255, 0
      %v259 = vmul.f32 %v223, %v257
      %v260 = vmul.f32 %v224, %v257
      %v261 = vmul.f32 %v225, %v257
      %v262 = vmul.f32 %v226, %v257
      %v263 = vmul.f32 %v227, %v257
      %v264 = vmul.f32 %v228, %v257
      %v265 = vmul.f32 %v229, %v257
      %v266 = vmul.f32 %v230, %v257
      %v267 = vmul.f32 %v231, %v257
      %v268 = vmul.f32 %v232, %v257
      %v269 = vmul.f32 %v233, %v257
      %v270 = vmul.f32 %v234, %v257
      %v271 = vmul.f32 %v235, %v257
      %v272 = vmul.f32 %v236, %v257
      %v273 = vmul.f32 %v237, %v257
      %v274 = vmul.f32 %v238, %v257
      %v275 = vmul.f32 %v239, %v257
      %v276 = vmul.f32 %v240, %v257
      %v277 = vmul.f32 %v241, %v257
      %v278 = vmul.f32 %v242, %v257
      %v279 = vmul.f32 %v243, %v257
      %v280 = vmul.f32 %v244, %v257
      %v281 = vmul.f32 %v245, %v257
      %v282 = vmul.f32 %v246, %v257
      %v283 = vmul.f32 %v247, %v257
      %v284 = vmul.f32 %v248, %v257
      %v285 = vmul.f32 %v249, %v257
      %v286 = vmul.f32 %v250, %v257
      %v287 = vmul.f32 %v251, %v257
      %v288 = vmul.f32 %v252, %v257
      %v289 = vmul.f32 %v253, %v257
      %v290 = vmul.f32 %v254, %v257
      %v291 = vld [vmem:[%s2] sm:$0x1]
      %v293 = vperm.slane %v291, 0
      %v295 = vadd.f32 %v259, %v293
      %v296 = vadd.f32 %v260, %v293
      %v297 = vadd.f32 %v261, %v293
      %v298 = vadd.f32 %v262, %v293
      %v299 = vadd.f32 %v263, %v293
      %v300 = vadd.f32 %v264, %v293
      %v301 = vadd.f32 %v265, %v293
      %v302 = vadd.f32 %v266, %v293
      %v303 = vadd.f32 %v267, %v293
      %v304 = vadd.f32 %v268, %v293
      %v305 = vadd.f32 %v269, %v293
      %v306 = vadd.f32 %v270, %v293
      %v307 = vadd.f32 %v271, %v293
      %v308 = vadd.f32 %v272, %v293
      %v309 = vadd.f32 %v273, %v293
      %v310 = vadd.f32 %v274, %v293
      %v311 = vadd.f32 %v275, %v293
      %v312 = vadd.f32 %v276, %v293
      %v313 = vadd.f32 %v277, %v293
      %v314 = vadd.f32 %v278, %v293
      %v315 = vadd.f32 %v279, %v293
      %v316 = vadd.f32 %v280, %v293
      %v317 = vadd.f32 %v281, %v293
      %v318 = vadd.f32 %v282, %v293
      %v319 = vadd.f32 %v283, %v293
      %v320 = vadd.f32 %v284, %v293
      %v321 = vadd.f32 %v285, %v293
      %v322 = vadd.f32 %v286, %v293
      %v323 = vadd.f32 %v287, %v293
      %v324 = vadd.f32 %v288, %v293
      %v325 = vadd.f32 %v289, %v293
      %v326 = vadd.f32 %v290, %v293
      %v327 = vld [vmem:[%s215] sm:$0xff]
      %v328 = vld [vmem:[%s215 + $0x8] sm:$0xff]
      %v329 = vld [vmem:[%s215 + $0x10] sm:$0xff]
      %v330 = vld [vmem:[%s215 + $0x18] sm:$0xff]
      %v331 = vld [vmem:[%s215 + $0x20] sm:$0xff]
      %v332 = vld [vmem:[%s215 + $0x28] sm:$0xff]
      %v333 = vld [vmem:[%s215 + $0x30] sm:$0xff]
      %v334 = vld [vmem:[%s215 + $0x38] sm:$0xff]
      %v335 = vld [vmem:[%s215 + $0x40] sm:$0xff]
      %v336 = vld [vmem:[%s215 + $0x48] sm:$0xff]
      %v337 = vld [vmem:[%s215 + $0x50] sm:$0xff]
      %v338 = vld [vmem:[%s215 + $0x58] sm:$0xff]
      %v339 = vld [vmem:[%s215 + $0x60] sm:$0xff]
      %v340 = vld [vmem:[%s215 + $0x68] sm:$0xff]
      %v341 = vld [vmem:[%s215 + $0x70] sm:$0xff]
      %v342 = vld [vmem:[%s215 + $0x78] sm:$0xff]
      %v343 = vld [vmem:[%s215 + $0x80] sm:$0xff]
      %v344 = vld [vmem:[%s215 + $0x88] sm:$0xff]
      %v345 = vld [vmem:[%s215 + $0x90] sm:$0xff]
      %v346 = vld [vmem:[%s215 + $0x98] sm:$0xff]
      %v347 = vld [vmem:[%s215 + $0xa0] sm:$0xff]
      %v348 = vld [vmem:[%s215 + $0xa8] sm:$0xff]
      %v349 = vld [vmem:[%s215 + $0xb0] sm:$0xff]
      %v350 = vld [vmem:[%s215 + $0xb8] sm:$0xff]
      %v351 = vld [vmem:[%s215 + $0xc0] sm:$0xff]
      %v352 = vld [vmem:[%s215 + $0xc8] sm:$0xff]
      %v353 = vld [vmem:[%s215 + $0xd0] sm:$0xff]
      %v354 = vld [vmem:[%s215 + $0xd8] sm:$0xff]
      %v355 = vld [vmem:[%s215 + $0xe0] sm:$0xff]
      %v356 = vld [vmem:[%s215 + $0xe8] sm:$0xff]
      %v357 = vld [vmem:[%s215 + $0xf0] sm:$0xff]
      %v358 = vld [vmem:[%s215 + $0xf8] sm:$0xff]
      %v359 = vadd.f32 %v295, %v327
      %v360 = vadd.f32 %v296, %v328
      %v361 = vadd.f32 %v297, %v329
      %v362 = vadd.f32 %v298, %v330
      %v363 = vadd.f32 %v299, %v331
      %v364 = vadd.f32 %v300, %v332
      %v365 = vadd.f32 %v301, %v333
      %v366 = vadd.f32 %v302, %v334
      %v367 = vadd.f32 %v303, %v335
      %v368 = vadd.f32 %v304, %v336
      %v369 = vadd.f32 %v305, %v337
      %v370 = vadd.f32 %v306, %v338
      %v371 = vadd.f32 %v307, %v339
      %v372 = vadd.f32 %v308, %v340
      %v373 = vadd.f32 %v309, %v341
      %v374 = vadd.f32 %v310, %v342
      %v375 = vadd.f32 %v311, %v343
      %v376 = vadd.f32 %v312, %v344
      %v377 = vadd.f32 %v313, %v345
      %v378 = vadd.f32 %v314, %v346
      %v379 = vadd.f32 %v315, %v347
      %v380 = vadd.f32 %v316, %v348
      %v381 = vadd.f32 %v317, %v349
      %v382 = vadd.f32 %v318, %v350
      %v383 = vadd.f32 %v319, %v351
      %v384 = vadd.f32 %v320, %v352
      %v385 = vadd.f32 %v321, %v353
      %v386 = vadd.f32 %v322, %v354
      %v387 = vadd.f32 %v323, %v355
      %v388 = vadd.f32 %v324, %v356
      %v389 = vadd.f32 %v325, %v357
      %v390 = vadd.f32 %v326, %v358
      %v391 = vmax.f32 %v359, 0.0
      %v392 = vmax.f32 %v360, 0.0
      %v393 = vmax.f32 %v361, 0.0
      %v394 = vmax.f32 %v362, 0.0
      %v395 = vmax.f32 %v363, 0.0
      %v396 = vmax.f32 %v364, 0.0
      %v397 = vmax.f32 %v365, 0.0
      %v398 = vmax.f32 %v366, 0.0
      %v399 = vmax.f32 %v367, 0.0
      %v400 = vmax.f32 %v368, 0.0
      %v401 = vmax.f32 %v369, 0.0
      %v402 = vmax.f32 %v370, 0.0
      %v403 = vmax.f32 %v371, 0.0
      %v404 = vmax.f32 %v372, 0.0
      %v405 = vmax.f32 %v373, 0.0
      %v406 = vmax.f32 %v374, 0.0
      %v407 = vmax.f32 %v375, 0.0
      %v408 = vmax.f32 %v376, 0.0
      %v409 = vmax.f32 %v377, 0.0
      %v410 = vmax.f32 %v378, 0.0
      %v411 = vmax.f32 %v379, 0.0
      %v412 = vmax.f32 %v380, 0.0
      %v413 = vmax.f32 %v381, 0.0
      %v414 = vmax.f32 %v382, 0.0
      %v415 = vmax.f32 %v383, 0.0
      %v416 = vmax.f32 %v384, 0.0
      %v417 = vmax.f32 %v385, 0.0
      %v418 = vmax.f32 %v386, 0.0
      %v419 = vmax.f32 %v387, 0.0
      %v420 = vmax.f32 %v388, 0.0
      %v421 = vmax.f32 %v389, 0.0
      %v422 = vmax.f32 %v390, 0.0
      %423 = vst [vmem:[%s221] sm:$0xff] %v391
      %424 = vst [vmem:[%s221 + $0x8] sm:$0xff] %v392
      %425 = vst [vmem:[%s221 + $0x10] sm:$0xff] %v393
      %426 = vst [vmem:[%s221 + $0x18] sm:$0xff] %v394
      %427 = vst [vmem:[%s221 + $0x20] sm:$0xff] %v395
      %428 = vst [vmem:[%s221 + $0x28] sm:$0xff] %v396
      %429 = vst [vmem:[%s221 + $0x30] sm:$0xff] %v397
      %430 = vst [vmem:[%s221 + $0x38] sm:$0xff] %v398
      %431 = vst [vmem:[%s221 + $0x40] sm:$0xff] %v399
      %432 = vst [vmem:[%s221 + $0x48] sm:$0xff] %v400
      %433 = vst [vmem:[%s221 + $0x50] sm:$0xff] %v401
      %434 = vst [vmem:[%s221 + $0x58] sm:$0xff] %v402
      %435 = vst [vmem:[%s221 + $0x60] sm:$0xff] %v403
      %436 = vst [vmem:[%s221 + $0x68] sm:$0xff] %v404
      %437 = vst [vmem:[%s221 + $0x70] sm:$0xff] %v405
      %438 = vst [vmem:[%s221 + $0x78] sm:$0xff] %v406
      %439 = vst [vmem:[%s221 + $0x80] sm:$0xff] %v407
      %440 = vst [vmem:[%s221 + $0x88] sm:$0xff] %v408
      %441 = vst [vmem:[%s221 + $0x90] sm:$0xff] %v409
      %442 = vst [vmem:[%s221 + $0x98] sm:$0xff] %v410
      %443 = vst [vmem:[%s221 + $0xa0] sm:$0xff] %v411
      %444 = vst [vmem:[%s221 + $0xa8] sm:$0xff] %v412
      %445 = vst [vmem:[%s221 + $0xb0] sm:$0xff] %v413
      %446 = vst [vmem:[%s221 + $0xb8] sm:$0xff] %v414
      %447 = vst [vmem:[%s221 + $0xc0] sm:$0xff] %v415
      %448 = vst [vmem:[%s221 + $0xc8] sm:$0xff] %v416
      %449 = vst [vmem:[%s221 + $0xd0] sm:$0xff] %v417
      %450 = vst [vmem:[%s221 + $0xd8] sm:$0xff] %v418
      %451 = vst [vmem:[%s221 + $0xe0] sm:$0xff] %v419
      %452 = vst [vmem:[%s221 + $0xe8] sm:$0xff] %v420
      %453 = vst [vmem:[%s221 + $0xf0] sm:$0xff] %v421
      %454 = vst [vmem:[%s221 + $0xf8] sm:$0xff] %v422
      %s455 = smul.u32 32, %s15
      %p456 = scmp.lt.s32.totalorder %s455, 63
      %s457 = scalar_select %p456, %s455, 63
      %s458 = smul.addr %s457, 8
      %s459 = scalar_lea.vmem %s4, %s458
      // Predicated region
      $region37: #{double_basic_block.11} parent=35 // pred_check
        %p460 = pneg %p127
      $region38: #{double_basic_block.11} parent=35 // pred_check_branch
        %462 = sbr.rel (%p460) target = $region40
      $region39: #{double_basic_block.11} parent=35 // pred_region
        %s463 = smul.u32 32, %s15
      $region40: #{double_basic_block.11} parent=35 // pred_fallthru
        _
    $region36: #{double_basic_block.11} parent=5 // pred_fallthru
      _
    %p464 = scmp.le.s32.totalorder 2, %s10
    // Predicated region
    $region41: #{double_basic_block.11} parent=5 // pred_check
      %p465 = pneg %p464
    $region42: #{double_basic_block.11} parent=5 // pred_check_branch
      %467 = sbr.rel (%p465) target = $region44
    $region43: #{double_basic_block.11} parent=5 // pred_region
      %s468 = ssub.s32 %s10, 2
      // Predicated region
      $region45: #{double_basic_block.11} parent=43 // pred_check
        %p469 = pneg %p133
      $region46: #{double_basic_block.11} parent=43 // pred_check_branch
        %471 = sbr.rel (%p469) target = $region48
      $region47: #{double_basic_block.11} parent=43 // pred_region
        %s472 = smul.u32 32, %s16
        %p473 = scmp.lt.s32.totalorder %s472, 63
        %s474 = scalar_select %p473, %s472, 63
        %s475 = smul.addr %s474, 8
        %s476 = scalar_lea.vmem %s4, %s475
      $region48: #{double_basic_block.11} parent=43 // pred_fallthru
        _
    $region44: #{double_basic_block.11} parent=5 // pred_fallthru
      _
  $region6: #{double_basic_block.11} parent=0 // loop_footer
    %s14 = sadd.s32 1, %s10
  $region7: #{double_basic_block.11} parent=0 // loop_footer_branch
    %9 = sbr.rel target = $region3
  $region8: #{double_basic_block.11} parent=0 // loop_exit
    _

// kernel: double_basic_block.8
$region0: #{double_basic_block.8}
  #allocation0 [shape = 'u32[]', space=smem, size = 0x4, offset = 0x4, fixed_abs, tag = 'smem constant byte address 0x4 - core index']
  #allocation1 [shape = 'u32[72,128]{1,0:T(1,128)}', space=vmem, size = 0x9000, scoped, tag = 'internal scratch']
  #allocation2 [shape = 'f32[8,128]{1,0:T(8,128)}', space=vmem, size = 0x1000, scoped, tag = 'scratch operand']
  %s0 = inlined_call_operand.vmem [shape: bf16[512,1152], index: 0, kind: input, shape index: {}]
  %s1 = inlined_call_operand.vmem [shape: bf16[1152,128], index: 1, kind: input, shape index: {}]
  %s2 = inlined_call_operand.vmem [shape: f32[512,128], index: 2, kind: output, shape index: {0}]
  %s3 = inlined_call_operand.vmem [shape: f32[8,128], index: 3, kind: output, shape index: {1}]
  %4 = xla_tuple %s2, %s3
  %s5 = sld [smem:[#allocation0]]
  $region57: #{double_basic_block.8} parent=0
    _
  %s7 = ssub.s32 1, %s5
  %s8 = scalar_select 0, %s7, %s5
  loop: start=0, step=1, limit=4
  $region2: #{double_basic_block.8} parent=0 // loop_pre_header
    _
  $region3: #{double_basic_block.8} parent=0 // loop_header
    %s10 = sphi 0, %s14
    %p11 = scmp.ge.s32.totalorder %s10, 4
    %s20 = sphi 0, %s22
    %s23 = sphi 0, %s20
    %s24 = sphi 0, %s23
    %s40 = sphi 0, %s24
    %s44 = sphi 0, %s44
    %s46 = sphi 0, %s44
    %s47 = sphi 0, %s46
    %s61 = sphi 0, %s47
    %s67 = sphi 0, %s69
    %s70 = sphi 0, %s67
    %s71 = sphi 0, %s70
    %s87 = sphi 0, %s71
    %s91 = sphi 0, %s91
    %s93 = sphi 0, %s91
    %s94 = sphi 0, %s93
    %s108 = sphi 0, %s94
  $region4: #{double_basic_block.8} parent=0 // loop_header_branch
    %13 = sbr.rel (%p11) target = $region8
  $region5: #{double_basic_block.8} parent=0 // loop_body
    %s15 = ssub.s32 %s10, 1
    %s16 = ssub.s32 %s10, 2
    %s17 = sadd.s32 %s10, 1
    %s18 = ssub.s32 %s10, %s17
    %p19 = scmp.eq.s32.totalorder %s18, 0
    %s21 = sadd.s32 %s20, 1
    %s22 = scalar_select %p19, %s20, %s21
    %p25 = pneg %p19
    %p26 = scmp.eq.s32.totalorder %s10, 1
    %p27 = por %p25, %p26
    %p28 = scmp.ne.s32.totalorder %s20, %s23
    %p29 = scmp.eq.s32.totalorder %s10, 0
    %p30 = por %p28, %p29
    %p31 = scmp.ne.s32.totalorder %s20, %s23
    %p32 = scmp.eq.s32.totalorder %s15, 1
    %p33 = por %p31, %p32
    %p34 = scmp.ne.s32.totalorder %s23, %s24
    %p35 = scmp.eq.s32.totalorder %s15, 0
    %p36 = por %p34, %p35
    %p37 = scmp.ne.s32.totalorder %s23, %s24
    %p38 = scmp.eq.s32.totalorder %s16, 1
    %p39 = por %p37, %p38
    %p41 = scmp.ne.s32.totalorder %s24, %s40
    %p42 = scmp.eq.s32.totalorder %s16, 0
    %p43 = por %p41, %p42
    %s45 = sadd.s32 %s44, 1
    %p48 = scmp.eq.s32.totalorder %s10, 1
    %p49 = scmp.ne.s32.totalorder %s44, %s46
    %p50 = scmp.eq.s32.totalorder %s10, 0
    %p51 = por %p49, %p50
    %p52 = scmp.ne.s32.totalorder %s44, %s46
    %p53 = scmp.eq.s32.totalorder %s15, 1
    %p54 = por %p52, %p53
    %p55 = scmp.ne.s32.totalorder %s46, %s47
    %p56 = scmp.eq.s32.totalorder %s15, 0
    %p57 = por %p55, %p56
    %p58 = scmp.ne.s32.totalorder %s46, %s47
    %p59 = scmp.eq.s32.totalorder %s16, 1
    %p60 = por %p58, %p59
    %p62 = scmp.ne.s32.totalorder %s47, %s61
    %p63 = scmp.eq.s32.totalorder %s16, 0
    %p64 = por %p62, %p63
    %s65 = ssub.s32 %s10, %s17
    %p66 = scmp.eq.s32.totalorder %s65, 0
    %s68 = sadd.s32 %s67, 1
    %s69 = scalar_select %p66, %s67, %s68
    %p72 = pneg %p66
    %p73 = scmp.eq.s32.totalorder %s10, 1
    %p74 = por %p72, %p73
    %p75 = scmp.ne.s32.totalorder %s67, %s70
    %p76 = scmp.eq.s32.totalorder %s10, 0
    %p77 = por %p75, %p76
    %p78 = scmp.ne.s32.totalorder %s67, %s70
    %p79 = scmp.eq.s32.totalorder %s15, 1
    %p80 = por %p78, %p79
    %p81 = scmp.ne.s32.totalorder %s70, %s71
    %p82 = scmp.eq.s32.totalorder %s15, 0
    %p83 = por %p81, %p82
    %p84 = scmp.ne.s32.totalorder %s70, %s71
    %p85 = scmp.eq.s32.totalorder %s16, 1
    %p86 = por %p84, %p85
    %p88 = scmp.ne.s32.totalorder %s71, %s87
    %p89 = scmp.eq.s32.totalorder %s16, 0
    %p90 = por %p88, %p89
    %s92 = sadd.s32 %s91, 1
    %p95 = scmp.eq.s32.totalorder %s10, 1
    %p96 = scmp.ne.s32.totalorder %s91, %s93
    %p97 = scmp.eq.s32.totalorder %s10, 0
    %p98 = por %p96, %p97
    %p99 = scmp.ne.s32.totalorder %s91, %s93
    %p100 = scmp.eq.s32.totalorder %s15, 1
    %p101 = por %p99, %p100
    %p102 = scmp.ne.s32.totalorder %s93, %s94
    %p103 = scmp.eq.s32.totalorder %s15, 0
    %p104 = por %p102, %p103
    %p105 = scmp.ne.s32.totalorder %s93, %s94
    %p106 = scmp.eq.s32.totalorder %s16, 1
    %p107 = por %p105, %p106
    %p109 = scmp.ne.s32.totalorder %s94, %s108
    %p110 = scmp.eq.s32.totalorder %s16, 0
    %p111 = por %p109, %p110
    %p112 = scmp.le.s32.totalorder 1, %s10
    %p113 = scmp.lt.s32.totalorder %s10, 3
    %p114 = pnand %p112, %p113
    %p115 = pneg %p114
    // Predicated region
    $region9: #{double_basic_block.8} parent=5 // pred_check
      _
    $region10: #{double_basic_block.8} parent=5 // pred_check_branch
      %117 = sbr.rel (%p114) target = $region12
    $region11: #{double_basic_block.8} parent=5 // pred_region
      %s118 = ssub.s32 %s10, 1
      // Predicated region
      $region13: #{double_basic_block.8} parent=11 // pred_check
        %p119 = pneg %p57
      $region14: #{double_basic_block.8} parent=11 // pred_check_branch
        %121 = sbr.rel (%p119) target = $region16
      $region15: #{double_basic_block.8} parent=11 // pred_region
        _
      $region16: #{double_basic_block.8} parent=11 // pred_fallthru
        _
    $region12: #{double_basic_block.8} parent=5 // pred_fallthru
      _
    %p122 = scmp.lt.s32.totalorder %s10, 2
    // Predicated region
    $region17: #{double_basic_block.8} parent=5 // pred_check
      %p123 = pneg %p122
    $region18: #{double_basic_block.8} parent=5 // pred_check_branch
      %125 = sbr.rel (%p123) target = $region20
    $region19: #{double_basic_block.8} parent=5 // pred_region
      // Predicated region
      $region21: #{double_basic_block.8} parent=19 // pred_check
        %p126 = pneg %p30
      $region22: #{double_basic_block.8} parent=19 // pred_check_branch
        %128 = sbr.rel (%p126) target = $region24
      $region23: #{double_basic_block.8} parent=19 // pred_region
        %s129 = smul.u32 32, %s10
        %p130 = scmp.lt.s32.totalorder %s129, 63
        %s131 = scalar_select %p130, %s129, 63
        %s132 = smul.addr %s131, 9
        %s133 = smul.addr %s132, 4
        %s134 = scalar_lea.vmem %s0, %s133
        %s135 = smul.u32 32, %s10
      $region24: #{double_basic_block.8} parent=19 // pred_fallthru
        _
    $region20: #{double_basic_block.8} parent=5 // pred_fallthru
      _
    %p136 = scmp.le.s32.totalorder 1, %s10
    %p137 = scmp.lt.s32.totalorder %s10, 3
    %p138 = pnand %p136, %p137
    %p139 = pneg %p138
    // Predicated region
    $region25: #{double_basic_block.8} parent=5 // pred_check
      _
    $region26: #{double_basic_block.8} parent=5 // pred_check_branch
      %141 = sbr.rel (%p138) target = $region28
    $region27: #{double_basic_block.8} parent=5 // pred_region
      %s142 = ssub.s32 %s10, 1
      %s143 = smul.u32 32, %s15
      %p144 = scmp.lt.s32.totalorder %s143, 63
      %s145 = scalar_select %p144, %s143, 63
      %s146 = smul.addr %s145, 9
      %s147 = smul.addr %s146, 4
      %s148 = scalar_lea.vmem %s0, %s147
      %p149 = pneg %p36
      %p150 = pneg %p33
      %p151 = pneg %p57
      %p152 = pneg %p54
      %p153 = pneg %p83
      %p154 = pneg %p80
      %s155 = smul.u32 32, %s15
      %p156 = scmp.lt.s32.totalorder %s155, 63
      %s157 = scalar_select %p156, %s155, 63
      %s158 = smul.addr %s157, 8
      %s159 = scalar_lea.vmem %s2, %s158
      %p160 = pneg %p104
      %p161 = pneg %p101
      %s162 = smul.u32 32, %s15
      %p163 = scmp.lt.s32.totalorder %s162, 63
      %s164 = scalar_select %p163, %s162, 63
      %s165 = smul.addr %s164, 9
      %s166 = smul.addr %s165, 4
      %s167 = scalar_lea.vmem %s0, %s166
      %s168 = smul.u32 32, %s15
      %s169 = smul.u32 32, %s15
      %p170 = scmp.lt.s32.totalorder %s169, 63
      %s171 = scalar_select %p170, %s169, 63
      %s172 = smul.addr %s171, 8
      %s173 = scalar_lea.vmem %s2, %s172
      %s174 = smul.u32 32, %s15
      %p175 = scmp.eq.s32.totalorder %s15, 0
      // Predicated region
      $region29: #{double_basic_block.8} parent=27 // pred_check
        %p176 = pneg %p175
      $region30: #{double_basic_block.8} parent=27 // pred_check_branch
        %178 = sbr.rel (%p176) target = $region32
      $region31: #{double_basic_block.8} parent=27 // pred_region
        %179 = vst [vmem:[#allocation2] sm:$0xff] 0.0
      $region32: #{double_basic_block.8} parent=27 // pred_fallthru
        _
      %v180 = vld [vmem:[%s167] sm:$0xff]
      %v181 = vld [vmem:[%s167 + $0x8] sm:$0xff]
      %v182 = vld [vmem:[%s167 + $0x10] sm:$0xff]
      %v183 = vld [vmem:[%s167 + $0x18] sm:$0xff]
      %v184 = vld [vmem:[%s167 + $0x20] sm:$0xf]
      %v185 = vld [vmem:[%s167 + $0x24] sm:$0xff]
      %v186 = vld [vmem:[%s167 + $0x2c] sm:$0xff]
      %v187 = vld [vmem:[%s167 + $0x34] sm:$0xff]
      %v188 = vld [vmem:[%s167 + $0x3c] sm:$0xff]
      %v189 = vld [vmem:[%s167 + $0x44] sm:$0xf]
      %v190 = vld [vmem:[%s167 + $0x48] sm:$0xff]
      %v191 = vld [vmem:[%s167 + $0x50] sm:$0xff]
      %v192 = vld [vmem:[%s167 + $0x58] sm:$0xff]
      %v193 = vld [vmem:[%s167 + $0x60] sm:$0xff]
      %v194 = vld [vmem:[%s167 + $0x68] sm:$0xf]
      %v195 = vld [vmem:[%s167 + $0x6c] sm:$0xff]
      %v196 = vld [vmem:[%s167 + $0x74] sm:$0xff]
      %v197 = vld [vmem:[%s167 + $0x7c] sm:$0xff]
      %v198 = vld [vmem:[%s167 + $0x84] sm:$0xff]
      %v199 = vld [vmem:[%s167 + $0x8c] sm:$0xf]
      %v200 = vld [vmem:[%s167 + $0x90] sm:$0xff]
      %v201 = vld [vmem:[%s167 + $0x98] sm:$0xff]
      %v202 = vld [vmem:[%s167 + $0xa0] sm:$0xff]
      %v203 = vld [vmem:[%s167 + $0xa8] sm:$0xff]
      %v204 = vld [vmem:[%s167 + $0xb0] sm:$0xf]
      %v205 = vld [vmem:[%s167 + $0xb4] sm:$0xff]
      %v206 = vld [vmem:[%s167 + $0xbc] sm:$0xff]
      %v207 = vld [vmem:[%s167 + $0xc4] sm:$0xff]
      %v208 = vld [vmem:[%s167 + $0xcc] sm:$0xff]
      %v209 = vld [vmem:[%s167 + $0xd4] sm:$0xf]
      %v210 = vld [vmem:[%s167 + $0xd8] sm:$0xff]
      %v211 = vld [vmem:[%s167 + $0xe0] sm:$0xff]
      %v212 = vld [vmem:[%s167 + $0xe8] sm:$0xff]
      %v213 = vld [vmem:[%s167 + $0xf0] sm:$0xff]
      %v214 = vld [vmem:[%s167 + $0xf8] sm:$0xf]
      %v215 = vld [vmem:[%s167 + $0xfc] sm:$0xff]
      %v216 = vld [vmem:[%s167 + $0x104] sm:$0xff]
      %v217 = vld [vmem:[%s167 + $0x10c] sm:$0xff]
      %v218 = vld [vmem:[%s167 + $0x114] sm:$0xff]
      %v219 = vld [vmem:[%s167 + $0x11c] sm:$0xf]
      %v220 = vld [vmem:[%s167 + $0x120] sm:$0xff]
      %v221 = vld [vmem:[%s167 + $0x128] sm:$0xff]
      %v222 = vld [vmem:[%s167 + $0x130] sm:$0xff]
      %v223 = vld [vmem:[%s167 + $0x138] sm:$0xff]
      %v224 = vld [vmem:[%s167 + $0x140] sm:$0xf]
      %v225 = vld [vmem:[%s167 + $0x144] sm:$0xff]
      %v226 = vld [vmem:[%s167 + $0x14c] sm:$0xff]
      %v227 = vld [vmem:[%s167 + $0x154] sm:$0xff]
      %v228 = vld [vmem:[%s167 + $0x15c] sm:$0xff]
      %v229 = vld [vmem:[%s167 + $0x164] sm:$0xf]
      %v230 = vld [vmem:[%s167 + $0x168] sm:$0xff]
      %v231 = vld [vmem:[%s167 + $0x170] sm:$0xff]
      %v232 = vld [vmem:[%s167 + $0x178] sm:$0xff]
      %v233 = vld [vmem:[%s167 + $0x180] sm:$0xff]
      %v234 = vld [vmem:[%s167 + $0x188] sm:$0xf]
      %v235 = vld [vmem:[%s167 + $0x18c] sm:$0xff]
      %v236 = vld [vmem:[%s167 + $0x194] sm:$0xff]
      %v237 = vld [vmem:[%s167 + $0x19c] sm:$0xff]
      %v238 = vld [vmem:[%s167 + $0x1a4] sm:$0xff]
      %v239 = vld [vmem:[%s167 + $0x1ac] sm:$0xf]
      %v240 = vld [vmem:[%s167 + $0x1b0] sm:$0xff]
      %v241 = vld [vmem:[%s167 + $0x1b8] sm:$0xff]
      %v242 = vld [vmem:[%s167 + $0x1c0] sm:$0xff]
      %v243 = vld [vmem:[%s167 + $0x1c8] sm:$0xff]
      %v244 = vld [vmem:[%s167 + $0x1d0] sm:$0xf]
      %v245 = vld [vmem:[%s167 + $0x1d4] sm:$0xff]
      %v246 = vld [vmem:[%s167 + $0x1dc] sm:$0xff]
      %v247 = vld [vmem:[%s167 + $0x1e4] sm:$0xff]
      %v248 = vld [vmem:[%s167 + $0x1ec] sm:$0xff]
      %v249 = vld [vmem:[%s167 + $0x1f4] sm:$0xf]
      %v250 = vld [vmem:[%s167 + $0x1f8] sm:$0xff]
      %v251 = vld [vmem:[%s167 + $0x200] sm:$0xff]
      %v252 = vld [vmem:[%s167 + $0x208] sm:$0xff]
      %v253 = vld [vmem:[%s167 + $0x210] sm:$0xff]
      %v254 = vld [vmem:[%s167 + $0x218] sm:$0xf]
      %v255 = vld [vmem:[%s167 + $0x21c] sm:$0xff]
      %v256 = vld [vmem:[%s167 + $0x224] sm:$0xff]
      %v257 = vld [vmem:[%s167 + $0x22c] sm:$0xff]
      %v258 = vld [vmem:[%s167 + $0x234] sm:$0xff]
      %v259 = vld [vmem:[%s167 + $0x23c] sm:$0xf]
      %v260 = vld [vmem:[%s167 + $0x240] sm:$0xff]
      %v261 = vld [vmem:[%s167 + $0x248] sm:$0xff]
      %v262 = vld [vmem:[%s167 + $0x250] sm:$0xff]
      %v263 = vld [vmem:[%s167 + $0x258] sm:$0xff]
      %v264 = vld [vmem:[%s167 + $0x260] sm:$0xf]
      %v265 = vld [vmem:[%s167 + $0x264] sm:$0xff]
      %v266 = vld [vmem:[%s167 + $0x26c] sm:$0xff]
      %v267 = vld [vmem:[%s167 + $0x274] sm:$0xff]
      %v268 = vld [vmem:[%s167 + $0x27c] sm:$0xff]
      %v269 = vld [vmem:[%s167 + $0x284] sm:$0xf]
      %v270 = vld [vmem:[%s167 + $0x288] sm:$0xff]
      %v271 = vld [vmem:[%s167 + $0x290] sm:$0xff]
      %v272 = vld [vmem:[%s167 + $0x298] sm:$0xff]
      %v273 = vld [vmem:[%s167 + $0x2a0] sm:$0xff]
      %v274 = vld [vmem:[%s167 + $0x2a8] sm:$0xf]
      %v275 = vld [vmem:[%s167 + $0x2ac] sm:$0xff]
      %v276 = vld [vmem:[%s167 + $0x2b4] sm:$0xff]
      %v277 = vld [vmem:[%s167 + $0x2bc] sm:$0xff]
      %v278 = vld [vmem:[%s167 + $0x2c4] sm:$0xff]
      %v279 = vld [vmem:[%s167 + $0x2cc] sm:$0xf]
      %v280 = vld [vmem:[%s167 + $0x2d0] sm:$0xff]
      %v281 = vld [vmem:[%s167 + $0x2d8] sm:$0xff]
      %v282 = vld [vmem:[%s167 + $0x2e0] sm:$0xff]
      %v283 = vld [vmem:[%s167 + $0x2e8] sm:$0xff]
      %v284 = vld [vmem:[%s167 + $0x2f0] sm:$0xf]
      %v285 = vld [vmem:[%s167 + $0x2f4] sm:$0xff]
      %v286 = vld [vmem:[%s167 + $0x2fc] sm:$0xff]
      %v287 = vld [vmem:[%s167 + $0x304] sm:$0xff]
      %v288 = vld [vmem:[%s167 + $0x30c] sm:$0xff]
      %v289 = vld [vmem:[%s167 + $0x314] sm:$0xf]
      %v290 = vld [vmem:[%s167 + $0x318] sm:$0xff]
      %v291 = vld [vmem:[%s167 + $0x320] sm:$0xff]
      %v292 = vld [vmem:[%s167 + $0x328] sm:$0xff]
      %v293 = vld [vmem:[%s167 + $0x330] sm:$0xff]
      %v294 = vld [vmem:[%s167 + $0x338] sm:$0xf]
      %v295 = vld [vmem:[%s167 + $0x33c] sm:$0xff]
      %v296 = vld [vmem:[%s167 + $0x344] sm:$0xff]
      %v297 = vld [vmem:[%s167 + $0x34c] sm:$0xff]
      %v298 = vld [vmem:[%s167 + $0x354] sm:$0xff]
      %v299 = vld [vmem:[%s167 + $0x35c] sm:$0xf]
      %v300 = vld [vmem:[%s167 + $0x360] sm:$0xff]
      %v301 = vld [vmem:[%s167 + $0x368] sm:$0xff]
      %v302 = vld [vmem:[%s167 + $0x370] sm:$0xff]
      %v303 = vld [vmem:[%s167 + $0x378] sm:$0xff]
      %v304 = vld [vmem:[%s167 + $0x380] sm:$0xf]
      %v305 = vld [vmem:[%s167 + $0x384] sm:$0xff]
      %v306 = vld [vmem:[%s167 + $0x38c] sm:$0xff]
      %v307 = vld [vmem:[%s167 + $0x394] sm:$0xff]
      %v308 = vld [vmem:[%s167 + $0x39c] sm:$0xff]
      %v309 = vld [vmem:[%s167 + $0x3a4] sm:$0xf]
      %v310 = vld [vmem:[%s167 + $0x3a8] sm:$0xff]
      %v311 = vld [vmem:[%s167 + $0x3b0] sm:$0xff]
      %v312 = vld [vmem:[%s167 + $0x3b8] sm:$0xff]
      %v313 = vld [vmem:[%s167 + $0x3c0] sm:$0xff]
      %v314 = vld [vmem:[%s167 + $0x3c8] sm:$0xf]
      %v315 = vld [vmem:[%s167 + $0x3cc] sm:$0xff]
      %v316 = vld [vmem:[%s167 + $0x3d4] sm:$0xff]
      %v317 = vld [vmem:[%s167 + $0x3dc] sm:$0xff]
      %v318 = vld [vmem:[%s167 + $0x3e4] sm:$0xff]
      %v319 = vld [vmem:[%s167 + $0x3ec] sm:$0xf]
      %v320 = vld [vmem:[%s167 + $0x3f0] sm:$0xff]
      %v321 = vld [vmem:[%s167 + $0x3f8] sm:$0xff]
      %v322 = vld [vmem:[%s167 + $0x400] sm:$0xff]
      %v323 = vld [vmem:[%s167 + $0x408] sm:$0xff]
      %v324 = vld [vmem:[%s167 + $0x410] sm:$0xf]
      %v325 = vld [vmem:[%s167 + $0x414] sm:$0xff]
      %v326 = vld [vmem:[%s167 + $0x41c] sm:$0xff]
      %v327 = vld [vmem:[%s167 + $0x424] sm:$0xff]
      %v328 = vld [vmem:[%s167 + $0x42c] sm:$0xff]
      %v329 = vld [vmem:[%s167 + $0x434] sm:$0xf]
      %v330 = vld [vmem:[%s167 + $0x438] sm:$0xff]
      %v331 = vld [vmem:[%s167 + $0x440] sm:$0xff]
      %v332 = vld [vmem:[%s167 + $0x448] sm:$0xff]
      %v333 = vld [vmem:[%s167 + $0x450] sm:$0xff]
      %v334 = vld [vmem:[%s167 + $0x458] sm:$0xf]
      %v335 = vld [vmem:[%s167 + $0x45c] sm:$0xff]
      %v336 = vld [vmem:[%s167 + $0x464] sm:$0xff]
      %v337 = vld [vmem:[%s167 + $0x46c] sm:$0xff]
      %v338 = vld [vmem:[%s167 + $0x474] sm:$0xff]
      %v339 = vld [vmem:[%s167 + $0x47c] sm:$0xf]
      %v340 = vld [vmem:[%s1] sm:$0xf]
      %v341 = vld [vmem:[%s1 + $0x4] sm:$0xf]
      %v342 = vld [vmem:[%s1 + $0x8] sm:$0xf]
      %v343 = vld [vmem:[%s1 + $0xc] sm:$0xf]
      %v344 = vld [vmem:[%s1 + $0x10] sm:$0xf]
      %v345 = vld [vmem:[%s1 + $0x14] sm:$0xf]
      %v346 = vld [vmem:[%s1 + $0x18] sm:$0xf]
      %v347 = vld [vmem:[%s1 + $0x1c] sm:$0xf]
      %v348 = vld [vmem:[%s1 + $0x20] sm:$0xf]
      %v349 = vld [vmem:[%s1 + $0x24] sm:$0xf]
      %v350 = vld [vmem:[%s1 + $0x28] sm:$0xf]
      %v351 = vld [vmem:[%s1 + $0x2c] sm:$0xf]
      %v352 = vld [vmem:[%s1 + $0x30] sm:$0xf]
      %v353 = vld [vmem:[%s1 + $0x34] sm:$0xf]
      %v354 = vld [vmem:[%s1 + $0x38] sm:$0xf]
      %v355 = vld [vmem:[%s1 + $0x3c] sm:$0xf]
      %v356 = vld [vmem:[%s1 + $0x40] sm:$0xf]
      %v357 = vld [vmem:[%s1 + $0x44] sm:$0xf]
      %v358 = vld [vmem:[%s1 + $0x48] sm:$0xf]
      %v359 = vld [vmem:[%s1 + $0x4c] sm:$0xf]
      %v360 = vld [vmem:[%s1 + $0x50] sm:$0xf]
      %v361 = vld [vmem:[%s1 + $0x54] sm:$0xf]
      %v362 = vld [vmem:[%s1 + $0x58] sm:$0xf]
      %v363 = vld [vmem:[%s1 + $0x5c] sm:$0xf]
      %v364 = vld [vmem:[%s1 + $0x60] sm:$0xf]
      %v365 = vld [vmem:[%s1 + $0x64] sm:$0xf]
      %v366 = vld [vmem:[%s1 + $0x68] sm:$0xf]
      %v367 = vld [vmem:[%s1 + $0x6c] sm:$0xf]
      %v368 = vld [vmem:[%s1 + $0x70] sm:$0xf]
      %v369 = vld [vmem:[%s1 + $0x74] sm:$0xf]
      %v370 = vld [vmem:[%s1 + $0x78] sm:$0xf]
      %v371 = vld [vmem:[%s1 + $0x7c] sm:$0xf]
      %v372 = vld [vmem:[%s1 + $0x80] sm:$0xf]
      %v373 = vld [vmem:[%s1 + $0x84] sm:$0xf]
      %v374 = vld [vmem:[%s1 + $0x88] sm:$0xf]
      %v375 = vld [vmem:[%s1 + $0x8c] sm:$0xf]
      %v376 = vld [vmem:[%s1 + $0x90] sm:$0xf]
      %v377 = vld [vmem:[%s1 + $0x94] sm:$0xf]
      %v378 = vld [vmem:[%s1 + $0x98] sm:$0xf]
      %v379 = vld [vmem:[%s1 + $0x9c] sm:$0xf]
      %v380 = vld [vmem:[%s1 + $0xa0] sm:$0xf]
      %v381 = vld [vmem:[%s1 + $0xa4] sm:$0xf]
      %v382 = vld [vmem:[%s1 + $0xa8] sm:$0xf]
      %v383 = vld [vmem:[%s1 + $0xac] sm:$0xf]
      %v384 = vld [vmem:[%s1 + $0xb0] sm:$0xf]
      %v385 = vld [vmem:[%s1 + $0xb4] sm:$0xf]
      %v386 = vld [vmem:[%s1 + $0xb8] sm:$0xf]
      %v387 = vld [vmem:[%s1 + $0xbc] sm:$0xf]
      %v388 = vld [vmem:[%s1 + $0xc0] sm:$0xf]
      %v389 = vld [vmem:[%s1 + $0xc4] sm:$0xf]
      %v390 = vld [vmem:[%s1 + $0xc8] sm:$0xf]
      %v391 = vld [vmem:[%s1 + $0xcc] sm:$0xf]
      %v392 = vld [vmem:[%s1 + $0xd0] sm:$0xf]
      %v393 = vld [vmem:[%s1 + $0xd4] sm:$0xf]
      %v394 = vld [vmem:[%s1 + $0xd8] sm:$0xf]
      %v395 = vld [vmem:[%s1 + $0xdc] sm:$0xf]
      %v396 = vld [vmem:[%s1 + $0xe0] sm:$0xf]
      %v397 = vld [vmem:[%s1 + $0xe4] sm:$0xf]
      %v398 = vld [vmem:[%s1 + $0xe8] sm:$0xf]
      %v399 = vld [vmem:[%s1 + $0xec] sm:$0xf]
      %v400 = vld [vmem:[%s1 + $0xf0] sm:$0xf]
      %v401 = vld [vmem:[%s1 + $0xf4] sm:$0xf]
      %v402 = vld [vmem:[%s1 + $0xf8] sm:$0xf]
      %v403 = vld [vmem:[%s1 + $0xfc] sm:$0xf]
      %v404 = vld [vmem:[%s1 + $0x100] sm:$0xf]
      %v405 = vld [vmem:[%s1 + $0x104] sm:$0xf]
      %v406 = vld [vmem:[%s1 + $0x108] sm:$0xf]
      %v407 = vld [vmem:[%s1 + $0x10c] sm:$0xf]
      %v408 = vld [vmem:[%s1 + $0x110] sm:$0xf]
      %v409 = vld [vmem:[%s1 + $0x114] sm:$0xf]
      %v410 = vld [vmem:[%s1 + $0x118] sm:$0xf]
      %v411 = vld [vmem:[%s1 + $0x11c] sm:$0xf]
      %v412 = vld [vmem:[%s1 + $0x120] sm:$0xf]
      %v413 = vld [vmem:[%s1 + $0x124] sm:$0xf]
      %v414 = vld [vmem:[%s1 + $0x128] sm:$0xf]
      %v415 = vld [vmem:[%s1 + $0x12c] sm:$0xf]
      %v416 = vld [vmem:[%s1 + $0x130] sm:$0xf]
      %v417 = vld [vmem:[%s1 + $0x134] sm:$0xf]
      %v418 = vld [vmem:[%s1 + $0x138] sm:$0xf]
      %v419 = vld [vmem:[%s1 + $0x13c] sm:$0xf]
      %v420 = vld [vmem:[%s1 + $0x140] sm:$0xf]
      %v421 = vld [vmem:[%s1 + $0x144] sm:$0xf]
      %v422 = vld [vmem:[%s1 + $0x148] sm:$0xf]
      %v423 = vld [vmem:[%s1 + $0x14c] sm:$0xf]
      %v424 = vld [vmem:[%s1 + $0x150] sm:$0xf]
      %v425 = vld [vmem:[%s1 + $0x154] sm:$0xf]
      %v426 = vld [vmem:[%s1 + $0x158] sm:$0xf]
      %v427 = vld [vmem:[%s1 + $0x15c] sm:$0xf]
      %v428 = vld [vmem:[%s1 + $0x160] sm:$0xf]
      %v429 = vld [vmem:[%s1 + $0x164] sm:$0xf]
      %v430 = vld [vmem:[%s1 + $0x168] sm:$0xf]
      %v431 = vld [vmem:[%s1 + $0x16c] sm:$0xf]
      %v432 = vld [vmem:[%s1 + $0x170] sm:$0xf]
      %v433 = vld [vmem:[%s1 + $0x174] sm:$0xf]
      %v434 = vld [vmem:[%s1 + $0x178] sm:$0xf]
      %v435 = vld [vmem:[%s1 + $0x17c] sm:$0xf]
      %v436 = vld [vmem:[%s1 + $0x180] sm:$0xf]
      %v437 = vld [vmem:[%s1 + $0x184] sm:$0xf]
      %v438 = vld [vmem:[%s1 + $0x188] sm:$0xf]
      %v439 = vld [vmem:[%s1 + $0x18c] sm:$0xf]
      %v440 = vld [vmem:[%s1 + $0x190] sm:$0xf]
      %v441 = vld [vmem:[%s1 + $0x194] sm:$0xf]
      %v442 = vld [vmem:[%s1 + $0x198] sm:$0xf]
      %v443 = vld [vmem:[%s1 + $0x19c] sm:$0xf]
      %v444 = vld [vmem:[%s1 + $0x1a0] sm:$0xf]
      %v445 = vld [vmem:[%s1 + $0x1a4] sm:$0xf]
      %v446 = vld [vmem:[%s1 + $0x1a8] sm:$0xf]
      %v447 = vld [vmem:[%s1 + $0x1ac] sm:$0xf]
      %v448 = vld [vmem:[%s1 + $0x1b0] sm:$0xf]
      %v449 = vld [vmem:[%s1 + $0x1b4] sm:$0xf]
      %v450 = vld [vmem:[%s1 + $0x1b8] sm:$0xf]
      %v451 = vld [vmem:[%s1 + $0x1bc] sm:$0xf]
      %v452 = vld [vmem:[%s1 + $0x1c0] sm:$0xf]
      %v453 = vld [vmem:[%s1 + $0x1c4] sm:$0xf]
      %v454 = vld [vmem:[%s1 + $0x1c8] sm:$0xf]
      %v455 = vld [vmem:[%s1 + $0x1cc] sm:$0xf]
      %v456 = vld [vmem:[%s1 + $0x1d0] sm:$0xf]
      %v457 = vld [vmem:[%s1 + $0x1d4] sm:$0xf]
      %v458 = vld [vmem:[%s1 + $0x1d8] sm:$0xf]
      %v459 = vld [vmem:[%s1 + $0x1dc] sm:$0xf]
      %v460 = vld [vmem:[%s1 + $0x1e0] sm:$0xf]
      %v461 = vld [vmem:[%s1 + $0x1e4] sm:$0xf]
      %v462 = vld [vmem:[%s1 + $0x1e8] sm:$0xf]
      %v463 = vld [vmem:[%s1 + $0x1ec] sm:$0xf]
      %v464 = vld [vmem:[%s1 + $0x1f0] sm:$0xf]
      %v465 = vld [vmem:[%s1 + $0x1f4] sm:$0xf]
      %v466 = vld [vmem:[%s1 + $0x1f8] sm:$0xf]
      %v467 = vld [vmem:[%s1 + $0x1fc] sm:$0xf]
      %v468 = vld [vmem:[%s1 + $0x200] sm:$0xf]
      %v469 = vld [vmem:[%s1 + $0x204] sm:$0xf]
      %v470 = vld [vmem:[%s1 + $0x208] sm:$0xf]
      %v471 = vld [vmem:[%s1 + $0x20c] sm:$0xf]
      %v472 = vld [vmem:[%s1 + $0x210] sm:$0xf]
      %v473 = vld [vmem:[%s1 + $0x214] sm:$0xf]
      %v474 = vld [vmem:[%s1 + $0x218] sm:$0xf]
      %v475 = vld [vmem:[%s1 + $0x21c] sm:$0xf]
      %v476 = vld [vmem:[%s1 + $0x220] sm:$0xf]
      %v477 = vld [vmem:[%s1 + $0x224] sm:$0xf]
      %v478 = vld [vmem:[%s1 + $0x228] sm:$0xf]
      %v479 = vld [vmem:[%s1 + $0x22c] sm:$0xf]
      %v480 = vld [vmem:[%s1 + $0x230] sm:$0xf]
      %v481 = vld [vmem:[%s1 + $0x234] sm:$0xf]
      %v482 = vld [vmem:[%s1 + $0x238] sm:$0xf]
      %v483 = vld [vmem:[%s1 + $0x23c] sm:$0xf]
      %v644 = vunpack.c.l.b16 %v180
      %v645 = vunpack.c.h.b16 %v180
      %v646 = vunpack.c.l.b16 %v181
      %v647 = vunpack.c.h.b16 %v181
      %v648 = vunpack.c.l.b16 %v182
      %v649 = vunpack.c.h.b16 %v182
      %v650 = vunpack.c.l.b16 %v183
      %v651 = vunpack.c.h.b16 %v183
      %v652 = vunpack.c.l.b16 %v184
      %v653 = vunpack.c.l.b16 %v185
      %v654 = vunpack.c.h.b16 %v185
      %v655 = vunpack.c.l.b16 %v186
      %v656 = vunpack.c.h.b16 %v186
      %v657 = vunpack.c.l.b16 %v187
      %v658 = vunpack.c.h.b16 %v187
      %v659 = vunpack.c.l.b16 %v188
      %v660 = vunpack.c.h.b16 %v188
      %v661 = vunpack.c.l.b16 %v189
      %v662 = vunpack.c.l.b16 %v190
      %v663 = vunpack.c.h.b16 %v190
      %v664 = vunpack.c.l.b16 %v191
      %v665 = vunpack.c.h.b16 %v191
      %v666 = vunpack.c.l.b16 %v192
      %v667 = vunpack.c.h.b16 %v192
      %v668 = vunpack.c.l.b16 %v193
      %v669 = vunpack.c.h.b16 %v193
      %v670 = vunpack.c.l.b16 %v194
      %v671 = vunpack.c.l.b16 %v195
      %v672 = vunpack.c.h.b16 %v195
      %v673 = vunpack.c.l.b16 %v196
      %v674 = vunpack.c.h.b16 %v196
      %v675 = vunpack.c.l.b16 %v197
      %v676 = vunpack.c.h.b16 %v197
      %v677 = vunpack.c.l.b16 %v198
      %v678 = vunpack.c.h.b16 %v198
      %v679 = vunpack.c.l.b16 %v199
      %v680 = vunpack.c.l.b16 %v200
      %v681 = vunpack.c.h.b16 %v200
      %v682 = vunpack.c.l.b16 %v201
      %v683 = vunpack.c.h.b16 %v201
      %v684 = vunpack.c.l.b16 %v202
      %v685 = vunpack.c.h.b16 %v202
      %v686 = vunpack.c.l.b16 %v203
      %v687 = vunpack.c.h.b16 %v203
      %v688 = vunpack.c.l.b16 %v204
      %v689 = vunpack.c.l.b16 %v205
      %v690 = vunpack.c.h.b16 %v205
      %v691 = vunpack.c.l.b16 %v206
      %v692 = vunpack.c.h.b16 %v206
      %v693 = vunpack.c.l.b16 %v207
      %v694 = vunpack.c.h.b16 %v207
      %v695 = vunpack.c.l.b16 %v208
      %v696 = vunpack.c.h.b16 %v208
      %v697 = vunpack.c.l.b16 %v209
      %v698 = vunpack.c.l.b16 %v210
      %v699 = vunpack.c.h.b16 %v210
      %v700 = vunpack.c.l.b16 %v211
      %v701 = vunpack.c.h.b16 %v211
      %v702 = vunpack.c.l.b16 %v212
      %v703 = vunpack.c.h.b16 %v212
      %v704 = vunpack.c.l.b16 %v213
      %v705 = vunpack.c.h.b16 %v213
      %v706 = vunpack.c.l.b16 %v214
      %v707 = vunpack.c.l.b16 %v215
      %v708 = vunpack.c.h.b16 %v215
      %v709 = vunpack.c.l.b16 %v216
      %v710 = vunpack.c.h.b16 %v216
      %v711 = vunpack.c.l.b16 %v217
      %v712 = vunpack.c.h.b16 %v217
      %v713 = vunpack.c.l.b16 %v218
      %v714 = vunpack.c.h.b16 %v218
      %v715 = vunpack.c.l.b16 %v219
      %v716 = vunpack.c.l.b16 %v220
      %v717 = vunpack.c.h.b16 %v220
      %v718 = vunpack.c.l.b16 %v221
      %v719 = vunpack.c.h.b16 %v221
      %v720 = vunpack.c.l.b16 %v222
      %v721 = vunpack.c.h.b16 %v222
      %v722 = vunpack.c.l.b16 %v223
      %v723 = vunpack.c.h.b16 %v223
      %v724 = vunpack.c.l.b16 %v224
      %v725 = vunpack.c.l.b16 %v225
      %v726 = vunpack.c.h.b16 %v225
      %v727 = vunpack.c.l.b16 %v226
      %v728 = vunpack.c.h.b16 %v226
      %v729 = vunpack.c.l.b16 %v227
      %v730 = vunpack.c.h.b16 %v227
      %v731 = vunpack.c.l.b16 %v228
      %v732 = vunpack.c.h.b16 %v228
      %v733 = vunpack.c.l.b16 %v229
      %v734 = vunpack.c.l.b16 %v230
      %v735 = vunpack.c.h.b16 %v230
      %v736 = vunpack.c.l.b16 %v231
      %v737 = vunpack.c.h.b16 %v231
      %v738 = vunpack.c.l.b16 %v232
      %v739 = vunpack.c.h.b16 %v232
      %v740 = vunpack.c.l.b16 %v233
      %v741 = vunpack.c.h.b16 %v233
      %v742 = vunpack.c.l.b16 %v234
      %v743 = vunpack.c.l.b16 %v235
      %v744 = vunpack.c.h.b16 %v235
      %v745 = vunpack.c.l.b16 %v236
      %v746 = vunpack.c.h.b16 %v236
      %v747 = vunpack.c.l.b16 %v237
      %v748 = vunpack.c.h.b16 %v237
      %v749 = vunpack.c.l.b16 %v238
      %v750 = vunpack.c.h.b16 %v238
      %v751 = vunpack.c.l.b16 %v239
      %v752 = vunpack.c.l.b16 %v240
      %v753 = vunpack.c.h.b16 %v240
      %v754 = vunpack.c.l.b16 %v241
      %v755 = vunpack.c.h.b16 %v241
      %v756 = vunpack.c.l.b16 %v242
      %v757 = vunpack.c.h.b16 %v242
      %v758 = vunpack.c.l.b16 %v243
      %v759 = vunpack.c.h.b16 %v243
      %v760 = vunpack.c.l.b16 %v244
      %v761 = vunpack.c.l.b16 %v245
      %v762 = vunpack.c.h.b16 %v245
      %v763 = vunpack.c.l.b16 %v246
      %v764 = vunpack.c.h.b16 %v246
      %v765 = vunpack.c.l.b16 %v247
      %v766 = vunpack.c.h.b16 %v247
      %v767 = vunpack.c.l.b16 %v248
      %v768 = vunpack.c.h.b16 %v248
      %v769 = vunpack.c.l.b16 %v249
      %v770 = vunpack.c.l.b16 %v250
      %v771 = vunpack.c.h.b16 %v250
      %v772 = vunpack.c.l.b16 %v251
      %v773 = vunpack.c.h.b16 %v251
      %v774 = vunpack.c.l.b16 %v252
      %v775 = vunpack.c.h.b16 %v252
      %v776 = vunpack.c.l.b16 %v253
      %v777 = vunpack.c.h.b16 %v253
      %v778 = vunpack.c.l.b16 %v254
      %v779 = vunpack.c.l.b16 %v255
      %v780 = vunpack.c.h.b16 %v255
      %v781 = vunpack.c.l.b16 %v256
      %v782 = vunpack.c.h.b16 %v256
      %v783 = vunpack.c.l.b16 %v257
      %v784 = vunpack.c.h.b16 %v257
      %v785 = vunpack.c.l.b16 %v258
      %v786 = vunpack.c.h.b16 %v258
      %v787 = vunpack.c.l.b16 %v259
      %v788 = vunpack.c.l.b16 %v260
      %v789 = vunpack.c.h.b16 %v260
      %v790 = vunpack.c.l.b16 %v261
      %v791 = vunpack.c.h.b16 %v261
      %v792 = vunpack.c.l.b16 %v262
      %v793 = vunpack.c.h.b16 %v262
      %v794 = vunpack.c.l.b16 %v263
      %v795 = vunpack.c.h.b16 %v263
      %v796 = vunpack.c.l.b16 %v264
      %v797 = vunpack.c.l.b16 %v265
      %v798 = vunpack.c.h.b16 %v265
      %v799 = vunpack.c.l.b16 %v266
      %v800 = vunpack.c.h.b16 %v266
      %v801 = vunpack.c.l.b16 %v267
      %v802 = vunpack.c.h.b16 %v267
      %v803 = vunpack.c.l.b16 %v268
      %v804 = vunpack.c.h.b16 %v268
      %v805 = vunpack.c.l.b16 %v269
      %v806 = vunpack.c.l.b16 %v270
      %v807 = vunpack.c.h.b16 %v270
      %v808 = vunpack.c.l.b16 %v271
      %v809 = vunpack.c.h.b16 %v271
      %v810 = vunpack.c.l.b16 %v272
      %v811 = vunpack.c.h.b16 %v272
      %v812 = vunpack.c.l.b16 %v273
      %v813 = vunpack.c.h.b16 %v273
      %v814 = vunpack.c.l.b16 %v274
      %v815 = vunpack.c.l.b16 %v275
      %v816 = vunpack.c.h.b16 %v275
      %v817 = vunpack.c.l.b16 %v276
      %v818 = vunpack.c.h.b16 %v276
      %v819 = vunpack.c.l.b16 %v277
      %v820 = vunpack.c.h.b16 %v277
      %v821 = vunpack.c.l.b16 %v278
      %v822 = vunpack.c.h.b16 %v278
      %v823 = vunpack.c.l.b16 %v279
      %v824 = vunpack.c.l.b16 %v280
      %v825 = vunpack.c.h.b16 %v280
      %v826 = vunpack.c.l.b16 %v281
      %v827 = vunpack.c.h.b16 %v281
      %v828 = vunpack.c.l.b16 %v282
      %v829 = vunpack.c.h.b16 %v282
      %v830 = vunpack.c.l.b16 %v283
      %v831 = vunpack.c.h.b16 %v283
      %v832 = vunpack.c.l.b16 %v284
      %v833 = vunpack.c.l.b16 %v285
      %v834 = vunpack.c.h.b16 %v285
      %v835 = vunpack.c.l.b16 %v286
      %v836 = vunpack.c.h.b16 %v286
      %v837 = vunpack.c.l.b16 %v287
      %v838 = vunpack.c.h.b16 %v287
      %v839 = vunpack.c.l.b16 %v288
      %v840 = vunpack.c.h.b16 %v288
      %v841 = vunpack.c.l.b16 %v289
      %v842 = vunpack.c.l.b16 %v290
      %v843 = vunpack.c.h.b16 %v290
      %v844 = vunpack.c.l.b16 %v291
      %v845 = vunpack.c.h.b16 %v291
      %v846 = vunpack.c.l.b16 %v292
      %v847 = vunpack.c.h.b16 %v292
      %v848 = vunpack.c.l.b16 %v293
      %v849 = vunpack.c.h.b16 %v293
      %v850 = vunpack.c.l.b16 %v294
      %v851 = vunpack.c.l.b16 %v295
      %v852 = vunpack.c.h.b16 %v295
      %v853 = vunpack.c.l.b16 %v296
      %v854 = vunpack.c.h.b16 %v296
      %v855 = vunpack.c.l.b16 %v297
      %v856 = vunpack.c.h.b16 %v297
      %v857 = vunpack.c.l.b16 %v298
      %v858 = vunpack.c.h.b16 %v298
      %v859 = vunpack.c.l.b16 %v299
      %v860 = vunpack.c.l.b16 %v300
      %v861 = vunpack.c.h.b16 %v300
      %v862 = vunpack.c.l.b16 %v301
      %v863 = vunpack.c.h.b16 %v301
      %v864 = vunpack.c.l.b16 %v302
      %v865 = vunpack.c.h.b16 %v302
      %v866 = vunpack.c.l.b16 %v303
      %v867 = vunpack.c.h.b16 %v303
      %v868 = vunpack.c.l.b16 %v304
      %v869 = vunpack.c.l.b16 %v305
      %v870 = vunpack.c.h.b16 %v305
      %v871 = vunpack.c.l.b16 %v306
      %v872 = vunpack.c.h.b16 %v306
      %v873 = vunpack.c.l.b16 %v307
      %v874 = vunpack.c.h.b16 %v307
      %v875 = vunpack.c.l.b16 %v308
      %v876 = vunpack.c.h.b16 %v308
      %v877 = vunpack.c.l.b16 %v309
      %v878 = vunpack.c.l.b16 %v310
      %v879 = vunpack.c.h.b16 %v310
      %v880 = vunpack.c.l.b16 %v311
      %v881 = vunpack.c.h.b16 %v311
      %v882 = vunpack.c.l.b16 %v312
      %v883 = vunpack.c.h.b16 %v312
      %v884 = vunpack.c.l.b16 %v313
      %v885 = vunpack.c.h.b16 %v313
      %v886 = vunpack.c.l.b16 %v314
      %v887 = vunpack.c.l.b16 %v315
      %v888 = vunpack.c.h.b16 %v315
      %v889 = vunpack.c.l.b16 %v316
      %v890 = vunpack.c.h.b16 %v316
      %v891 = vunpack.c.l.b16 %v317
      %v892 = vunpack.c.h.b16 %v317
      %v893 = vunpack.c.l.b16 %v318
      %v894 = vunpack.c.h.b16 %v318
      %v895 = vunpack.c.l.b16 %v319
      %v896 = vunpack.c.l.b16 %v320
      %v897 = vunpack.c.h.b16 %v320
      %v898 = vunpack.c.l.b16 %v321
      %v899 = vunpack.c.h.b16 %v321
      %v900 = vunpack.c.l.b16 %v322
      %v901 = vunpack.c.h.b16 %v322
      %v902 = vunpack.c.l.b16 %v323
      %v903 = vunpack.c.h.b16 %v323
      %v904 = vunpack.c.l.b16 %v324
      %v905 = vunpack.c.l.b16 %v325
      %v906 = vunpack.c.h.b16 %v325
      %v907 = vunpack.c.l.b16 %v326
      %v908 = vunpack.c.h.b16 %v326
      %v909 = vunpack.c.l.b16 %v327
      %v910 = vunpack.c.h.b16 %v327
      %v911 = vunpack.c.l.b16 %v328
      %v912 = vunpack.c.h.b16 %v328
      %v913 = vunpack.c.l.b16 %v329
      %v914 = vunpack.c.l.b16 %v330
      %v915 = vunpack.c.h.b16 %v330
      %v916 = vunpack.c.l.b16 %v331
      %v917 = vunpack.c.h.b16 %v331
      %v918 = vunpack.c.l.b16 %v332
      %v919 = vunpack.c.h.b16 %v332
      %v920 = vunpack.c.l.b16 %v333
      %v921 = vunpack.c.h.b16 %v333
      %v922 = vunpack.c.l.b16 %v334
      %v923 = vunpack.c.l.b16 %v335
      %v924 = vunpack.c.h.b16 %v335
      %v925 = vunpack.c.l.b16 %v336
      %v926 = vunpack.c.h.b16 %v336
      %v927 = vunpack.c.l.b16 %v337
      %v928 = vunpack.c.h.b16 %v337
      %v929 = vunpack.c.l.b16 %v338
      %v930 = vunpack.c.h.b16 %v338
      %v931 = vunpack.c.l.b16 %v339
      %v932 = vpack.c.b16 %v653, %v644
      %v933 = vpack.c.b16 %v654, %v645
      %v934 = vpack.c.b16 %v655, %v646
      %v935 = vpack.c.b16 %v656, %v647
      %v936 = vpack.c.b16 %v657, %v648
      %v937 = vpack.c.b16 %v658, %v649
      %v938 = vpack.c.b16 %v659, %v650
      %v939 = vpack.c.b16 %v660, %v651
      %v940 = vpack.c.b16 %v661, %v652
      %v941 = vpack.c.b16 %v671, %v662
      %v942 = vpack.c.b16 %v672, %v663
      %v943 = vpack.c.b16 %v673, %v664
      %v944 = vpack.c.b16 %v674, %v665
      %v945 = vpack.c.b16 %v675, %v666
      %v946 = vpack.c.b16 %v676, %v667
      %v947 = vpack.c.b16 %v677, %v668
      %v948 = vpack.c.b16 %v678, %v669
      %v949 = vpack.c.b16 %v679, %v670
      %v950 = vpack.c.b16 %v689, %v680
      %v951 = vpack.c.b16 %v690, %v681
      %v952 = vpack.c.b16 %v691, %v682
      %v953 = vpack.c.b16 %v692, %v683
      %v954 = vpack.c.b16 %v693, %v684
      %v955 = vpack.c.b16 %v694, %v685
      %v956 = vpack.c.b16 %v695, %v686
      %v957 = vpack.c.b16 %v696, %v687
      %v958 = vpack.c.b16 %v697, %v688
      %v959 = vpack.c.b16 %v707, %v698
      %v960 = vpack.c.b16 %v708, %v699
      %v961 = vpack.c.b16 %v709, %v700
      %v962 = vpack.c.b16 %v710, %v701
      %v963 = vpack.c.b16 %v711, %v702
      %v964 = vpack.c.b16 %v712, %v703
      %v965 = vpack.c.b16 %v713, %v704
      %v966 = vpack.c.b16 %v714, %v705
      %v967 = vpack.c.b16 %v715, %v706
      %v968 = vpack.c.b16 %v725, %v716
      %v969 = vpack.c.b16 %v726, %v717
      %v970 = vpack.c.b16 %v727, %v718
      %v971 = vpack.c.b16 %v728, %v719
      %v972 = vpack.c.b16 %v729, %v720
      %v973 = vpack.c.b16 %v730, %v721
      %v974 = vpack.c.b16 %v731, %v722
      %v975 = vpack.c.b16 %v732, %v723
      %v976 = vpack.c.b16 %v733, %v724
      %v977 = vpack.c.b16 %v743, %v734
      %v978 = vpack.c.b16 %v744, %v735
      %v979 = vpack.c.b16 %v745, %v736
      %v980 = vpack.c.b16 %v746, %v737
      %v981 = vpack.c.b16 %v747, %v738
      %v982 = vpack.c.b16 %v748, %v739
      %v983 = vpack.c.b16 %v749, %v740
      %v984 = vpack.c.b16 %v750, %v741
      %v985 = vpack.c.b16 %v751, %v742
      %v986 = vpack.c.b16 %v761, %v752
      %v987 = vpack.c.b16 %v762, %v753
      %v988 = vpack.c.b16 %v763, %v754
      %v989 = vpack.c.b16 %v764, %v755
      %v990 = vpack.c.b16 %v765, %v756
      %v991 = vpack.c.b16 %v766, %v757
      %v992 = vpack.c.b16 %v767, %v758
      %v993 = vpack.c.b16 %v768, %v759
      %v994 = vpack.c.b16 %v769, %v760
      %v995 = vpack.c.b16 %v779, %v770
      %v996 = vpack.c.b16 %v780, %v771
      %v997 = vpack.c.b16 %v781, %v772
      %v998 = vpack.c.b16 %v782, %v773
      %v999 = vpack.c.b16 %v783, %v774
      %v1000 = vpack.c.b16 %v784, %v775
      %v1001 = vpack.c.b16 %v785, %v776
      %v1002 = vpack.c.b16 %v786, %v777
      %v1003 = vpack.c.b16 %v787, %v778
      %v1004 = vpack.c.b16 %v797, %v788
      %v1005 = vpack.c.b16 %v798, %v789
      %v1006 = vpack.c.b16 %v799, %v790
      %v1007 = vpack.c.b16 %v800, %v791
      %v1008 = vpack.c.b16 %v801, %v792
      %v1009 = vpack.c.b16 %v802, %v793
      %v1010 = vpack.c.b16 %v803, %v794
      %v1011 = vpack.c.b16 %v804, %v795
      %v1012 = vpack.c.b16 %v805, %v796
      %v1013 = vpack.c.b16 %v815, %v806
      %v1014 = vpack.c.b16 %v816, %v807
      %v1015 = vpack.c.b16 %v817, %v808
      %v1016 = vpack.c.b16 %v818, %v809
      %v1017 = vpack.c.b16 %v819, %v810
      %v1018 = vpack.c.b16 %v820, %v811
      %v1019 = vpack.c.b16 %v821, %v812
      %v1020 = vpack.c.b16 %v822, %v813
      %v1021 = vpack.c.b16 %v823, %v814
      %v1022 = vpack.c.b16 %v833, %v824
      %v1023 = vpack.c.b16 %v834, %v825
      %v1024 = vpack.c.b16 %v835, %v826
      %v1025 = vpack.c.b16 %v836, %v827
      %v1026 = vpack.c.b16 %v837, %v828
      %v1027 = vpack.c.b16 %v838, %v829
      %v1028 = vpack.c.b16 %v839, %v830
      %v1029 = vpack.c.b16 %v840, %v831
      %v1030 = vpack.c.b16 %v841, %v832
      %v1031 = vpack.c.b16 %v851, %v842
      %v1032 = vpack.c.b16 %v852, %v843
      %v1033 = vpack.c.b16 %v853, %v844
      %v1034 = vpack.c.b16 %v854, %v845
      %v1035 = vpack.c.b16 %v855, %v846
      %v1036 = vpack.c.b16 %v856, %v847
      %v1037 = vpack.c.b16 %v857, %v848
      %v1038 = vpack.c.b16 %v858, %v849
      %v1039 = vpack.c.b16 %v859, %v850
      %v1040 = vpack.c.b16 %v869, %v860
      %v1041 = vpack.c.b16 %v870, %v861
      %v1042 = vpack.c.b16 %v871, %v862
      %v1043 = vpack.c.b16 %v872, %v863
      %v1044 = vpack.c.b16 %v873, %v864
      %v1045 = vpack.c.b16 %v874, %v865
      %v1046 = vpack.c.b16 %v875, %v866
      %v1047 = vpack.c.b16 %v876, %v867
      %v1048 = vpack.c.b16 %v877, %v868
      %v1049 = vpack.c.b16 %v887, %v878
      %v1050 = vpack.c.b16 %v888, %v879
      %v1051 = vpack.c.b16 %v889, %v880
      %v1052 = vpack.c.b16 %v890, %v881
      %v1053 = vpack.c.b16 %v891, %v882
      %v1054 = vpack.c.b16 %v892, %v883
      %v1055 = vpack.c.b16 %v893, %v884
      %v1056 = vpack.c.b16 %v894, %v885
      %v1057 = vpack.c.b16 %v895, %v886
      %v1058 = vpack.c.b16 %v905, %v896
      %v1059 = vpack.c.b16 %v906, %v897
      %v1060 = vpack.c.b16 %v907, %v898
      %v1061 = vpack.c.b16 %v908, %v899
      %v1062 = vpack.c.b16 %v909, %v900
      %v1063 = vpack.c.b16 %v910, %v901
      %v1064 = vpack.c.b16 %v911, %v902
      %v1065 = vpack.c.b16 %v912, %v903
      %v1066 = vpack.c.b16 %v913, %v904
      %v1067 = vpack.c.b16 %v923, %v914
      %v1068 = vpack.c.b16 %v924, %v915
      %v1069 = vpack.c.b16 %v925, %v916
      %v1070 = vpack.c.b16 %v926, %v917
      %v1071 = vpack.c.b16 %v927, %v918
      %v1072 = vpack.c.b16 %v928, %v919
      %v1073 = vpack.c.b16 %v929, %v920
      %v1074 = vpack.c.b16 %v930, %v921
      %v1075 = vpack.c.b16 %v931, %v922
      %v1364 = vunpack.c.l.b16 %v340
      %v1365 = vunpack.c.l.b16 %v341
      %v1366 = vunpack.c.l.b16 %v342
      %v1367 = vunpack.c.l.b16 %v343
      %v1368 = vunpack.c.l.b16 %v344
      %v1369 = vunpack.c.l.b16 %v345
      %v1370 = vunpack.c.l.b16 %v346
      %v1371 = vunpack.c.l.b16 %v347
      %v1372 = vunpack.c.l.b16 %v348
      %v1373 = vunpack.c.l.b16 %v349
      %v1374 = vunpack.c.l.b16 %v350
      %v1375 = vunpack.c.l.b16 %v351
      %v1376 = vunpack.c.l.b16 %v352
      %v1377 = vunpack.c.l.b16 %v353
      %v1378 = vunpack.c.l.b16 %v354
      %v1379 = vunpack.c.l.b16 %v355
      %v1380 = vunpack.c.l.b16 %v356
      %v1381 = vunpack.c.l.b16 %v357
      %v1382 = vunpack.c.l.b16 %v358
      %v1383 = vunpack.c.l.b16 %v359
      %v1384 = vunpack.c.l.b16 %v360
      %v1385 = vunpack.c.l.b16 %v361
      %v1386 = vunpack.c.l.b16 %v362
      %v1387 = vunpack.c.l.b16 %v363
      %v1388 = vunpack.c.l.b16 %v364
      %v1389 = vunpack.c.l.b16 %v365
      %v1390 = vunpack.c.l.b16 %v366
      %v1391 = vunpack.c.l.b16 %v367
      %v1392 = vunpack.c.l.b16 %v368
      %v1393 = vunpack.c.l.b16 %v369
      %v1394 = vunpack.c.l.b16 %v370
      %v1395 = vunpack.c.l.b16 %v371
      %v1396 = vunpack.c.l.b16 %v372
      %v1397 = vunpack.c.l.b16 %v373
      %v1398 = vunpack.c.l.b16 %v374
      %v1399 = vunpack.c.l.b16 %v375
      %v1400 = vunpack.c.l.b16 %v376
      %v1401 = vunpack.c.l.b16 %v377
      %v1402 = vunpack.c.l.b16 %v378
      %v1403 = vunpack.c.l.b16 %v379
      %v1404 = vunpack.c.l.b16 %v380
      %v1405 = vunpack.c.l.b16 %v381
      %v1406 = vunpack.c.l.b16 %v382
      %v1407 = vunpack.c.l.b16 %v383
      %v1408 = vunpack.c.l.b16 %v384
      %v1409 = vunpack.c.l.b16 %v385
      %v1410 = vunpack.c.l.b16 %v386
      %v1411 = vunpack.c.l.b16 %v387
      %v1412 = vunpack.c.l.b16 %v388
      %v1413 = vunpack.c.l.b16 %v389
      %v1414 = vunpack.c.l.b16 %v390
      %v1415 = vunpack.c.l.b16 %v391
      %v1416 = vunpack.c.l.b16 %v392
      %v1417 = vunpack.c.l.b16 %v393
      %v1418 = vunpack.c.l.b16 %v394
      %v1419 = vunpack.c.l.b16 %v395
      %v1420 = vunpack.c.l.b16 %v396
      %v1421 = vunpack.c.l.b16 %v397
      %v1422 = vunpack.c.l.b16 %v398
      %v1423 = vunpack.c.l.b16 %v399
      %v1424 = vunpack.c.l.b16 %v400
      %v1425 = vunpack.c.l.b16 %v401
      %v1426 = vunpack.c.l.b16 %v402
      %v1427 = vunpack.c.l.b16 %v403
      %v1428 = vunpack.c.l.b16 %v404
      %v1429 = vunpack.c.l.b16 %v405
      %v1430 = vunpack.c.l.b16 %v406
      %v1431 = vunpack.c.l.b16 %v407
      %v1432 = vunpack.c.l.b16 %v408
      %v1433 = vunpack.c.l.b16 %v409
      %v1434 = vunpack.c.l.b16 %v410
      %v1435 = vunpack.c.l.b16 %v411
      %v1436 = vunpack.c.l.b16 %v412
      %v1437 = vunpack.c.l.b16 %v413
      %v1438 = vunpack.c.l.b16 %v414
      %v1439 = vunpack.c.l.b16 %v415
      %v1440 = vunpack.c.l.b16 %v416
      %v1441 = vunpack.c.l.b16 %v417
      %v1442 = vunpack.c.l.b16 %v418
      %v1443 = vunpack.c.l.b16 %v419
      %v1444 = vunpack.c.l.b16 %v420
      %v1445 = vunpack.c.l.b16 %v421
      %v1446 = vunpack.c.l.b16 %v422
      %v1447 = vunpack.c.l.b16 %v423
      %v1448 = vunpack.c.l.b16 %v424
      %v1449 = vunpack.c.l.b16 %v425
      %v1450 = vunpack.c.l.b16 %v426
      %v1451 = vunpack.c.l.b16 %v427
      %v1452 = vunpack.c.l.b16 %v428
      %v1453 = vunpack.c.l.b16 %v429
      %v1454 = vunpack.c.l.b16 %v430
      %v1455 = vunpack.c.l.b16 %v431
      %v1456 = vunpack.c.l.b16 %v432
      %v1457 = vunpack.c.l.b16 %v433
      %v1458 = vunpack.c.l.b16 %v434
      %v1459 = vunpack.c.l.b16 %v435
      %v1460 = vunpack.c.l.b16 %v436
      %v1461 = vunpack.c.l.b16 %v437
      %v1462 = vunpack.c.l.b16 %v438
      %v1463 = vunpack.c.l.b16 %v439
      %v1464 = vunpack.c.l.b16 %v440
      %v1465 = vunpack.c.l.b16 %v441
      %v1466 = vunpack.c.l.b16 %v442
      %v1467 = vunpack.c.l.b16 %v443
      %v1468 = vunpack.c.l.b16 %v444
      %v1469 = vunpack.c.l.b16 %v445
      %v1470 = vunpack.c.l.b16 %v446
      %v1471 = vunpack.c.l.b16 %v447
      %v1472 = vunpack.c.l.b16 %v448
      %v1473 = vunpack.c.l.b16 %v449
      %v1474 = vunpack.c.l.b16 %v450
      %v1475 = vunpack.c.l.b16 %v451
      %v1476 = vunpack.c.l.b16 %v452
      %v1477 = vunpack.c.l.b16 %v453
      %v1478 = vunpack.c.l.b16 %v454
      %v1479 = vunpack.c.l.b16 %v455
      %v1480 = vunpack.c.l.b16 %v456
      %v1481 = vunpack.c.l.b16 %v457
      %v1482 = vunpack.c.l.b16 %v458
      %v1483 = vunpack.c.l.b16 %v459
      %v1484 = vunpack.c.l.b16 %v460
      %v1485 = vunpack.c.l.b16 %v461
      %v1486 = vunpack.c.l.b16 %v462
      %v1487 = vunpack.c.l.b16 %v463
      %v1488 = vunpack.c.l.b16 %v464
      %v1489 = vunpack.c.l.b16 %v465
      %v1490 = vunpack.c.l.b16 %v466
      %v1491 = vunpack.c.l.b16 %v467
      %v1492 = vunpack.c.l.b16 %v468
      %v1493 = vunpack.c.l.b16 %v469
      %v1494 = vunpack.c.l.b16 %v470
      %v1495 = vunpack.c.l.b16 %v471
      %v1496 = vunpack.c.l.b16 %v472
      %v1497 = vunpack.c.l.b16 %v473
      %v1498 = vunpack.c.l.b16 %v474
      %v1499 = vunpack.c.l.b16 %v475
      %v1500 = vunpack.c.l.b16 %v476
      %v1501 = vunpack.c.l.b16 %v477
      %v1502 = vunpack.c.l.b16 %v478
      %v1503 = vunpack.c.l.b16 %v479
      %v1504 = vunpack.c.l.b16 %v480
      %v1505 = vunpack.c.l.b16 %v481
      %v1506 = vunpack.c.l.b16 %v482
      %v1507 = vunpack.c.l.b16 %v483
      %v1508 = vpack.c.b16 %v1365, %v1364
      %v1509 = vpack.c.b16 %v1367, %v1366
      %v1510 = vpack.c.b16 %v1369, %v1368
      %v1511 = vpack.c.b16 %v1371, %v1370
      %v1512 = vpack.c.b16 %v1373, %v1372
      %v1513 = vpack.c.b16 %v1375, %v1374
      %v1514 = vpack.c.b16 %v1377, %v1376
      %v1515 = vpack.c.b16 %v1379, %v1378
      %v1516 = vpack.c.b16 %v1381, %v1380
      %v1517 = vpack.c.b16 %v1383, %v1382
      %v1518 = vpack.c.b16 %v1385, %v1384
      %v1519 = vpack.c.b16 %v1387, %v1386
      %v1520 = vpack.c.b16 %v1389, %v1388
      %v1521 = vpack.c.b16 %v1391, %v1390
      %v1522 = vpack.c.b16 %v1393, %v1392
      %v1523 = vpack.c.b16 %v1395, %v1394
      %v1524 = vpack.c.b16 %v1397, %v1396
      %v1525 = vpack.c.b16 %v1399, %v1398
      %v1526 = vpack.c.b16 %v1401, %v1400
      %v1527 = vpack.c.b16 %v1403, %v1402
      %v1528 = vpack.c.b16 %v1405, %v1404
      %v1529 = vpack.c.b16 %v1407, %v1406
      %v1530 = vpack.c.b16 %v1409, %v1408
      %v1531 = vpack.c.b16 %v1411, %v1410
      %v1532 = vpack.c.b16 %v1413, %v1412
      %v1533 = vpack.c.b16 %v1415, %v1414
      %v1534 = vpack.c.b16 %v1417, %v1416
      %v1535 = vpack.c.b16 %v1419, %v1418
      %v1536 = vpack.c.b16 %v1421, %v1420
      %v1537 = vpack.c.b16 %v1423, %v1422
      %v1538 = vpack.c.b16 %v1425, %v1424
      %v1539 = vpack.c.b16 %v1427, %v1426
      %v1540 = vpack.c.b16 %v1429, %v1428
      %v1541 = vpack.c.b16 %v1431, %v1430
      %v1542 = vpack.c.b16 %v1433, %v1432
      %v1543 = vpack.c.b16 %v1435, %v1434
      %v1544 = vpack.c.b16 %v1437, %v1436
      %v1545 = vpack.c.b16 %v1439, %v1438
      %v1546 = vpack.c.b16 %v1441, %v1440
      %v1547 = vpack.c.b16 %v1443, %v1442
      %v1548 = vpack.c.b16 %v1445, %v1444
      %v1549 = vpack.c.b16 %v1447, %v1446
      %v1550 = vpack.c.b16 %v1449, %v1448
      %v1551 = vpack.c.b16 %v1451, %v1450
      %v1552 = vpack.c.b16 %v1453, %v1452
      %v1553 = vpack.c.b16 %v1455, %v1454
      %v1554 = vpack.c.b16 %v1457, %v1456
      %v1555 = vpack.c.b16 %v1459, %v1458
      %v1556 = vpack.c.b16 %v1461, %v1460
      %v1557 = vpack.c.b16 %v1463, %v1462
      %v1558 = vpack.c.b16 %v1465, %v1464
      %v1559 = vpack.c.b16 %v1467, %v1466
      %v1560 = vpack.c.b16 %v1469, %v1468
      %v1561 = vpack.c.b16 %v1471, %v1470
      %v1562 = vpack.c.b16 %v1473, %v1472
      %v1563 = vpack.c.b16 %v1475, %v1474
      %v1564 = vpack.c.b16 %v1477, %v1476
      %v1565 = vpack.c.b16 %v1479, %v1478
      %v1566 = vpack.c.b16 %v1481, %v1480
      %v1567 = vpack.c.b16 %v1483, %v1482
      %v1568 = vpack.c.b16 %v1485, %v1484
      %v1569 = vpack.c.b16 %v1487, %v1486
      %v1570 = vpack.c.b16 %v1489, %v1488
      %v1571 = vpack.c.b16 %v1491, %v1490
      %v1572 = vpack.c.b16 %v1493, %v1492
      %v1573 = vpack.c.b16 %v1495, %v1494
      %v1574 = vpack.c.b16 %v1497, %v1496
      %v1575 = vpack.c.b16 %v1499, %v1498
      %v1576 = vpack.c.b16 %v1501, %v1500
      %v1577 = vpack.c.b16 %v1503, %v1502
      %v1578 = vpack.c.b16 %v1505, %v1504
      %v1579 = vpack.c.b16 %v1507, %v1506
      %1652 = vmatpush.bf16.msra.mxu0 %v1515
      %1653 = vmatpush.bf16.msra.mxu0 %v1514
      %1654 = vmatpush.bf16.msra.mxu0 %v1513
      %1655 = vmatpush.bf16.msra.mxu0 %v1512
      %1656 = vmatpush.bf16.msra.mxu0 %v1511
      %1657 = vmatpush.bf16.msra.mxu0 %v1510
      %1658 = vmatpush.bf16.msra.mxu0 %v1509
      %1659 = vmatpush.bf16.msra.mxu0 %v1508
      %1660 = vmatmul.bf16.gmra.mxu0 %v932
      %v1661 = vpop.f32.mrf.mxu0
      %v1662 = vadd.f32 0.0, %v1661
      %v1663 = vpop.f32.mrf.mxu0
      %v1664 = vadd.f32 0.0, %v1663
      %1665 = vmatmul.bf16.gmra.mxu0 %v941
      %v1666 = vpop.f32.mrf.mxu0
      %v1667 = vadd.f32 0.0, %v1666
      %v1668 = vpop.f32.mrf.mxu0
      %v1669 = vadd.f32 0.0, %v1668
      %1670 = vmatmul.bf16.gmra.mxu0 %v950
      %v1671 = vpop.f32.mrf.mxu0
      %v1672 = vadd.f32 0.0, %v1671
      %v1673 = vpop.f32.mrf.mxu0
      %v1674 = vadd.f32 0.0, %v1673
      %1675 = vmatmul.bf16.gmra.mxu0 %v959
      %v1676 = vpop.f32.mrf.mxu0
      %v1677 = vadd.f32 0.0, %v1676
      %v1678 = vpop.f32.mrf.mxu0
      %v1679 = vadd.f32 0.0, %v1678
      %1680 = vmatmul.bf16.gmra.mxu0 %v968
      %v1681 = vpop.f32.mrf.mxu0
      %v1682 = vadd.f32 0.0, %v1681
      %v1683 = vpop.f32.mrf.mxu0
      %v1684 = vadd.f32 0.0, %v1683
      %1685 = vmatmul.bf16.gmra.mxu0 %v977
      %v1686 = vpop.f32.mrf.mxu0
      %v1687 = vadd.f32 0.0, %v1686
      %v1688 = vpop.f32.mrf.mxu0
      %v1689 = vadd.f32 0.0, %v1688
      %1690 = vmatmul.bf16.gmra.mxu0 %v986
      %v1691 = vpop.f32.mrf.mxu0
      %v1692 = vadd.f32 0.0, %v1691
      %v1693 = vpop.f32.mrf.mxu0
      %v1694 = vadd.f32 0.0, %v1693
      %1695 = vmatmul.bf16.gmra.mxu0 %v995
      %v1696 = vpop.f32.mrf.mxu0
      %v1697 = vadd.f32 0.0, %v1696
      %v1698 = vpop.f32.mrf.mxu0
      %v1699 = vadd.f32 0.0, %v1698
      %1700 = vmatmul.bf16.gmra.mxu0 %v1004
      %v1701 = vpop.f32.mrf.mxu0
      %v1702 = vadd.f32 0.0, %v1701
      %v1703 = vpop.f32.mrf.mxu0
      %v1704 = vadd.f32 0.0, %v1703
      %1705 = vmatmul.bf16.gmra.mxu0 %v1013
      %v1706 = vpop.f32.mrf.mxu0
      %v1707 = vadd.f32 0.0, %v1706
      %v1708 = vpop.f32.mrf.mxu0
      %v1709 = vadd.f32 0.0, %v1708
      %1710 = vmatmul.bf16.gmra.mxu0 %v1022
      %v1711 = vpop.f32.mrf.mxu0
      %v1712 = vadd.f32 0.0, %v1711
      %v1713 = vpop.f32.mrf.mxu0
      %v1714 = vadd.f32 0.0, %v1713
      %1715 = vmatmul.bf16.gmra.mxu0 %v1031
      %v1716 = vpop.f32.mrf.mxu0
      %v1717 = vadd.f32 0.0, %v1716
      %v1718 = vpop.f32.mrf.mxu0
      %v1719 = vadd.f32 0.0, %v1718
      %1720 = vmatmul.bf16.gmra.mxu0 %v1040
      %v1721 = vpop.f32.mrf.mxu0
      %v1722 = vadd.f32 0.0, %v1721
      %v1723 = vpop.f32.mrf.mxu0
      %v1724 = vadd.f32 0.0, %v1723
      %1725 = vmatmul.bf16.gmra.mxu0 %v1049
      %v1726 = vpop.f32.mrf.mxu0
      %v1727 = vadd.f32 0.0, %v1726
      %v1728 = vpop.f32.mrf.mxu0
      %v1729 = vadd.f32 0.0, %v1728
      %1730 = vmatmul.bf16.gmra.mxu0 %v1058
      %v1731 = vpop.f32.mrf.mxu0
      %v1732 = vadd.f32 0.0, %v1731
      %v1733 = vpop.f32.mrf.mxu0
      %v1734 = vadd.f32 0.0, %v1733
      %1735 = vmatmul.bf16.gmra.mxu0 %v1067
      %v1736 = vpop.f32.mrf.mxu0
      %v1737 = vadd.f32 0.0, %v1736
      %v1738 = vpop.f32.mrf.mxu0
      %v1739 = vadd.f32 0.0, %v1738
      %1740 = vdwg.mxu0
      %1741 = vmatpush.bf16.msra.mxu0 %v1523
      %1742 = vmatpush.bf16.msra.mxu0 %v1522
      %1743 = vmatpush.bf16.msra.mxu0 %v1521
      %1744 = vmatpush.bf16.msra.mxu0 %v1520
      %1745 = vmatpush.bf16.msra.mxu0 %v1519
      %1746 = vmatpush.bf16.msra.mxu0 %v1518
      %1747 = vmatpush.bf16.msra.mxu0 %v1517
      %1748 = vmatpush.bf16.msra.mxu0 %v1516
      %1749 = vmatmul.bf16.gmra.mxu0 %v933
      %v1750 = vpop.f32.mrf.mxu0
      %v1751 = vadd.f32 %v1662, %v1750
      %v1752 = vpop.f32.mrf.mxu0
      %v1753 = vadd.f32 %v1664, %v1752
      %1754 = vmatmul.bf16.gmra.mxu0 %v942
      %v1755 = vpop.f32.mrf.mxu0
      %v1756 = vadd.f32 %v1667, %v1755
      %v1757 = vpop.f32.mrf.mxu0
      %v1758 = vadd.f32 %v1669, %v1757
      %1759 = vmatmul.bf16.gmra.mxu0 %v951
      %v1760 = vpop.f32.mrf.mxu0
      %v1761 = vadd.f32 %v1672, %v1760
      %v1762 = vpop.f32.mrf.mxu0
      %v1763 = vadd.f32 %v1674, %v1762
      %1764 = vmatmul.bf16.gmra.mxu0 %v960
      %v1765 = vpop.f32.mrf.mxu0
      %v1766 = vadd.f32 %v1677, %v1765
      %v1767 = vpop.f32.mrf.mxu0
      %v1768 = vadd.f32 %v1679, %v1767
      %1769 = vmatmul.bf16.gmra.mxu0 %v969
      %v1770 = vpop.f32.mrf.mxu0
      %v1771 = vadd.f32 %v1682, %v1770
      %v1772 = vpop.f32.mrf.mxu0
      %v1773 = vadd.f32 %v1684, %v1772
      %1774 = vmatmul.bf16.gmra.mxu0 %v978
      %v1775 = vpop.f32.mrf.mxu0
      %v1776 = vadd.f32 %v1687, %v1775
      %v1777 = vpop.f32.mrf.mxu0
      %v1778 = vadd.f32 %v1689, %v1777
      %1779 = vmatmul.bf16.gmra.mxu0 %v987
      %v1780 = vpop.f32.mrf.mxu0
      %v1781 = vadd.f32 %v1692, %v1780
      %v1782 = vpop.f32.mrf.mxu0
      %v1783 = vadd.f32 %v1694, %v1782
      %1784 = vmatmul.bf16.gmra.mxu0 %v996
      %v1785 = vpop.f32.mrf.mxu0
      %v1786 = vadd.f32 %v1697, %v1785
      %v1787 = vpop.f32.mrf.mxu0
      %v1788 = vadd.f32 %v1699, %v1787
      %1789 = vmatmul.bf16.gmra.mxu0 %v1005
      %v1790 = vpop.f32.mrf.mxu0
      %v1791 = vadd.f32 %v1702, %v1790
      %v1792 = vpop.f32.mrf.mxu0
      %v1793 = vadd.f32 %v1704, %v1792
      %1794 = vmatmul.bf16.gmra.mxu0 %v1014
      %v1795 = vpop.f32.mrf.mxu0
      %v1796 = vadd.f32 %v1707, %v1795
      %v1797 = vpop.f32.mrf.mxu0
      %v1798 = vadd.f32 %v1709, %v1797
      %1799 = vmatmul.bf16.gmra.mxu0 %v1023
      %v1800 = vpop.f32.mrf.mxu0
      %v1801 = vadd.f32 %v1712, %v1800
      %v1802 = vpop.f32.mrf.mxu0
      %v1803 = vadd.f32 %v1714, %v1802
      %1804 = vmatmul.bf16.gmra.mxu0 %v1032
      %v1805 = vpop.f32.mrf.mxu0
      %v1806 = vadd.f32 %v1717, %v1805
      %v1807 = vpop.f32.mrf.mxu0
      %v1808 = vadd.f32 %v1719, %v1807
      %1809 = vmatmul.bf16.gmra.mxu0 %v1041
      %v1810 = vpop.f32.mrf.mxu0
      %v1811 = vadd.f32 %v1722, %v1810
      %v1812 = vpop.f32.mrf.mxu0
      %v1813 = vadd.f32 %v1724, %v1812
      %1814 = vmatmul.bf16.gmra.mxu0 %v1050
      %v1815 = vpop.f32.mrf.mxu0
      %v1816 = vadd.f32 %v1727, %v1815
      %v1817 = vpop.f32.mrf.mxu0
      %v1818 = vadd.f32 %v1729, %v1817
      %1819 = vmatmul.bf16.gmra.mxu0 %v1059
      %v1820 = vpop.f32.mrf.mxu0
      %v1821 = vadd.f32 %v1732, %v1820
      %v1822 = vpop.f32.mrf.mxu0
      %v1823 = vadd.f32 %v1734, %v1822
      %1824 = vmatmul.bf16.gmra.mxu0 %v1068
      %v1825 = vpop.f32.mrf.mxu0
      %v1826 = vadd.f32 %v1737, %v1825
      %v1827 = vpop.f32.mrf.mxu0
      %v1828 = vadd.f32 %v1739, %v1827
      %1829 = vdwg.mxu0
      %1830 = vmatpush.bf16.msra.mxu0 %v1531
      %1831 = vmatpush.bf16.msra.mxu0 %v1530
      %1832 = vmatpush.bf16.msra.mxu0 %v1529
      %1833 = vmatpush.bf16.msra.mxu0 %v1528
      %1834 = vmatpush.bf16.msra.mxu0 %v1527
      %1835 = vmatpush.bf16.msra.mxu0 %v1526
      %1836 = vmatpush.bf16.msra.mxu0 %v1525
      %1837 = vmatpush.bf16.msra.mxu0 %v1524
      %1838 = vmatmul.bf16.gmra.mxu0 %v934
      %v1839 = vpop.f32.mrf.mxu0
      %v1840 = vadd.f32 %v1751, %v1839
      %v1841 = vpop.f32.mrf.mxu0
      %v1842 = vadd.f32 %v1753, %v1841
      %1843 = vmatmul.bf16.gmra.mxu0 %v943
      %v1844 = vpop.f32.mrf.mxu0
      %v1845 = vadd.f32 %v1756, %v1844
      %v1846 = vpop.f32.mrf.mxu0
      %v1847 = vadd.f32 %v1758, %v1846
      %1848 = vmatmul.bf16.gmra.mxu0 %v952
      %v1849 = vpop.f32.mrf.mxu0
      %v1850 = vadd.f32 %v1761, %v1849
      %v1851 = vpop.f32.mrf.mxu0
      %v1852 = vadd.f32 %v1763, %v1851
      %1853 = vmatmul.bf16.gmra.mxu0 %v961
      %v1854 = vpop.f32.mrf.mxu0
      %v1855 = vadd.f32 %v1766, %v1854
      %v1856 = vpop.f32.mrf.mxu0
      %v1857 = vadd.f32 %v1768, %v1856
      %1858 = vmatmul.bf16.gmra.mxu0 %v970
      %v1859 = vpop.f32.mrf.mxu0
      %v1860 = vadd.f32 %v1771, %v1859
      %v1861 = vpop.f32.mrf.mxu0
      %v1862 = vadd.f32 %v1773, %v1861
      %1863 = vmatmul.bf16.gmra.mxu0 %v979
      %v1864 = vpop.f32.mrf.mxu0
      %v1865 = vadd.f32 %v1776, %v1864
      %v1866 = vpop.f32.mrf.mxu0
      %v1867 = vadd.f32 %v1778, %v1866
      %1868 = vmatmul.bf16.gmra.mxu0 %v988
      %v1869 = vpop.f32.mrf.mxu0
      %v1870 = vadd.f32 %v1781, %v1869
      %v1871 = vpop.f32.mrf.mxu0
      %v1872 = vadd.f32 %v1783, %v1871
      %1873 = vmatmul.bf16.gmra.mxu0 %v997
      %v1874 = vpop.f32.mrf.mxu0
      %v1875 = vadd.f32 %v1786, %v1874
      %v1876 = vpop.f32.mrf.mxu0
      %v1877 = vadd.f32 %v1788, %v1876
      %1878 = vmatmul.bf16.gmra.mxu0 %v1006
      %v1879 = vpop.f32.mrf.mxu0
      %v1880 = vadd.f32 %v1791, %v1879
      %v1881 = vpop.f32.mrf.mxu0
      %v1882 = vadd.f32 %v1793, %v1881
      %1883 = vmatmul.bf16.gmra.mxu0 %v1015
      %v1884 = vpop.f32.mrf.mxu0
      %v1885 = vadd.f32 %v1796, %v1884
      %v1886 = vpop.f32.mrf.mxu0
      %v1887 = vadd.f32 %v1798, %v1886
      %1888 = vmatmul.bf16.gmra.mxu0 %v1024
      %v1889 = vpop.f32.mrf.mxu0
      %v1890 = vadd.f32 %v1801, %v1889
      %v1891 = vpop.f32.mrf.mxu0
      %v1892 = vadd.f32 %v1803, %v1891
      %1893 = vmatmul.bf16.gmra.mxu0 %v1033
      %v1894 = vpop.f32.mrf.mxu0
      %v1895 = vadd.f32 %v1806, %v1894
      %v1896 = vpop.f32.mrf.mxu0
      %v1897 = vadd.f32 %v1808, %v1896
      %1898 = vmatmul.bf16.gmra.mxu0 %v1042
      %v1899 = vpop.f32.mrf.mxu0
      %v1900 = vadd.f32 %v1811, %v1899
      %v1901 = vpop.f32.mrf.mxu0
      %v1902 = vadd.f32 %v1813, %v1901
      %1903 = vmatmul.bf16.gmra.mxu0 %v1051
      %v1904 = vpop.f32.mrf.mxu0
      %v1905 = vadd.f32 %v1816, %v1904
      %v1906 = vpop.f32.mrf.mxu0
      %v1907 = vadd.f32 %v1818, %v1906
      %1908 = vmatmul.bf16.gmra.mxu0 %v1060
      %v1909 = vpop.f32.mrf.mxu0
      %v1910 = vadd.f32 %v1821, %v1909
      %v1911 = vpop.f32.mrf.mxu0
      %v1912 = vadd.f32 %v1823, %v1911
      %1913 = vmatmul.bf16.gmra.mxu0 %v1069
      %v1914 = vpop.f32.mrf.mxu0
      %v1915 = vadd.f32 %v1826, %v1914
      %v1916 = vpop.f32.mrf.mxu0
      %v1917 = vadd.f32 %v1828, %v1916
      %1918 = vdwg.mxu0
      %1919 = vmatpush.bf16.msra.mxu0 %v1539
      %1920 = vmatpush.bf16.msra.mxu0 %v1538
      %1921 = vmatpush.bf16.msra.mxu0 %v1537
      %1922 = vmatpush.bf16.msra.mxu0 %v1536
      %1923 = vmatpush.bf16.msra.mxu0 %v1535
      %1924 = vmatpush.bf16.msra.mxu0 %v1534
      %1925 = vmatpush.bf16.msra.mxu0 %v1533
      %1926 = vmatpush.bf16.msra.mxu0 %v1532
      %1927 = vmatmul.bf16.gmra.mxu0 %v935
      %v1928 = vpop.f32.mrf.mxu0
      %v1929 = vadd.f32 %v1840, %v1928
      %v1930 = vpop.f32.mrf.mxu0
      %v1931 = vadd.f32 %v1842, %v1930
      %1932 = vmatmul.bf16.gmra.mxu0 %v944
      %v1933 = vpop.f32.mrf.mxu0
      %v1934 = vadd.f32 %v1845, %v1933
      %v1935 = vpop.f32.mrf.mxu0
      %v1936 = vadd.f32 %v1847, %v1935
      %1937 = vmatmul.bf16.gmra.mxu0 %v953
      %v1938 = vpop.f32.mrf.mxu0
      %v1939 = vadd.f32 %v1850, %v1938
      %v1940 = vpop.f32.mrf.mxu0
      %v1941 = vadd.f32 %v1852, %v1940
      %1942 = vmatmul.bf16.gmra.mxu0 %v962
      %v1943 = vpop.f32.mrf.mxu0
      %v1944 = vadd.f32 %v1855, %v1943
      %v1945 = vpop.f32.mrf.mxu0
      %v1946 = vadd.f32 %v1857, %v1945
      %1947 = vmatmul.bf16.gmra.mxu0 %v971
      %v1948 = vpop.f32.mrf.mxu0
      %v1949 = vadd.f32 %v1860, %v1948
      %v1950 = vpop.f32.mrf.mxu0
      %v1951 = vadd.f32 %v1862, %v1950
      %1952 = vmatmul.bf16.gmra.mxu0 %v980
      %v1953 = vpop.f32.mrf.mxu0
      %v1954 = vadd.f32 %v1865, %v1953
      %v1955 = vpop.f32.mrf.mxu0
      %v1956 = vadd.f32 %v1867, %v1955
      %1957 = vmatmul.bf16.gmra.mxu0 %v989
      %v1958 = vpop.f32.mrf.mxu0
      %v1959 = vadd.f32 %v1870, %v1958
      %v1960 = vpop.f32.mrf.mxu0
      %v1961 = vadd.f32 %v1872, %v1960
      %1962 = vmatmul.bf16.gmra.mxu0 %v998
      %v1963 = vpop.f32.mrf.mxu0
      %v1964 = vadd.f32 %v1875, %v1963
      %v1965 = vpop.f32.mrf.mxu0
      %v1966 = vadd.f32 %v1877, %v1965
      %1967 = vmatmul.bf16.gmra.mxu0 %v1007
      %v1968 = vpop.f32.mrf.mxu0
      %v1969 = vadd.f32 %v1880, %v1968
      %v1970 = vpop.f32.mrf.mxu0
      %v1971 = vadd.f32 %v1882, %v1970
      %1972 = vmatmul.bf16.gmra.mxu0 %v1016
      %v1973 = vpop.f32.mrf.mxu0
      %v1974 = vadd.f32 %v1885, %v1973
      %v1975 = vpop.f32.mrf.mxu0
      %v1976 = vadd.f32 %v1887, %v1975
      %1977 = vmatmul.bf16.gmra.mxu0 %v1025
      %v1978 = vpop.f32.mrf.mxu0
      %v1979 = vadd.f32 %v1890, %v1978
      %v1980 = vpop.f32.mrf.mxu0
      %v1981 = vadd.f32 %v1892, %v1980
      %1982 = vmatmul.bf16.gmra.mxu0 %v1034
      %v1983 = vpop.f32.mrf.mxu0
      %v1984 = vadd.f32 %v1895, %v1983
      %v1985 = vpop.f32.mrf.mxu0
      %v1986 = vadd.f32 %v1897, %v1985
      %1987 = vmatmul.bf16.gmra.mxu0 %v1043
      %v1988 = vpop.f32.mrf.mxu0
      %v1989 = vadd.f32 %v1900, %v1988
      %v1990 = vpop.f32.mrf.mxu0
      %v1991 = vadd.f32 %v1902, %v1990
      %1992 = vmatmul.bf16.gmra.mxu0 %v1052
      %v1993 = vpop.f32.mrf.mxu0
      %v1994 = vadd.f32 %v1905, %v1993
      %v1995 = vpop.f32.mrf.mxu0
      %v1996 = vadd.f32 %v1907, %v1995
      %1997 = vmatmul.bf16.gmra.mxu0 %v1061
      %v1998 = vpop.f32.mrf.mxu0
      %v1999 = vadd.f32 %v1910, %v1998
      %v2000 = vpop.f32.mrf.mxu0
      %v2001 = vadd.f32 %v1912, %v2000
      %2002 = vmatmul.bf16.gmra.mxu0 %v1070
      %v2003 = vpop.f32.mrf.mxu0
      %v2004 = vadd.f32 %v1915, %v2003
      %v2005 = vpop.f32.mrf.mxu0
      %v2006 = vadd.f32 %v1917, %v2005
      %2007 = vdwg.mxu0
      %2008 = vmatpush.bf16.msra.mxu0 %v1547
      %2009 = vmatpush.bf16.msra.mxu0 %v1546
      %2010 = vmatpush.bf16.msra.mxu0 %v1545
      %2011 = vmatpush.bf16.msra.mxu0 %v1544
      %2012 = vmatpush.bf16.msra.mxu0 %v1543
      %2013 = vmatpush.bf16.msra.mxu0 %v1542
      %2014 = vmatpush.bf16.msra.mxu0 %v1541
      %2015 = vmatpush.bf16.msra.mxu0 %v1540
      %2016 = vmatmul.bf16.gmra.mxu0 %v936
      %v2017 = vpop.f32.mrf.mxu0
      %v2018 = vadd.f32 %v1929, %v2017
      %v2019 = vpop.f32.mrf.mxu0
      %v2020 = vadd.f32 %v1931, %v2019
      %2021 = vmatmul.bf16.gmra.mxu0 %v945
      %v2022 = vpop.f32.mrf.mxu0
      %v2023 = vadd.f32 %v1934, %v2022
      %v2024 = vpop.f32.mrf.mxu0
      %v2025 = vadd.f32 %v1936, %v2024
      %2026 = vmatmul.bf16.gmra.mxu0 %v954
      %v2027 = vpop.f32.mrf.mxu0
      %v2028 = vadd.f32 %v1939, %v2027
      %v2029 = vpop.f32.mrf.mxu0
      %v2030 = vadd.f32 %v1941, %v2029
      %2031 = vmatmul.bf16.gmra.mxu0 %v963
      %v2032 = vpop.f32.mrf.mxu0
      %v2033 = vadd.f32 %v1944, %v2032
      %v2034 = vpop.f32.mrf.mxu0
      %v2035 = vadd.f32 %v1946, %v2034
      %2036 = vmatmul.bf16.gmra.mxu0 %v972
      %v2037 = vpop.f32.mrf.mxu0
      %v2038 = vadd.f32 %v1949, %v2037
      %v2039 = vpop.f32.mrf.mxu0
      %v2040 = vadd.f32 %v1951, %v2039
      %2041 = vmatmul.bf16.gmra.mxu0 %v981
      %v2042 = vpop.f32.mrf.mxu0
      %v2043 = vadd.f32 %v1954, %v2042
      %v2044 = vpop.f32.mrf.mxu0
      %v2045 = vadd.f32 %v1956, %v2044
      %2046 = vmatmul.bf16.gmra.mxu0 %v990
      %v2047 = vpop.f32.mrf.mxu0
      %v2048 = vadd.f32 %v1959, %v2047
      %v2049 = vpop.f32.mrf.mxu0
      %v2050 = vadd.f32 %v1961, %v2049
      %2051 = vmatmul.bf16.gmra.mxu0 %v999
      %v2052 = vpop.f32.mrf.mxu0
      %v2053 = vadd.f32 %v1964, %v2052
      %v2054 = vpop.f32.mrf.mxu0
      %v2055 = vadd.f32 %v1966, %v2054
      %2056 = vmatmul.bf16.gmra.mxu0 %v1008
      %v2057 = vpop.f32.mrf.mxu0
      %v2058 = vadd.f32 %v1969, %v2057
      %v2059 = vpop.f32.mrf.mxu0
      %v2060 = vadd.f32 %v1971, %v2059
      %2061 = vmatmul.bf16.gmra.mxu0 %v1017
      %v2062 = vpop.f32.mrf.mxu0
      %v2063 = vadd.f32 %v1974, %v2062
      %v2064 = vpop.f32.mrf.mxu0
      %v2065 = vadd.f32 %v1976, %v2064
      %2066 = vmatmul.bf16.gmra.mxu0 %v1026
      %v2067 = vpop.f32.mrf.mxu0
      %v2068 = vadd.f32 %v1979, %v2067
      %v2069 = vpop.f32.mrf.mxu0
      %v2070 = vadd.f32 %v1981, %v2069
      %2071 = vmatmul.bf16.gmra.mxu0 %v1035
      %v2072 = vpop.f32.mrf.mxu0
      %v2073 = vadd.f32 %v1984, %v2072
      %v2074 = vpop.f32.mrf.mxu0
      %v2075 = vadd.f32 %v1986, %v2074
      %2076 = vmatmul.bf16.gmra.mxu0 %v1044
      %v2077 = vpop.f32.mrf.mxu0
      %v2078 = vadd.f32 %v1989, %v2077
      %v2079 = vpop.f32.mrf.mxu0
      %v2080 = vadd.f32 %v1991, %v2079
      %2081 = vmatmul.bf16.gmra.mxu0 %v1053
      %v2082 = vpop.f32.mrf.mxu0
      %v2083 = vadd.f32 %v1994, %v2082
      %v2084 = vpop.f32.mrf.mxu0
      %v2085 = vadd.f32 %v1996, %v2084
      %2086 = vmatmul.bf16.gmra.mxu0 %v1062
      %v2087 = vpop.f32.mrf.mxu0
      %v2088 = vadd.f32 %v1999, %v2087
      %v2089 = vpop.f32.mrf.mxu0
      %v2090 = vadd.f32 %v2001, %v2089
      %2091 = vmatmul.bf16.gmra.mxu0 %v1071
      %v2092 = vpop.f32.mrf.mxu0
      %v2093 = vadd.f32 %v2004, %v2092
      %v2094 = vpop.f32.mrf.mxu0
      %v2095 = vadd.f32 %v2006, %v2094
      %2096 = vdwg.mxu0
      %2097 = vmatpush.bf16.msra.mxu0 %v1555
      %2098 = vmatpush.bf16.msra.mxu0 %v1554
      %2099 = vmatpush.bf16.msra.mxu0 %v1553
      %2100 = vmatpush.bf16.msra.mxu0 %v1552
      %2101 = vmatpush.bf16.msra.mxu0 %v1551
      %2102 = vmatpush.bf16.msra.mxu0 %v1550
      %2103 = vmatpush.bf16.msra.mxu0 %v1549
      %2104 = vmatpush.bf16.msra.mxu0 %v1548
      %2105 = vmatmul.bf16.gmra.mxu0 %v937
      %v2106 = vpop.f32.mrf.mxu0
      %v2107 = vadd.f32 %v2018, %v2106
      %v2108 = vpop.f32.mrf.mxu0
      %v2109 = vadd.f32 %v2020, %v2108
      %2110 = vmatmul.bf16.gmra.mxu0 %v946
      %v2111 = vpop.f32.mrf.mxu0
      %v2112 = vadd.f32 %v2023, %v2111
      %v2113 = vpop.f32.mrf.mxu0
      %v2114 = vadd.f32 %v2025, %v2113
      %2115 = vmatmul.bf16.gmra.mxu0 %v955
      %v2116 = vpop.f32.mrf.mxu0
      %v2117 = vadd.f32 %v2028, %v2116
      %v2118 = vpop.f32.mrf.mxu0
      %v2119 = vadd.f32 %v2030, %v2118
      %2120 = vmatmul.bf16.gmra.mxu0 %v964
      %v2121 = vpop.f32.mrf.mxu0
      %v2122 = vadd.f32 %v2033, %v2121
      %v2123 = vpop.f32.mrf.mxu0
      %v2124 = vadd.f32 %v2035, %v2123
      %2125 = vmatmul.bf16.gmra.mxu0 %v973
      %v2126 = vpop.f32.mrf.mxu0
      %v2127 = vadd.f32 %v2038, %v2126
      %v2128 = vpop.f32.mrf.mxu0
      %v2129 = vadd.f32 %v2040, %v2128
      %2130 = vmatmul.bf16.gmra.mxu0 %v982
      %v2131 = vpop.f32.mrf.mxu0
      %v2132 = vadd.f32 %v2043, %v2131
      %v2133 = vpop.f32.mrf.mxu0
      %v2134 = vadd.f32 %v2045, %v2133
      %2135 = vmatmul.bf16.gmra.mxu0 %v991
      %v2136 = vpop.f32.mrf.mxu0
      %v2137 = vadd.f32 %v2048, %v2136
      %v2138 = vpop.f32.mrf.mxu0
      %v2139 = vadd.f32 %v2050, %v2138
      %2140 = vmatmul.bf16.gmra.mxu0 %v1000
      %v2141 = vpop.f32.mrf.mxu0
      %v2142 = vadd.f32 %v2053, %v2141
      %v2143 = vpop.f32.mrf.mxu0
      %v2144 = vadd.f32 %v2055, %v2143
      %2145 = vmatmul.bf16.gmra.mxu0 %v1009
      %v2146 = vpop.f32.mrf.mxu0
      %v2147 = vadd.f32 %v2058, %v2146
      %v2148 = vpop.f32.mrf.mxu0
      %v2149 = vadd.f32 %v2060, %v2148
      %2150 = vmatmul.bf16.gmra.mxu0 %v1018
      %v2151 = vpop.f32.mrf.mxu0
      %v2152 = vadd.f32 %v2063, %v2151
      %v2153 = vpop.f32.mrf.mxu0
      %v2154 = vadd.f32 %v2065, %v2153
      %2155 = vmatmul.bf16.gmra.mxu0 %v1027
      %v2156 = vpop.f32.mrf.mxu0
      %v2157 = vadd.f32 %v2068, %v2156
      %v2158 = vpop.f32.mrf.mxu0
      %v2159 = vadd.f32 %v2070, %v2158
      %2160 = vmatmul.bf16.gmra.mxu0 %v1036
      %v2161 = vpop.f32.mrf.mxu0
      %v2162 = vadd.f32 %v2073, %v2161
      %v2163 = vpop.f32.mrf.mxu0
      %v2164 = vadd.f32 %v2075, %v2163
      %2165 = vmatmul.bf16.gmra.mxu0 %v1045
      %v2166 = vpop.f32.mrf.mxu0
      %v2167 = vadd.f32 %v2078, %v2166
      %v2168 = vpop.f32.mrf.mxu0
      %v2169 = vadd.f32 %v2080, %v2168
      %2170 = vmatmul.bf16.gmra.mxu0 %v1054
      %v2171 = vpop.f32.mrf.mxu0
      %v2172 = vadd.f32 %v2083, %v2171
      %v2173 = vpop.f32.mrf.mxu0
      %v2174 = vadd.f32 %v2085, %v2173
      %2175 = vmatmul.bf16.gmra.mxu0 %v1063
      %v2176 = vpop.f32.mrf.mxu0
      %v2177 = vadd.f32 %v2088, %v2176
      %v2178 = vpop.f32.mrf.mxu0
      %v2179 = vadd.f32 %v2090, %v2178
      %2180 = vmatmul.bf16.gmra.mxu0 %v1072
      %v2181 = vpop.f32.mrf.mxu0
      %v2182 = vadd.f32 %v2093, %v2181
      %v2183 = vpop.f32.mrf.mxu0
      %v2184 = vadd.f32 %v2095, %v2183
      %2185 = vdwg.mxu0
      %2186 = vmatpush.bf16.msra.mxu0 %v1563
      %2187 = vmatpush.bf16.msra.mxu0 %v1562
      %2188 = vmatpush.bf16.msra.mxu0 %v1561
      %2189 = vmatpush.bf16.msra.mxu0 %v1560
      %2190 = vmatpush.bf16.msra.mxu0 %v1559
      %2191 = vmatpush.bf16.msra.mxu0 %v1558
      %2192 = vmatpush.bf16.msra.mxu0 %v1557
      %2193 = vmatpush.bf16.msra.mxu0 %v1556
      %2194 = vmatmul.bf16.gmra.mxu0 %v938
      %v2195 = vpop.f32.mrf.mxu0
      %v2196 = vadd.f32 %v2107, %v2195
      %v2197 = vpop.f32.mrf.mxu0
      %v2198 = vadd.f32 %v2109, %v2197
      %2199 = vmatmul.bf16.gmra.mxu0 %v947
      %v2200 = vpop.f32.mrf.mxu0
      %v2201 = vadd.f32 %v2112, %v2200
      %v2202 = vpop.f32.mrf.mxu0
      %v2203 = vadd.f32 %v2114, %v2202
      %2204 = vmatmul.bf16.gmra.mxu0 %v956
      %v2205 = vpop.f32.mrf.mxu0
      %v2206 = vadd.f32 %v2117, %v2205
      %v2207 = vpop.f32.mrf.mxu0
      %v2208 = vadd.f32 %v2119, %v2207
      %2209 = vmatmul.bf16.gmra.mxu0 %v965
      %v2210 = vpop.f32.mrf.mxu0
      %v2211 = vadd.f32 %v2122, %v2210
      %v2212 = vpop.f32.mrf.mxu0
      %v2213 = vadd.f32 %v2124, %v2212
      %2214 = vmatmul.bf16.gmra.mxu0 %v974
      %v2215 = vpop.f32.mrf.mxu0
      %v2216 = vadd.f32 %v2127, %v2215
      %v2217 = vpop.f32.mrf.mxu0
      %v2218 = vadd.f32 %v2129, %v2217
      %2219 = vmatmul.bf16.gmra.mxu0 %v983
      %v2220 = vpop.f32.mrf.mxu0
      %v2221 = vadd.f32 %v2132, %v2220
      %v2222 = vpop.f32.mrf.mxu0
      %v2223 = vadd.f32 %v2134, %v2222
      %2224 = vmatmul.bf16.gmra.mxu0 %v992
      %v2225 = vpop.f32.mrf.mxu0
      %v2226 = vadd.f32 %v2137, %v2225
      %v2227 = vpop.f32.mrf.mxu0
      %v2228 = vadd.f32 %v2139, %v2227
      %2229 = vmatmul.bf16.gmra.mxu0 %v1001
      %v2230 = vpop.f32.mrf.mxu0
      %v2231 = vadd.f32 %v2142, %v2230
      %v2232 = vpop.f32.mrf.mxu0
      %v2233 = vadd.f32 %v2144, %v2232
      %2234 = vmatmul.bf16.gmra.mxu0 %v1010
      %v2235 = vpop.f32.mrf.mxu0
      %v2236 = vadd.f32 %v2147, %v2235
      %v2237 = vpop.f32.mrf.mxu0
      %v2238 = vadd.f32 %v2149, %v2237
      %2239 = vmatmul.bf16.gmra.mxu0 %v1019
      %v2240 = vpop.f32.mrf.mxu0
      %v2241 = vadd.f32 %v2152, %v2240
      %v2242 = vpop.f32.mrf.mxu0
      %v2243 = vadd.f32 %v2154, %v2242
      %2244 = vmatmul.bf16.gmra.mxu0 %v1028
      %v2245 = vpop.f32.mrf.mxu0
      %v2246 = vadd.f32 %v2157, %v2245
      %v2247 = vpop.f32.mrf.mxu0
      %v2248 = vadd.f32 %v2159, %v2247
      %2249 = vmatmul.bf16.gmra.mxu0 %v1037
      %v2250 = vpop.f32.mrf.mxu0
      %v2251 = vadd.f32 %v2162, %v2250
      %v2252 = vpop.f32.mrf.mxu0
      %v2253 = vadd.f32 %v2164, %v2252
      %2254 = vmatmul.bf16.gmra.mxu0 %v1046
      %v2255 = vpop.f32.mrf.mxu0
      %v2256 = vadd.f32 %v2167, %v2255
      %v2257 = vpop.f32.mrf.mxu0
      %v2258 = vadd.f32 %v2169, %v2257
      %2259 = vmatmul.bf16.gmra.mxu0 %v1055
      %v2260 = vpop.f32.mrf.mxu0
      %v2261 = vadd.f32 %v2172, %v2260
      %v2262 = vpop.f32.mrf.mxu0
      %v2263 = vadd.f32 %v2174, %v2262
      %2264 = vmatmul.bf16.gmra.mxu0 %v1064
      %v2265 = vpop.f32.mrf.mxu0
      %v2266 = vadd.f32 %v2177, %v2265
      %v2267 = vpop.f32.mrf.mxu0
      %v2268 = vadd.f32 %v2179, %v2267
      %2269 = vmatmul.bf16.gmra.mxu0 %v1073
      %v2270 = vpop.f32.mrf.mxu0
      %v2271 = vadd.f32 %v2182, %v2270
      %v2272 = vpop.f32.mrf.mxu0
      %v2273 = vadd.f32 %v2184, %v2272
      %2274 = vdwg.mxu0
      %2275 = vmatpush.bf16.msra.mxu0 %v1571
      %2276 = vmatpush.bf16.msra.mxu0 %v1570
      %2277 = vmatpush.bf16.msra.mxu0 %v1569
      %2278 = vmatpush.bf16.msra.mxu0 %v1568
      %2279 = vmatpush.bf16.msra.mxu0 %v1567
      %2280 = vmatpush.bf16.msra.mxu0 %v1566
      %2281 = vmatpush.bf16.msra.mxu0 %v1565
      %2282 = vmatpush.bf16.msra.mxu0 %v1564
      %2283 = vmatmul.bf16.gmra.mxu0 %v939
      %v2284 = vpop.f32.mrf.mxu0
      %v2285 = vadd.f32 %v2196, %v2284
      %v2286 = vpop.f32.mrf.mxu0
      %v2287 = vadd.f32 %v2198, %v2286
      %2288 = vmatmul.bf16.gmra.mxu0 %v948
      %v2289 = vpop.f32.mrf.mxu0
      %v2290 = vadd.f32 %v2201, %v2289
      %v2291 = vpop.f32.mrf.mxu0
      %v2292 = vadd.f32 %v2203, %v2291
      %2293 = vmatmul.bf16.gmra.mxu0 %v957
      %v2294 = vpop.f32.mrf.mxu0
      %v2295 = vadd.f32 %v2206, %v2294
      %v2296 = vpop.f32.mrf.mxu0
      %v2297 = vadd.f32 %v2208, %v2296
      %2298 = vmatmul.bf16.gmra.mxu0 %v966
      %v2299 = vpop.f32.mrf.mxu0
      %v2300 = vadd.f32 %v2211, %v2299
      %v2301 = vpop.f32.mrf.mxu0
      %v2302 = vadd.f32 %v2213, %v2301
      %2303 = vmatmul.bf16.gmra.mxu0 %v975
      %v2304 = vpop.f32.mrf.mxu0
      %v2305 = vadd.f32 %v2216, %v2304
      %v2306 = vpop.f32.mrf.mxu0
      %v2307 = vadd.f32 %v2218, %v2306
      %2308 = vmatmul.bf16.gmra.mxu0 %v984
      %v2309 = vpop.f32.mrf.mxu0
      %v2310 = vadd.f32 %v2221, %v2309
      %v2311 = vpop.f32.mrf.mxu0
      %v2312 = vadd.f32 %v2223, %v2311
      %2313 = vmatmul.bf16.gmra.mxu0 %v993
      %v2314 = vpop.f32.mrf.mxu0
      %v2315 = vadd.f32 %v2226, %v2314
      %v2316 = vpop.f32.mrf.mxu0
      %v2317 = vadd.f32 %v2228, %v2316
      %2318 = vmatmul.bf16.gmra.mxu0 %v1002
      %v2319 = vpop.f32.mrf.mxu0
      %v2320 = vadd.f32 %v2231, %v2319
      %v2321 = vpop.f32.mrf.mxu0
      %v2322 = vadd.f32 %v2233, %v2321
      %2323 = vmatmul.bf16.gmra.mxu0 %v1011
      %v2324 = vpop.f32.mrf.mxu0
      %v2325 = vadd.f32 %v2236, %v2324
      %v2326 = vpop.f32.mrf.mxu0
      %v2327 = vadd.f32 %v2238, %v2326
      %2328 = vmatmul.bf16.gmra.mxu0 %v1020
      %v2329 = vpop.f32.mrf.mxu0
      %v2330 = vadd.f32 %v2241, %v2329
      %v2331 = vpop.f32.mrf.mxu0
      %v2332 = vadd.f32 %v2243, %v2331
      %2333 = vmatmul.bf16.gmra.mxu0 %v1029
      %v2334 = vpop.f32.mrf.mxu0
      %v2335 = vadd.f32 %v2246, %v2334
      %v2336 = vpop.f32.mrf.mxu0
      %v2337 = vadd.f32 %v2248, %v2336
      %2338 = vmatmul.bf16.gmra.mxu0 %v1038
      %v2339 = vpop.f32.mrf.mxu0
      %v2340 = vadd.f32 %v2251, %v2339
      %v2341 = vpop.f32.mrf.mxu0
      %v2342 = vadd.f32 %v2253, %v2341
      %2343 = vmatmul.bf16.gmra.mxu0 %v1047
      %v2344 = vpop.f32.mrf.mxu0
      %v2345 = vadd.f32 %v2256, %v2344
      %v2346 = vpop.f32.mrf.mxu0
      %v2347 = vadd.f32 %v2258, %v2346
      %2348 = vmatmul.bf16.gmra.mxu0 %v1056
      %v2349 = vpop.f32.mrf.mxu0
      %v2350 = vadd.f32 %v2261, %v2349
      %v2351 = vpop.f32.mrf.mxu0
      %v2352 = vadd.f32 %v2263, %v2351
      %2353 = vmatmul.bf16.gmra.mxu0 %v1065
      %v2354 = vpop.f32.mrf.mxu0
      %v2355 = vadd.f32 %v2266, %v2354
      %v2356 = vpop.f32.mrf.mxu0
      %v2357 = vadd.f32 %v2268, %v2356
      %2358 = vmatmul.bf16.gmra.mxu0 %v1074
      %v2359 = vpop.f32.mrf.mxu0
      %v2360 = vadd.f32 %v2271, %v2359
      %v2361 = vpop.f32.mrf.mxu0
      %v2362 = vadd.f32 %v2273, %v2361
      %2363 = vdwg.mxu0
      %2364 = vmatpush.bf16.msra.mxu0 %v1579
      %2365 = vmatpush.bf16.msra.mxu0 %v1578
      %2366 = vmatpush.bf16.msra.mxu0 %v1577
      %2367 = vmatpush.bf16.msra.mxu0 %v1576
      %2368 = vmatpush.bf16.msra.mxu0 %v1575
      %2369 = vmatpush.bf16.msra.mxu0 %v1574
      %2370 = vmatpush.bf16.msra.mxu0 %v1573
      %2371 = vmatpush.bf16.msra.mxu0 %v1572
      %2372 = vmatmul.bf16.gmra.mxu0 %v940
      %v2373 = vpop.f32.mrf.mxu0
      %v2374 = vadd.f32 %v2285, %v2373
      %v2375 = vpop.f32.mrf.mxu0
      %v2376 = vadd.f32 %v2287, %v2375
      %2377 = vmatmul.bf16.gmra.mxu0 %v949
      %v2378 = vpop.f32.mrf.mxu0
      %v2379 = vadd.f32 %v2290, %v2378
      %v2380 = vpop.f32.mrf.mxu0
      %v2381 = vadd.f32 %v2292, %v2380
      %2382 = vmatmul.bf16.gmra.mxu0 %v958
      %v2383 = vpop.f32.mrf.mxu0
      %v2384 = vadd.f32 %v2295, %v2383
      %v2385 = vpop.f32.mrf.mxu0
      %v2386 = vadd.f32 %v2297, %v2385
      %2387 = vmatmul.bf16.gmra.mxu0 %v967
      %v2388 = vpop.f32.mrf.mxu0
      %v2389 = vadd.f32 %v2300, %v2388
      %v2390 = vpop.f32.mrf.mxu0
      %v2391 = vadd.f32 %v2302, %v2390
      %2392 = vmatmul.bf16.gmra.mxu0 %v976
      %v2393 = vpop.f32.mrf.mxu0
      %v2394 = vadd.f32 %v2305, %v2393
      %v2395 = vpop.f32.mrf.mxu0
      %v2396 = vadd.f32 %v2307, %v2395
      %2397 = vmatmul.bf16.gmra.mxu0 %v985
      %v2398 = vpop.f32.mrf.mxu0
      %v2399 = vadd.f32 %v2310, %v2398
      %v2400 = vpop.f32.mrf.mxu0
      %v2401 = vadd.f32 %v2312, %v2400
      %2402 = vmatmul.bf16.gmra.mxu0 %v994
      %v2403 = vpop.f32.mrf.mxu0
      %v2404 = vadd.f32 %v2315, %v2403
      %v2405 = vpop.f32.mrf.mxu0
      %v2406 = vadd.f32 %v2317, %v2405
      %2407 = vmatmul.bf16.gmra.mxu0 %v1003
      %v2408 = vpop.f32.mrf.mxu0
      %v2409 = vadd.f32 %v2320, %v2408
      %v2410 = vpop.f32.mrf.mxu0
      %v2411 = vadd.f32 %v2322, %v2410
      %2412 = vmatmul.bf16.gmra.mxu0 %v1012
      %v2413 = vpop.f32.mrf.mxu0
      %v2414 = vadd.f32 %v2325, %v2413
      %v2415 = vpop.f32.mrf.mxu0
      %v2416 = vadd.f32 %v2327, %v2415
      %2417 = vmatmul.bf16.gmra.mxu0 %v1021
      %v2418 = vpop.f32.mrf.mxu0
      %v2419 = vadd.f32 %v2330, %v2418
      %v2420 = vpop.f32.mrf.mxu0
      %v2421 = vadd.f32 %v2332, %v2420
      %2422 = vmatmul.bf16.gmra.mxu0 %v1030
      %v2423 = vpop.f32.mrf.mxu0
      %v2424 = vadd.f32 %v2335, %v2423
      %v2425 = vpop.f32.mrf.mxu0
      %v2426 = vadd.f32 %v2337, %v2425
      %2427 = vmatmul.bf16.gmra.mxu0 %v1039
      %v2428 = vpop.f32.mrf.mxu0
      %v2429 = vadd.f32 %v2340, %v2428
      %v2430 = vpop.f32.mrf.mxu0
      %v2431 = vadd.f32 %v2342, %v2430
      %2432 = vmatmul.bf16.gmra.mxu0 %v1048
      %v2433 = vpop.f32.mrf.mxu0
      %v2434 = vadd.f32 %v2345, %v2433
      %v2435 = vpop.f32.mrf.mxu0
      %v2436 = vadd.f32 %v2347, %v2435
      %2437 = vmatmul.bf16.gmra.mxu0 %v1057
      %v2438 = vpop.f32.mrf.mxu0
      %v2439 = vadd.f32 %v2350, %v2438
      %v2440 = vpop.f32.mrf.mxu0
      %v2441 = vadd.f32 %v2352, %v2440
      %2442 = vmatmul.bf16.gmra.mxu0 %v1066
      %v2443 = vpop.f32.mrf.mxu0
      %v2444 = vadd.f32 %v2355, %v2443
      %v2445 = vpop.f32.mrf.mxu0
      %v2446 = vadd.f32 %v2357, %v2445
      %2447 = vmatmul.bf16.gmra.mxu0 %v1075
      %v2448 = vpop.f32.mrf.mxu0
      %v2449 = vadd.f32 %v2360, %v2448
      %v2450 = vpop.f32.mrf.mxu0
      %v2451 = vadd.f32 %v2362, %v2450
      %2452 = vdwg.mxu0
      %2453 = vst [vmem:[%s173] sm:$0xff] %v2374
      %2454 = vst [vmem:[%s173 + $0x8] sm:$0xff] %v2376
      %2455 = vst [vmem:[%s173 + $0x10] sm:$0xff] %v2379
      %2456 = vst [vmem:[%s173 + $0x18] sm:$0xff] %v2381
      %2457 = vst [vmem:[%s173 + $0x20] sm:$0xff] %v2384
      %2458 = vst [vmem:[%s173 + $0x28] sm:$0xff] %v2386
      %2459 = vst [vmem:[%s173 + $0x30] sm:$0xff] %v2389
      %2460 = vst [vmem:[%s173 + $0x38] sm:$0xff] %v2391
      %2461 = vst [vmem:[%s173 + $0x40] sm:$0xff] %v2394
      %2462 = vst [vmem:[%s173 + $0x48] sm:$0xff] %v2396
      %2463 = vst [vmem:[%s173 + $0x50] sm:$0xff] %v2399
      %2464 = vst [vmem:[%s173 + $0x58] sm:$0xff] %v2401
      %2465 = vst [vmem:[%s173 + $0x60] sm:$0xff] %v2404
      %2466 = vst [vmem:[%s173 + $0x68] sm:$0xff] %v2406
      %2467 = vst [vmem:[%s173 + $0x70] sm:$0xff] %v2409
      %2468 = vst [vmem:[%s173 + $0x78] sm:$0xff] %v2411
      %2469 = vst [vmem:[%s173 + $0x80] sm:$0xff] %v2414
      %2470 = vst [vmem:[%s173 + $0x88] sm:$0xff] %v2416
      %2471 = vst [vmem:[%s173 + $0x90] sm:$0xff] %v2419
      %2472 = vst [vmem:[%s173 + $0x98] sm:$0xff] %v2421
      %2473 = vst [vmem:[%s173 + $0xa0] sm:$0xff] %v2424
      %2474 = vst [vmem:[%s173 + $0xa8] sm:$0xff] %v2426
      %2475 = vst [vmem:[%s173 + $0xb0] sm:$0xff] %v2429
      %2476 = vst [vmem:[%s173 + $0xb8] sm:$0xff] %v2431
      %2477 = vst [vmem:[%s173 + $0xc0] sm:$0xff] %v2434
      %2478 = vst [vmem:[%s173 + $0xc8] sm:$0xff] %v2436
      %2479 = vst [vmem:[%s173 + $0xd0] sm:$0xff] %v2439
      %2480 = vst [vmem:[%s173 + $0xd8] sm:$0xff] %v2441
      %2481 = vst [vmem:[%s173 + $0xe0] sm:$0xff] %v2444
      %2482 = vst [vmem:[%s173 + $0xe8] sm:$0xff] %v2446
      %2483 = vst [vmem:[%s173 + $0xf0] sm:$0xff] %v2449
      %2484 = vst [vmem:[%s173 + $0xf8] sm:$0xff] %v2451
      %v2485 = vld [vmem:[#allocation2] sm:$0x1]
      %v2486 = vadd.f32 %v2374, %v2376
      %v2487 = vadd.f32 %v2486, %v2379
      %v2488 = vadd.f32 %v2487, %v2381
      %v2489 = vadd.f32 %v2488, %v2384
      %v2490 = vadd.f32 %v2489, %v2386
      %v2491 = vadd.f32 %v2490, %v2389
      %v2492 = vadd.f32 %v2491, %v2391
      %v2493 = vadd.f32 %v2492, %v2394
      %v2494 = vadd.f32 %v2493, %v2396
      %v2495 = vadd.f32 %v2494, %v2399
      %v2496 = vadd.f32 %v2495, %v2401
      %v2497 = vadd.f32 %v2496, %v2404
      %v2498 = vadd.f32 %v2497, %v2406
      %v2499 = vadd.f32 %v2498, %v2409
      %v2500 = vadd.f32 %v2499, %v2411
      %v2501 = vadd.f32 %v2500, %v2414
      %v2502 = vadd.f32 %v2501, %v2416
      %v2503 = vadd.f32 %v2502, %v2419
      %v2504 = vadd.f32 %v2503, %v2421
      %v2505 = vadd.f32 %v2504, %v2424
      %v2506 = vadd.f32 %v2505, %v2426
      %v2507 = vadd.f32 %v2506, %v2429
      %v2508 = vadd.f32 %v2507, %v2431
      %v2509 = vadd.f32 %v2508, %v2434
      %v2510 = vadd.f32 %v2509, %v2436
      %v2511 = vadd.f32 %v2510, %v2439
      %v2512 = vadd.f32 %v2511, %v2441
      %v2513 = vadd.f32 %v2512, %v2444
      %v2514 = vadd.f32 %v2513, %v2446
      %v2515 = vadd.f32 %v2514, %v2449
      %v2516 = vadd.f32 %v2515, %v2451
      %v2517 = vrot.slane %v2516, 4
      %v2518 = vadd.f32 %v2516, %v2517
      %v2519 = vrot.slane %v2518, 2
      %v2520 = vadd.f32 %v2518, %v2519
      %v2521 = vrot.slane %v2520, 1
      %v2522 = vadd.f32 %v2520, %v2521
      %v2523 = vadd.f32 %v2485, %v2522
      %2524 = vst [vmem:[#allocation2] sm:$0x1] %v2523
      %v2525 = vld [vmem:[#allocation2 + $0x1] sm:$0x1]
      %v2526 = vmul.f32 %v2374, %v2374
      %v2527 = vmul.f32 %v2376, %v2376
      %v2528 = vmul.f32 %v2379, %v2379
      %v2529 = vmul.f32 %v2381, %v2381
      %v2530 = vmul.f32 %v2384, %v2384
      %v2531 = vmul.f32 %v2386, %v2386
      %v2532 = vmul.f32 %v2389, %v2389
      %v2533 = vmul.f32 %v2391, %v2391
      %v2534 = vmul.f32 %v2394, %v2394
      %v2535 = vmul.f32 %v2396, %v2396
      %v2536 = vmul.f32 %v2399, %v2399
      %v2537 = vmul.f32 %v2401, %v2401
      %v2538 = vmul.f32 %v2404, %v2404
      %v2539 = vmul.f32 %v2406, %v2406
      %v2540 = vmul.f32 %v2409, %v2409
      %v2541 = vmul.f32 %v2411, %v2411
      %v2542 = vmul.f32 %v2414, %v2414
      %v2543 = vmul.f32 %v2416, %v2416
      %v2544 = vmul.f32 %v2419, %v2419
      %v2545 = vmul.f32 %v2421, %v2421
      %v2546 = vmul.f32 %v2424, %v2424
      %v2547 = vmul.f32 %v2426, %v2426
      %v2548 = vmul.f32 %v2429, %v2429
      %v2549 = vmul.f32 %v2431, %v2431
      %v2550 = vmul.f32 %v2434, %v2434
      %v2551 = vmul.f32 %v2436, %v2436
      %v2552 = vmul.f32 %v2439, %v2439
      %v2553 = vmul.f32 %v2441, %v2441
      %v2554 = vmul.f32 %v2444, %v2444
      %v2555 = vmul.f32 %v2446, %v2446
      %v2556 = vmul.f32 %v2449, %v2449
      %v2557 = vmul.f32 %v2451, %v2451
      %v2558 = vadd.f32 %v2526, %v2527
      %v2559 = vadd.f32 %v2558, %v2528
      %v2560 = vadd.f32 %v2559, %v2529
      %v2561 = vadd.f32 %v2560, %v2530
      %v2562 = vadd.f32 %v2561, %v2531
      %v2563 = vadd.f32 %v2562, %v2532
      %v2564 = vadd.f32 %v2563, %v2533
      %v2565 = vadd.f32 %v2564, %v2534
      %v2566 = vadd.f32 %v2565, %v2535
      %v2567 = vadd.f32 %v2566, %v2536
      %v2568 = vadd.f32 %v2567, %v2537
      %v2569 = vadd.f32 %v2568, %v2538
      %v2570 = vadd.f32 %v2569, %v2539
      %v2571 = vadd.f32 %v2570, %v2540
      %v2572 = vadd.f32 %v2571, %v2541
      %v2573 = vadd.f32 %v2572, %v2542
      %v2574 = vadd.f32 %v2573, %v2543
      %v2575 = vadd.f32 %v2574, %v2544
      %v2576 = vadd.f32 %v2575, %v2545
      %v2577 = vadd.f32 %v2576, %v2546
      %v2578 = vadd.f32 %v2577, %v2547
      %v2579 = vadd.f32 %v2578, %v2548
      %v2580 = vadd.f32 %v2579, %v2549
      %v2581 = vadd.f32 %v2580, %v2550
      %v2582 = vadd.f32 %v2581, %v2551
      %v2583 = vadd.f32 %v2582, %v2552
      %v2584 = vadd.f32 %v2583, %v2553
      %v2585 = vadd.f32 %v2584, %v2554
      %v2586 = vadd.f32 %v2585, %v2555
      %v2587 = vadd.f32 %v2586, %v2556
      %v2588 = vadd.f32 %v2587, %v2557
      %v2589 = vrot.slane %v2588, 4
      %v2590 = vadd.f32 %v2588, %v2589
      %v2591 = vrot.slane %v2590, 2
      %v2592 = vadd.f32 %v2590, %v2591
      %v2593 = vrot.slane %v2592, 1
      %v2594 = vadd.f32 %v2592, %v2593
      %v2595 = vadd.f32 %v2525, %v2594
      %2596 = vst [vmem:[#allocation2 + $0x1] sm:$0x1] %v2595
      %p2597 = scmp.eq.s32.totalorder %s15, 1
      // Predicated region
      $region33: #{double_basic_block.8} parent=27 // pred_check
        %p2598 = pneg %p2597
      $region34: #{double_basic_block.8} parent=27 // pred_check_branch
        %2600 = sbr.rel (%p2598) target = $region36
      $region35: #{double_basic_block.8} parent=27 // pred_region
        %v2601 = vld [vmem:[#allocation2] sm:$0xff]
        %2602 = vst [vmem:[%s3] sm:$0xff] %v2601
      $region36: #{double_basic_block.8} parent=27 // pred_fallthru
        _
      %s2603 = smul.u32 32, %s15
      %p2604 = scmp.lt.s32.totalorder %s2603, 63
      %s2605 = scalar_select %p2604, %s2603, 63
      %s2606 = smul.addr %s2605, 8
      %s2607 = scalar_lea.vmem %s2, %s2606
      // Predicated region
      $region37: #{double_basic_block.8} parent=27 // pred_check
        %p2608 = pneg %p80
      $region38: #{double_basic_block.8} parent=27 // pred_check_branch
        %2610 = sbr.rel (%p2608) target = $region40
      $region39: #{double_basic_block.8} parent=27 // pred_region
        %s2611 = smul.u32 32, %s15
      $region40: #{double_basic_block.8} parent=27 // pred_fallthru
        _
      // Predicated region
      $region41: #{double_basic_block.8} parent=27 // pred_check
        %p2612 = pneg %p101
      $region42: #{double_basic_block.8} parent=27 // pred_check_branch
        %2614 = sbr.rel (%p2612) target = $region44
      $region43: #{double_basic_block.8} parent=27 // pred_region
        _
      $region44: #{double_basic_block.8} parent=27 // pred_fallthru
        _
      // Predicated region
      $region45: #{double_basic_block.8} parent=27 // pred_check
        %p2615 = pneg %p101
      $region46: #{double_basic_block.8} parent=27 // pred_check_branch
        %2617 = sbr.rel (%p2615) target = $region48
      $region47: #{double_basic_block.8} parent=27 // pred_region
        _
      $region48: #{double_basic_block.8} parent=27 // pred_fallthru
        _
    $region28: #{double_basic_block.8} parent=5 // pred_fallthru
      _
    %p2618 = scmp.le.s32.totalorder 2, %s10
    // Predicated region
    $region49: #{double_basic_block.8} parent=5 // pred_check
      %p2619 = pneg %p2618
    $region50: #{double_basic_block.8} parent=5 // pred_check_branch
      %2621 = sbr.rel (%p2619) target = $region52
    $region51: #{double_basic_block.8} parent=5 // pred_region
      %s2622 = ssub.s32 %s10, 2
      // Predicated region
      $region53: #{double_basic_block.8} parent=51 // pred_check
        %p2623 = pneg %p86
      $region54: #{double_basic_block.8} parent=51 // pred_check_branch
        %2625 = sbr.rel (%p2623) target = $region56
      $region55: #{double_basic_block.8} parent=51 // pred_region
        %s2626 = smul.u32 32, %s16
        %p2627 = scmp.lt.s32.totalorder %s2626, 63
        %s2628 = scalar_select %p2627, %s2626, 63
        %s2629 = smul.addr %s2628, 8
        %s2630 = scalar_lea.vmem %s2, %s2629
      $region56: #{double_basic_block.8} parent=51 // pred_fallthru
        _
    $region52: #{double_basic_block.8} parent=5 // pred_fallthru
      _
  $region6: #{double_basic_block.8} parent=0 // loop_footer
    %s14 = sadd.s32 1, %s10
  $region7: #{double_basic_block.8} parent=0 // loop_footer_branch
    %9 = sbr.rel target = $region3
  $region8: #{double_basic_block.8} parent=0 // loop_exit
    _

</llo_original>
